<compile_context>
chip_gen: v5e
topology: v5e:2x2
jax: 0.10.0
libtpu: 0.0.40
codegen_flags: <defaults>
</compile_context>

<pallas_src>
import functools

import jax
import jax.numpy as jnp
from jax import lax
from jax.experimental import pallas as pl
from jax.experimental.pallas import tpu as pltpu

LANE = 128                 # lane alignment for K / N padding
SUB = 16                   # sublane alignment (covers bf16 packing)
MAX_TM = 512               # max rows of X per grid step
EPS = 1e-5                 # BatchNorm eps (PyTorch default)
CONV_CHANNELS = (16, 32, 32)   # ObsEncoder conv1/2/3 output channels
KSIZE, STRIDE = 5, 2


def _round_up(x, m):
    return (x + m - 1) // m * m


def _conv_out(size, k=KSIZE, s=STRIDE):
    return (size - (k - 1) - 1) // s + 1


# ------------------------------ Pallas kernels -------------------------------
def _conv_gemm_kernel(x_ref, w_ref, b_ref, o_ref):
    """relu(X @ W + b): X/W bf16 on the MXU, f32 accumulation, bf16 out."""
    acc = jnp.dot(x_ref[...], w_ref[...], preferred_element_type=jnp.float32)
    o_ref[...] = jnp.maximum(acc + b_ref[...], 0.0).astype(o_ref.dtype)


def _fused_mlp_kernel(*refs, acts):
    """Whole head + v_net stack in one kernel; all weights VMEM-resident."""
    x_ref, o_ref = refs[0], refs[-1]
    h = x_ref[...]                                   # bf16 (Mp, K0p)
    n = len(acts)
    for j, act in enumerate(acts):
        w_ref, b_ref = refs[1 + 2 * j], refs[2 + 2 * j]
        y = jnp.dot(h, w_ref[...], preferred_element_type=jnp.float32) + b_ref[...]
        if act == "tanh":
            y = jnp.tanh(y)
        h = y if j == n - 1 else y.astype(jnp.bfloat16)
    o_ref[...] = h                                   # f32 (Mp, Np_last)


# ------------------------------ Pallas wrappers -------------------------------
def conv_gemm_relu(patches, w_pad, b_pad, cout):
    """relu(patches @ W + b); W already carries the folded BN scale."""
    M, K = patches.shape
    Kp, Np = w_pad.shape
    steps = -(-M // MAX_TM)
    tm = _round_up(-(-M // steps), SUB)
    mp = tm * steps
    xp = jnp.pad(patches.astype(jnp.bfloat16), ((0, mp - M), (0, Kp - K)))
    out = pl.pallas_call(
        _conv_gemm_kernel,
        out_shape=jax.ShapeDtypeStruct((mp, Np), jnp.bfloat16),
        grid=(steps,),
        in_specs=[
            pl.BlockSpec((tm, Kp), lambda i: (i, 0)),   # X rows pipelined
            pl.BlockSpec((Kp, Np), lambda i: (0, 0)),   # folded weight, resident
            pl.BlockSpec((1, Np), lambda i: (0, 0)),    # folded bias row
        ],
        out_specs=pl.BlockSpec((tm, Np), lambda i: (i, 0)),
        compiler_params=pltpu.CompilerParams(dimension_semantics=("parallel",)),
    )(xp, w_pad, b_pad)
    return out[:M, :cout]


def fused_mlp(x, ws, bs, acts):
    """Single pallas_call for head + all v_net layers.  Returns (M, 1) f32."""
    M, K = x.shape
    K0p = ws[0].shape[0]
    np_out = ws[-1].shape[1]
    mp = _round_up(M, SUB)
    xp = jnp.pad(x.astype(jnp.bfloat16), ((0, mp - M), (0, K0p - K)))
    operands = [xp]
    in_specs = [pl.BlockSpec((mp, K0p), lambda i: (0, 0))]
    for w, b in zip(ws, bs):
        operands += [w, b]
        in_specs += [pl.BlockSpec(w.shape, lambda i: (0, 0)),
                     pl.BlockSpec(b.shape, lambda i: (0, 0))]
    out = pl.pallas_call(
        functools.partial(_fused_mlp_kernel, acts=acts),
        out_shape=jax.ShapeDtypeStruct((mp, np_out), jnp.float32),
        grid=(1,),
        in_specs=in_specs,
        out_specs=pl.BlockSpec((mp, np_out), lambda i: (0, 0)),
        compiler_params=pltpu.CompilerParams(dimension_semantics=("arbitrary",)),
    )(*operands)
    return out[:M, :1]        # final Linear width is 1 (critic value)


# ------------------------------- glue (JAX) ----------------------------------
def _im2col_nhwc(x, k, s):
    """(B, H, W, C) -> (B*OH*OW, k*k*C) patches, feature order (kh, kw, C)."""
    B, H, W, C = x.shape
    OH = (H - k) // s + 1
    OW = (W - k) // s + 1
    cols = []
    for i in range(k):
        for j in range(k):
            cols.append(x[:, i:i + s * OH:s, j:j + s * OW:s, :])   # (B,OH,OW,C)
    p = jnp.concatenate(cols, axis=-1)                              # (B,OH,OW,k*k*C)
    return p.reshape(B * OH * OW, k * k * C), OH, OW


def conv_bn_relu_nhwc(x, w_pad, b_pad, cout):
    """Conv2d(stride=2, valid) + eval BN + ReLU on an NHWC activation."""
    B = x.shape[0]
    patches, OH, OW = _im2col_nhwc(x, KSIZE, STRIDE)
    y = conv_gemm_relu(patches, w_pad, b_pad, cout)
    return y.reshape(B, OH, OW, cout)                 # stay NHWC (no relayout)


def prepare_params(params, img_hw=(64, 64)):
    """Fold BN + biases, fix layouts, pad to TPU tiles, cast weights to bf16.

    Run ONCE outside the per-step jitted forward (weights are static).
    """
    prepared = {"convs": []}
    for c in params["convs"]:
        cout, cin, k, _ = c["w"].shape
        inv = c["gamma"] / jnp.sqrt(c["var"] + EPS)
        # rows in (kh, kw, Cin) order to match the NHWC im2col feature order
        w_mat = c["w"].transpose(2, 3, 1, 0).reshape(k * k * cin, cout)
        w_mat = w_mat * inv[None, :]                       # fold BN scale
        bias = (c["b"] - c["mean"]) * inv + c["beta"]      # conv bias + BN shift
        kp, npad = _round_up(k * k * cin, LANE), _round_up(cout, LANE)
        prepared["convs"].append(dict(
            w=jnp.pad(w_mat, ((0, kp - k * k * cin), (0, npad - cout))
                      ).astype(jnp.bfloat16),
            b=jnp.pad(bias.reshape(1, cout).astype(jnp.float32),
                      ((0, 0), (0, npad - cout))),
        ))

    # head weight: permute columns from PyTorch NCHW-flatten (C,H,W) order to
    # the NHWC-flatten (H,W,C) order used by the kernel path.
    h3 = _conv_out(_conv_out(_conv_out(img_hw[0])))
    w3 = _conv_out(_conv_out(_conv_out(img_hw[1])))
    c3 = CONV_CHANNELS[-1]
    hw = params["head_w"]
    hw = hw.reshape(hw.shape[0], c3, h3, w3).transpose(0, 2, 3, 1)
    hw = hw.reshape(hw.shape[0], -1)

    stack = [(hw.T, params["head_b"])]                 # head: Linear, no act
    stack += [(lyr["w"].T, lyr["b"]) for lyr in params["v_net"]]
    ws, bs = [], []
    for w, b in stack:
        K, N = w.shape
        kp, npad = _round_up(K, LANE), _round_up(N, LANE)
        ws.append(jnp.pad(w, ((0, kp - K), (0, npad - N))).astype(jnp.bfloat16))
        bs.append(jnp.pad(b.reshape(1, N).astype(jnp.float32),
                          ((0, 0), (0, npad - N))))
    prepared["mlp_ws"] = tuple(ws)
    prepared["mlp_bs"] = tuple(bs)
    return prepared


def mlp_critic_forward(obs, prepared):
    x = jnp.transpose(obs.astype(jnp.float32), (0, 2, 3, 1))   # NCHW -> NHWC once
    for c, cout in zip(prepared["convs"], CONV_CHANNELS):
        x = conv_bn_relu_nhwc(x, c["w"], c["b"], cout)
    B = x.shape[0]
    flat = x.reshape(B, -1)            # (H,W,C) flatten; head weight pre-permuted
    ws, bs = prepared["mlp_ws"], prepared["mlp_bs"]
    acts = ("none",) + ("tanh",) * (len(ws) - 2) + ("none",)
    v = fused_mlp(flat, ws, bs, acts)  # (B, 1)
    return v[:, 0]                     # (B,)  == torch.squeeze(..., -1)


# --------------------------- deterministic params ----------------------------
def init_params(key, hidden_sizes=(64, 64)):
    ks = iter(jax.random.split(key, 32))

    def norm(shape, std=0.05):
        return std * jax.random.normal(next(ks), shape, jnp.float32)

    convs = []
    for (co, ci) in [(16, 4), (32, 16), (32, 32)]:
        convs.append(dict(
            w=norm((co, ci, 5, 5)),
            b=norm((co,)),
            gamma=1.0 + 0.1 * jax.random.normal(next(ks), (co,), jnp.float32),
            beta=0.1 * jax.random.normal(next(ks), (co,), jnp.float32),
            mean=0.1 * jax.random.normal(next(ks), (co,), jnp.float32),
            var=jax.random.uniform(next(ks), (co,), jnp.float32, 0.5, 1.5),
        ))
    params = {"convs": convs,
              "head_w": norm((64, 800)),    # ObsEncoder(64,64,64): 5*5*32 -> 64
              "head_b": norm((64,))}
    sizes = [64] + list(hidden_sizes) + [1]             # obs_dim = 64
    params["v_net"] = [dict(w=norm((sizes[j + 1], sizes[j])),
                            b=norm((sizes[j + 1],)))
                       for j in range(len(sizes) - 1)]
    return params


# ------------------------------ pure-JAX reference ----------------------------
def ref_forward(obs, params):
    x = obs.astype(jnp.float32)
    for c in params["convs"]:
        x = lax.conv_general_dilated(
            x, c["w"], (2, 2), "VALID",
            dimension_numbers=("NCHW", "OIHW", "NCHW"),
            precision=lax.Precision.HIGHEST)
        x = x + c["b"][None, :, None, None]
        inv = (c["gamma"] / jnp.sqrt(c["var"] + EPS))[None, :, None, None]
        x = (x - c["mean"][None, :, None, None]) * inv + c["beta"][None, :, None, None]
        x = jnp.maximum(x, 0.0)
    B = x.shape[0]
    h = jnp.dot(x.reshape(B, -1), params["head_w"].T,
                precision=lax.Precision.HIGHEST) + params["head_b"]
    n = len(params["v_net"])
    for j, lyr in enumerate(params["v_net"]):
        h = jnp.dot(h, lyr["w"].T, precision=lax.Precision.HIGHEST) + lyr["b"]
        if j < n - 1:
            h = jnp.tanh(h)
    return jnp.squeeze(h, -1)


if __name__ == "__main__":
    key = jax.random.PRNGKey(0)
    pkey, okey = jax.random.split(key)
    params = init_params(pkey)
    obs = jax.random.normal(okey, (2, 4, 64, 64), jnp.float32)

    prepared = prepare_params(params)          # one-time fold/pad/cast (outside jit)
    fwd = jax.jit(mlp_critic_forward)
    out = jax.block_until_ready(fwd(obs, prepared))
    ref = jax.block_until_ready(ref_forward(obs, params))

    assert out.shape == (2,), out.shape
    # bf16 MXU inputs (f32 accumulation) vs. f32-HIGHEST reference: ~1e-3 level
    # relative error expected through 3 convs + 4 linear layers.
    assert jnp.allclose(out, ref, atol=5e-3, rtol=5e-3), (out, ref)
    print("KERNEL_OK")
</pallas_src>

<mosaic_0001>
module attributes {stable_mosaic.version = 11 : i64} {
  func.func @_conv_gemm_kernel(%arg0: i32, %arg1: memref<464x128xbf16, #tpu.memory_space<vmem>>, %arg2: memref<128x128xbf16, #tpu.memory_space<vmem>>, %arg3: memref<1x128xf32, #tpu.memory_space<vmem>>, %arg4: memref<464x128xbf16, #tpu.memory_space<vmem>>) attributes {dimension_semantics = [#tpu.dimension_semantics<parallel>], iteration_bounds = array<i64: 4>, scalar_prefetch = 0 : i64, scratch_operands = 0 : i64, tpu.core_type = #tpu.core_type<tc>, window_params = [{transform_indices = @transform_0, window_bounds = array<i64: 464, 128>}, {pipeline_mode = #tpu.pipeline_mode<synchronous>, transform_indices = @transform_1, window_bounds = array<i64: 128, 128>}, {pipeline_mode = #tpu.pipeline_mode<synchronous>, transform_indices = @transform_2, window_bounds = array<i64: 1, 128>}, {transform_indices = @transform_3, window_bounds = array<i64: 464, 128>}]} {
    %c0 = arith.constant 0 : index
    %c0_0 = arith.constant 0 : index
    %0 = vector.load %arg1[%c0, %c0_0] : memref<464x128xbf16, #tpu.memory_space<vmem>>, vector<464x128xbf16>
    %c0_1 = arith.constant 0 : index
    %c0_2 = arith.constant 0 : index
    %1 = vector.load %arg2[%c0_1, %c0_2] : memref<128x128xbf16, #tpu.memory_space<vmem>>, vector<128x128xbf16>
    %cst = arith.constant dense<0.000000e+00> : vector<464x128xf32>
    %2 = tpu.matmul %0, %1, %cst {dimension_numbers = #tpu.dot_dimension_numbers<[1], [0], [0], [1], [0, 0, 1, 1], [], []>} : vector<464x128xbf16>, vector<128x128xbf16>, vector<464x128xf32> -> vector<464x128xf32>
    %c0_3 = arith.constant 0 : index
    %c0_4 = arith.constant 0 : index
    %3 = vector.load %arg3[%c0_3, %c0_4] : memref<1x128xf32, #tpu.memory_space<vmem>>, vector<1x128xf32>
    %4 = vector.broadcast %3 : vector<1x128xf32> to vector<464x128xf32>
    %5 = arith.addf %2, %4 : vector<464x128xf32>
    %cst_5 = arith.constant 0.000000e+00 : f32
    %6 = vector.broadcast %cst_5 : f32 to vector<464x128xf32>
    %7 = arith.maximumf %5, %6 : vector<464x128xf32>
    %8 = arith.truncf %7 : vector<464x128xf32> to vector<464x128xbf16>
    %c0_6 = arith.constant 0 : index
    %c0_7 = arith.constant 0 : index
    %9 = vector.load %arg4[%c0_6, %c0_7] : memref<464x128xbf16, #tpu.memory_space<vmem>>, vector<464x128xbf16>
    tpu.vector_store %arg4[%c0_6, %c0_7], %8 {strides = array<i32>} : memref<464x128xbf16, #tpu.memory_space<vmem>>, vector<464x128xbf16>,
    return
  }
  func.func @transform_0(%arg0: i32) -> (i32, i32) {
    %c0_i32 = arith.constant 0 : i32
    %c0_i32_0 = arith.constant 0 : i32
    return %arg0, %c0_i32 : i32, i32
  }
  func.func @transform_1(%arg0: i32) -> (i32, i32) {
    %c0_i32 = arith.constant 0 : i32
    %c0_i32_0 = arith.constant 0 : i32
    %c0_i32_1 = arith.constant 0 : i32
    return %c0_i32, %c0_i32_0 : i32, i32
  }
  func.func @transform_2(%arg0: i32) -> (i32, i32) {
    %c0_i32 = arith.constant 0 : i32
    %c0_i32_0 = arith.constant 0 : i32
    %c0_i32_1 = arith.constant 0 : i32
    return %c0_i32, %c0_i32_0 : i32, i32
  }
  func.func @transform_3(%arg0: i32) -> (i32, i32) {
    %c0_i32 = arith.constant 0 : i32
    %c0_i32_0 = arith.constant 0 : i32
    return %arg0, %c0_i32 : i32, i32
  }
}

module attributes {stable_mosaic.version = 11 : i64} {
  func.func @_conv_gemm_kernel(%arg0: i32, %arg1: memref<352x512xbf16, #tpu.memory_space<vmem>>, %arg2: memref<512x128xbf16, #tpu.memory_space<vmem>>, %arg3: memref<1x128xf32, #tpu.memory_space<vmem>>, %arg4: memref<352x128xbf16, #tpu.memory_space<vmem>>) attributes {dimension_semantics = [#tpu.dimension_semantics<parallel>], iteration_bounds = array<i64: 1>, scalar_prefetch = 0 : i64, scratch_operands = 0 : i64, tpu.core_type = #tpu.core_type<tc>, window_params = [{transform_indices = @transform_0, window_bounds = array<i64: 352, 512>}, {pipeline_mode = #tpu.pipeline_mode<synchronous>, transform_indices = @transform_1, window_bounds = array<i64: 512, 128>}, {pipeline_mode = #tpu.pipeline_mode<synchronous>, transform_indices = @transform_2, window_bounds = array<i64: 1, 128>}, {transform_indices = @transform_3, window_bounds = array<i64: 352, 128>}]} {
    %c0 = arith.constant 0 : index
    %c0_0 = arith.constant 0 : index
    %0 = vector.load %arg1[%c0, %c0_0] : memref<352x512xbf16, #tpu.memory_space<vmem>>, vector<352x512xbf16>
    %c0_1 = arith.constant 0 : index
    %c0_2 = arith.constant 0 : index
    %1 = vector.load %arg2[%c0_1, %c0_2] : memref<512x128xbf16, #tpu.memory_space<vmem>>, vector<512x128xbf16>
    %cst = arith.constant dense<0.000000e+00> : vector<352x128xf32>
    %2 = tpu.matmul %0, %1, %cst {dimension_numbers = #tpu.dot_dimension_numbers<[1], [0], [0], [1], [0, 0, 1, 1], [], []>} : vector<352x512xbf16>, vector<512x128xbf16>, vector<352x128xf32> -> vector<352x128xf32>
    %c0_3 = arith.constant 0 : index
    %c0_4 = arith.constant 0 : index
    %3 = vector.load %arg3[%c0_3, %c0_4] : memref<1x128xf32, #tpu.memory_space<vmem>>, vector<1x128xf32>
    %4 = vector.broadcast %3 : vector<1x128xf32> to vector<352x128xf32>
    %5 = arith.addf %2, %4 : vector<352x128xf32>
    %cst_5 = arith.constant 0.000000e+00 : f32
    %6 = vector.broadcast %cst_5 : f32 to vector<352x128xf32>
    %7 = arith.maximumf %5, %6 : vector<352x128xf32>
    %8 = arith.truncf %7 : vector<352x128xf32> to vector<352x128xbf16>
    %c0_6 = arith.constant 0 : index
    %c0_7 = arith.constant 0 : index
    %9 = vector.load %arg4[%c0_6, %c0_7] : memref<352x128xbf16, #tpu.memory_space<vmem>>, vector<352x128xbf16>
    tpu.vector_store %arg4[%c0_6, %c0_7], %8 {strides = array<i32>} : memref<352x128xbf16, #tpu.memory_space<vmem>>, vector<352x128xbf16>,
    return
  }
  func.func @transform_0(%arg0: i32) -> (i32, i32) {
    %c0_i32 = arith.constant 0 : i32
    %c0_i32_0 = arith.constant 0 : i32
    return %arg0, %c0_i32 : i32, i32
  }
  func.func @transform_1(%arg0: i32) -> (i32, i32) {
    %c0_i32 = arith.constant 0 : i32
    %c0_i32_0 = arith.constant 0 : i32
    %c0_i32_1 = arith.constant 0 : i32
    return %c0_i32, %c0_i32_0 : i32, i32
  }
  func.func @transform_2(%arg0: i32) -> (i32, i32) {
    %c0_i32 = arith.constant 0 : i32
    %c0_i32_0 = arith.constant 0 : i32
    %c0_i32_1 = arith.constant 0 : i32
    return %c0_i32, %c0_i32_0 : i32, i32
  }
  func.func @transform_3(%arg0: i32) -> (i32, i32) {
    %c0_i32 = arith.constant 0 : i32
    %c0_i32_0 = arith.constant 0 : i32
    return %arg0, %c0_i32 : i32, i32
  }
}

module attributes {stable_mosaic.version = 11 : i64} {
  func.func @_conv_gemm_kernel(%arg0: i32, %arg1: memref<64x896xbf16, #tpu.memory_space<vmem>>, %arg2: memref<896x128xbf16, #tpu.memory_space<vmem>>, %arg3: memref<1x128xf32, #tpu.memory_space<vmem>>, %arg4: memref<64x128xbf16, #tpu.memory_space<vmem>>) attributes {dimension_semantics = [#tpu.dimension_semantics<parallel>], iteration_bounds = array<i64: 1>, scalar_prefetch = 0 : i64, scratch_operands = 0 : i64, tpu.core_type = #tpu.core_type<tc>, window_params = [{transform_indices = @transform_0, window_bounds = array<i64: 64, 896>}, {pipeline_mode = #tpu.pipeline_mode<synchronous>, transform_indices = @transform_1, window_bounds = array<i64: 896, 128>}, {pipeline_mode = #tpu.pipeline_mode<synchronous>, transform_indices = @transform_2, window_bounds = array<i64: 1, 128>}, {transform_indices = @transform_3, window_bounds = array<i64: 64, 128>}]} {
    %c0 = arith.constant 0 : index
    %c0_0 = arith.constant 0 : index
    %0 = vector.load %arg1[%c0, %c0_0] : memref<64x896xbf16, #tpu.memory_space<vmem>>, vector<64x896xbf16>
    %c0_1 = arith.constant 0 : index
    %c0_2 = arith.constant 0 : index
    %1 = vector.load %arg2[%c0_1, %c0_2] : memref<896x128xbf16, #tpu.memory_space<vmem>>, vector<896x128xbf16>
    %cst = arith.constant dense<0.000000e+00> : vector<64x128xf32>
    %2 = tpu.matmul %0, %1, %cst {dimension_numbers = #tpu.dot_dimension_numbers<[1], [0], [0], [1], [0, 0, 1, 1], [], []>} : vector<64x896xbf16>, vector<896x128xbf16>, vector<64x128xf32> -> vector<64x128xf32>
    %c0_3 = arith.constant 0 : index
    %c0_4 = arith.constant 0 : index
    %3 = vector.load %arg3[%c0_3, %c0_4] : memref<1x128xf32, #tpu.memory_space<vmem>>, vector<1x128xf32>
    %4 = vector.broadcast %3 : vector<1x128xf32> to vector<64x128xf32>
    %5 = arith.addf %2, %4 : vector<64x128xf32>
    %cst_5 = arith.constant 0.000000e+00 : f32
    %6 = vector.broadcast %cst_5 : f32 to vector<64x128xf32>
    %7 = arith.maximumf %5, %6 : vector<64x128xf32>
    %8 = arith.truncf %7 : vector<64x128xf32> to vector<64x128xbf16>
    %c0_6 = arith.constant 0 : index
    %c0_7 = arith.constant 0 : index
    %9 = vector.load %arg4[%c0_6, %c0_7] : memref<64x128xbf16, #tpu.memory_space<vmem>>, vector<64x128xbf16>
    tpu.vector_store %arg4[%c0_6, %c0_7], %8 {strides = array<i32>} : memref<64x128xbf16, #tpu.memory_space<vmem>>, vector<64x128xbf16>,
    return
  }
  func.func @transform_0(%arg0: i32) -> (i32, i32) {
    %c0_i32 = arith.constant 0 : i32
    %c0_i32_0 = arith.constant 0 : i32
    return %arg0, %c0_i32 : i32, i32
  }
  func.func @transform_1(%arg0: i32) -> (i32, i32) {
    %c0_i32 = arith.constant 0 : i32
    %c0_i32_0 = arith.constant 0 : i32
    %c0_i32_1 = arith.constant 0 : i32
    return %c0_i32, %c0_i32_0 : i32, i32
  }
  func.func @transform_2(%arg0: i32) -> (i32, i32) {
    %c0_i32 = arith.constant 0 : i32
    %c0_i32_0 = arith.constant 0 : i32
    %c0_i32_1 = arith.constant 0 : i32
    return %c0_i32, %c0_i32_0 : i32, i32
  }
  func.func @transform_3(%arg0: i32) -> (i32, i32) {
    %c0_i32 = arith.constant 0 : i32
    %c0_i32_0 = arith.constant 0 : i32
    return %arg0, %c0_i32 : i32, i32
  }
}

module attributes {stable_mosaic.version = 11 : i64} {
  func.func @_fused_mlp_kernel(%arg0: i32, %arg1: memref<16x896xbf16, #tpu.memory_space<vmem>>, %arg2: memref<896x128xbf16, #tpu.memory_space<vmem>>, %arg3: memref<1x128xf32, #tpu.memory_space<vmem>>, %arg4: memref<128x128xbf16, #tpu.memory_space<vmem>>, %arg5: memref<1x128xf32, #tpu.memory_space<vmem>>, %arg6: memref<128x128xbf16, #tpu.memory_space<vmem>>, %arg7: memref<1x128xf32, #tpu.memory_space<vmem>>, %arg8: memref<128x128xbf16, #tpu.memory_space<vmem>>, %arg9: memref<1x128xf32, #tpu.memory_space<vmem>>, %arg10: memref<16x128xf32, #tpu.memory_space<vmem>>) attributes {dimension_semantics = [#tpu.dimension_semantics<arbitrary>], iteration_bounds = array<i64: 1>, scalar_prefetch = 0 : i64, scratch_operands = 0 : i64, tpu.core_type = #tpu.core_type<tc>, window_params = [{pipeline_mode = #tpu.pipeline_mode<synchronous>, transform_indices = @transform_0, window_bounds = array<i64: 16, 896>}, {pipeline_mode = #tpu.pipeline_mode<synchronous>, transform_indices = @transform_1, window_bounds = array<i64: 896, 128>}, {pipeline_mode = #tpu.pipeline_mode<synchronous>, transform_indices = @transform_2, window_bounds = array<i64: 1, 128>}, {pipeline_mode = #tpu.pipeline_mode<synchronous>, transform_indices = @transform_3, window_bounds = array<i64: 128, 128>}, {pipeline_mode = #tpu.pipeline_mode<synchronous>, transform_indices = @transform_4, window_bounds = array<i64: 1, 128>}, {pipeline_mode = #tpu.pipeline_mode<synchronous>, transform_indices = @transform_5, window_bounds = array<i64: 128, 128>}, {pipeline_mode = #tpu.pipeline_mode<synchronous>, transform_indices = @transform_6, window_bounds = array<i64: 1, 128>}, {pipeline_mode = #tpu.pipeline_mode<synchronous>, transform_indices = @transform_7, window_bounds = array<i64: 128, 128>}, {pipeline_mode = #tpu.pipeline_mode<synchronous>, transform_indices = @transform_8, window_bounds = array<i64: 1, 128>}, {pipeline_mode = #tpu.pipeline_mode<synchronous>, transform_indices = @transform_9, window_bounds = array<i64: 16, 128>}]} {
    %c0 = arith.constant 0 : index
    %c0_0 = arith.constant 0 : index
    %0 = vector.load %arg1[%c0, %c0_0] : memref<16x896xbf16, #tpu.memory_space<vmem>>, vector<16x896xbf16>
    %c0_1 = arith.constant 0 : index
    %c0_2 = arith.constant 0 : index
    %1 = vector.load %arg2[%c0_1, %c0_2] : memref<896x128xbf16, #tpu.memory_space<vmem>>, vector<896x128xbf16>
    %cst = arith.constant dense<0.000000e+00> : vector<16x128xf32>
    %2 = tpu.matmul %0, %1, %cst {dimension_numbers = #tpu.dot_dimension_numbers<[1], [0], [0], [1], [0, 0, 1, 1], [], []>} : vector<16x896xbf16>, vector<896x128xbf16>, vector<16x128xf32> -> vector<16x128xf32>
    %c0_3 = arith.constant 0 : index
    %c0_4 = arith.constant 0 : index
    %3 = vector.load %arg3[%c0_3, %c0_4] : memref<1x128xf32, #tpu.memory_space<vmem>>, vector<1x128xf32>
    %4 = vector.broadcast %3 : vector<1x128xf32> to vector<16x128xf32>
    %5 = arith.addf %2, %4 : vector<16x128xf32>
    %6 = arith.truncf %5 : vector<16x128xf32> to vector<16x128xbf16>
    %c0_5 = arith.constant 0 : index
    %c0_6 = arith.constant 0 : index
    %7 = vector.load %arg4[%c0_5, %c0_6] : memref<128x128xbf16, #tpu.memory_space<vmem>>, vector<128x128xbf16>
    %cst_7 = arith.constant dense<0.000000e+00> : vector<16x128xf32>
    %8 = tpu.matmul %6, %7, %cst_7 {dimension_numbers = #tpu.dot_dimension_numbers<[1], [0], [0], [1], [0, 0, 1, 1], [], []>} : vector<16x128xbf16>, vector<128x128xbf16>, vector<16x128xf32> -> vector<16x128xf32>
    %c0_8 = arith.constant 0 : index
    %c0_9 = arith.constant 0 : index
    %9 = vector.load %arg5[%c0_8, %c0_9] : memref<1x128xf32, #tpu.memory_space<vmem>>, vector<1x128xf32>
    %10 = vector.broadcast %9 : vector<1x128xf32> to vector<16x128xf32>
    %11 = arith.addf %8, %10 : vector<16x128xf32>
    %12 = math.tanh %11 : vector<16x128xf32>
    %13 = arith.truncf %12 : vector<16x128xf32> to vector<16x128xbf16>
    %c0_10 = arith.constant 0 : index
    %c0_11 = arith.constant 0 : index
    %14 = vector.load %arg6[%c0_10, %c0_11] : memref<128x128xbf16, #tpu.memory_space<vmem>>, vector<128x128xbf16>
    %cst_12 = arith.constant dense<0.000000e+00> : vector<16x128xf32>
    %15 = tpu.matmul %13, %14, %cst_12 {dimension_numbers = #tpu.dot_dimension_numbers<[1], [0], [0], [1], [0, 0, 1, 1], [], []>} : vector<16x128xbf16>, vector<128x128xbf16>, vector<16x128xf32> -> vector<16x128xf32>
    %c0_13 = arith.constant 0 : index
    %c0_14 = arith.constant 0 : index
    %16 = vector.load %arg7[%c0_13, %c0_14] : memref<1x128xf32, #tpu.memory_space<vmem>>, vector<1x128xf32>
    %17 = vector.broadcast %16 : vector<1x128xf32> to vector<16x128xf32>
    %18 = arith.addf %15, %17 : vector<16x128xf32>
    %19 = math.tanh %18 : vector<16x128xf32>
    %20 = arith.truncf %19 : vector<16x128xf32> to vector<16x128xbf16>
    %c0_15 = arith.constant 0 : index
    %c0_16 = arith.constant 0 : index
    %21 = vector.load %arg8[%c0_15, %c0_16] : memref<128x128xbf16, #tpu.memory_space<vmem>>, vector<128x128xbf16>
    %cst_17 = arith.constant dense<0.000000e+00> : vector<16x128xf32>
    %22 = tpu.matmul %20, %21, %cst_17 {dimension_numbers = #tpu.dot_dimension_numbers<[1], [0], [0], [1], [0, 0, 1, 1], [], []>} : vector<16x128xbf16>, vector<128x128xbf16>, vector<16x128xf32> -> vector<16x128xf32>
    %c0_18 = arith.constant 0 : index
    %c0_19 = arith.constant 0 : index
    %23 = vector.load %arg9[%c0_18, %c0_19] : memref<1x128xf32, #tpu.memory_space<vmem>>, vector<1x128xf32>
    %24 = vector.broadcast %23 : vector<1x128xf32> to vector<16x128xf32>
    %25 = arith.addf %22, %24 : vector<16x128xf32>
    %c0_20 = arith.constant 0 : index
    %c0_21 = arith.constant 0 : index
    %26 = vector.load %arg10[%c0_20, %c0_21] : memref<16x128xf32, #tpu.memory_space<vmem>>, vector<16x128xf32>
    tpu.vector_store %arg10[%c0_20, %c0_21], %25 {strides = array<i32>} : memref<16x128xf32, #tpu.memory_space<vmem>>, vector<16x128xf32>,
    return
  }
  func.func @transform_0(%arg0: i32) -> (i32, i32) {
    %c0_i32 = arith.constant 0 : i32
    %c0_i32_0 = arith.constant 0 : i32
    %c0_i32_1 = arith.constant 0 : i32
    return %c0_i32, %c0_i32_0 : i32, i32
  }
  func.func @transform_1(%arg0: i32) -> (i32, i32) {
    %c0_i32 = arith.constant 0 : i32
    %c0_i32_0 = arith.constant 0 : i32
    %c0_i32_1 = arith.constant 0 : i32
    return %c0_i32, %c0_i32_0 : i32, i32
  }
  func.func @transform_2(%arg0: i32) -> (i32, i32) {
    %c0_i32 = arith.constant 0 : i32
    %c0_i32_0 = arith.constant 0 : i32
    %c0_i32_1 = arith.constant 0 : i32
    return %c0_i32, %c0_i32_0 : i32, i32
  }
  func.func @transform_3(%arg0: i32) -> (i32, i32) {
    %c0_i32 = arith.constant 0 : i32
    %c0_i32_0 = arith.constant 0 : i32
    %c0_i32_1 = arith.constant 0 : i32
    return %c0_i32, %c0_i32_0 : i32, i32
  }
  func.func @transform_4(%arg0: i32) -> (i32, i32) {
    %c0_i32 = arith.constant 0 : i32
    %c0_i32_0 = arith.constant 0 : i32
    %c0_i32_1 = arith.constant 0 : i32
    return %c0_i32, %c0_i32_0 : i32, i32
  }
  func.func @transform_5(%arg0: i32) -> (i32, i32) {
    %c0_i32 = arith.constant 0 : i32
    %c0_i32_0 = arith.constant 0 : i32
    %c0_i32_1 = arith.constant 0 : i32
    return %c0_i32, %c0_i32_0 : i32, i32
  }
  func.func @transform_6(%arg0: i32) -> (i32, i32) {
    %c0_i32 = arith.constant 0 : i32
    %c0_i32_0 = arith.constant 0 : i32
    %c0_i32_1 = arith.constant 0 : i32
    return %c0_i32, %c0_i32_0 : i32, i32
  }
  func.func @transform_7(%arg0: i32) -> (i32, i32) {
    %c0_i32 = arith.constant 0 : i32
    %c0_i32_0 = arith.constant 0 : i32
    %c0_i32_1 = arith.constant 0 : i32
    return %c0_i32, %c0_i32_0 : i32, i32
  }
  func.func @transform_8(%arg0: i32) -> (i32, i32) {
    %c0_i32 = arith.constant 0 : i32
    %c0_i32_0 = arith.constant 0 : i32
    %c0_i32_1 = arith.constant 0 : i32
    return %c0_i32, %c0_i32_0 : i32, i32
  }
  func.func @transform_9(%arg0: i32) -> (i32, i32) {
    %c0_i32 = arith.constant 0 : i32
    %c0_i32_0 = arith.constant 0 : i32
    %c0_i32_1 = arith.constant 0 : i32
    return %c0_i32, %c0_i32_0 : i32, i32
  }
}

</mosaic_0001>

<llo_original>
// kernel: mlp_critic_forward.4
$region0: #{mlp_critic_forward.4}
  #allocation0 [shape = 'u32[]', space=smem, size = 0x4, offset = 0x4, fixed_abs, tag = 'smem constant byte address 0x4 - core index']
  #allocation1 [shape = 'u32[72,128]{1,0:T(1,128)}', space=vmem, size = 0x9000, scoped, tag = 'internal scratch']
  %s0 = inlined_call_operand.vmem [shape: bf16[1856,128], index: 0, kind: input, shape index: {}]
  %s1 = inlined_call_operand.vmem [shape: bf16[128,128], index: 1, kind: input, shape index: {}]
  %s2 = inlined_call_operand.vmem [shape: f32[1,128], index: 2, kind: input, shape index: {}]
  %s3 = inlined_call_operand.vmem [shape: bf16[1856,128], index: 3, kind: output, shape index: {}]
  %s4 = sld [smem:[#allocation0]]
  $region45: #{mlp_critic_forward.4} parent=0
    _
  %s6 = ssub.s32 1, %s4
  %s7 = scalar_select 0, %s6, %s4
  loop: start=0, step=1, limit=6
  $region2: #{mlp_critic_forward.4} parent=0 // loop_pre_header
    _
  $region3: #{mlp_critic_forward.4} parent=0 // loop_header
    %s9 = sphi 0, %s13
    %p10 = scmp.ge.s32.totalorder %s9, 6
    %s19 = sphi 0, %s21
    %s22 = sphi 0, %s19
    %s23 = sphi 0, %s22
    %s39 = sphi 0, %s23
    %s43 = sphi 0, %s43
    %s45 = sphi 0, %s43
    %s46 = sphi 0, %s45
    %s60 = sphi 0, %s46
    %s64 = sphi 0, %s64
    %s66 = sphi 0, %s64
    %s67 = sphi 0, %s66
    %s81 = sphi 0, %s67
    %s87 = sphi 0, %s89
    %s90 = sphi 0, %s87
    %s91 = sphi 0, %s90
    %s107 = sphi 0, %s91
  $region4: #{mlp_critic_forward.4} parent=0 // loop_header_branch
    %12 = sbr.rel (%p10) target = $region8
  $region5: #{mlp_critic_forward.4} parent=0 // loop_body
    %s14 = ssub.s32 %s9, 1
    %s15 = ssub.s32 %s9, 2
    %s16 = sadd.s32 %s9, 1
    %s17 = ssub.s32 %s9, %s16
    %p18 = scmp.eq.s32.totalorder %s17, 0
    %s20 = sadd.s32 %s19, 1
    %s21 = scalar_select %p18, %s19, %s20
    %p24 = pneg %p18
    %p25 = scmp.eq.s32.totalorder %s9, 3
    %p26 = por %p24, %p25
    %p27 = scmp.ne.s32.totalorder %s19, %s22
    %p28 = scmp.eq.s32.totalorder %s9, 0
    %p29 = por %p27, %p28
    %p30 = scmp.ne.s32.totalorder %s19, %s22
    %p31 = scmp.eq.s32.totalorder %s14, 3
    %p32 = por %p30, %p31
    %p33 = scmp.ne.s32.totalorder %s22, %s23
    %p34 = scmp.eq.s32.totalorder %s14, 0
    %p35 = por %p33, %p34
    %p36 = scmp.ne.s32.totalorder %s22, %s23
    %p37 = scmp.eq.s32.totalorder %s15, 3
    %p38 = por %p36, %p37
    %p40 = scmp.ne.s32.totalorder %s23, %s39
    %p41 = scmp.eq.s32.totalorder %s15, 0
    %p42 = por %p40, %p41
    %s44 = sadd.s32 %s43, 1
    %p47 = scmp.eq.s32.totalorder %s9, 3
    %p48 = scmp.ne.s32.totalorder %s43, %s45
    %p49 = scmp.eq.s32.totalorder %s9, 0
    %p50 = por %p48, %p49
    %p51 = scmp.ne.s32.totalorder %s43, %s45
    %p52 = scmp.eq.s32.totalorder %s14, 3
    %p53 = por %p51, %p52
    %p54 = scmp.ne.s32.totalorder %s45, %s46
    %p55 = scmp.eq.s32.totalorder %s14, 0
    %p56 = por %p54, %p55
    %p57 = scmp.ne.s32.totalorder %s45, %s46
    %p58 = scmp.eq.s32.totalorder %s15, 3
    %p59 = por %p57, %p58
    %p61 = scmp.ne.s32.totalorder %s46, %s60
    %p62 = scmp.eq.s32.totalorder %s15, 0
    %p63 = por %p61, %p62
    %s65 = sadd.s32 %s64, 1
    %p68 = scmp.eq.s32.totalorder %s9, 3
    %p69 = scmp.ne.s32.totalorder %s64, %s66
    %p70 = scmp.eq.s32.totalorder %s9, 0
    %p71 = por %p69, %p70
    %p72 = scmp.ne.s32.totalorder %s64, %s66
    %p73 = scmp.eq.s32.totalorder %s14, 3
    %p74 = por %p72, %p73
    %p75 = scmp.ne.s32.totalorder %s66, %s67
    %p76 = scmp.eq.s32.totalorder %s14, 0
    %p77 = por %p75, %p76
    %p78 = scmp.ne.s32.totalorder %s66, %s67
    %p79 = scmp.eq.s32.totalorder %s15, 3
    %p80 = por %p78, %p79
    %p82 = scmp.ne.s32.totalorder %s67, %s81
    %p83 = scmp.eq.s32.totalorder %s15, 0
    %p84 = por %p82, %p83
    %s85 = ssub.s32 %s9, %s16
    %p86 = scmp.eq.s32.totalorder %s85, 0
    %s88 = sadd.s32 %s87, 1
    %s89 = scalar_select %p86, %s87, %s88
    %p92 = pneg %p86
    %p93 = scmp.eq.s32.totalorder %s9, 3
    %p94 = por %p92, %p93
    %p95 = scmp.ne.s32.totalorder %s87, %s90
    %p96 = scmp.eq.s32.totalorder %s9, 0
    %p97 = por %p95, %p96
    %p98 = scmp.ne.s32.totalorder %s87, %s90
    %p99 = scmp.eq.s32.totalorder %s14, 3
    %p100 = por %p98, %p99
    %p101 = scmp.ne.s32.totalorder %s90, %s91
    %p102 = scmp.eq.s32.totalorder %s14, 0
    %p103 = por %p101, %p102
    %p104 = scmp.ne.s32.totalorder %s90, %s91
    %p105 = scmp.eq.s32.totalorder %s15, 3
    %p106 = por %p104, %p105
    %p108 = scmp.ne.s32.totalorder %s91, %s107
    %p109 = scmp.eq.s32.totalorder %s15, 0
    %p110 = por %p108, %p109
    %p111 = scmp.le.s32.totalorder 1, %s9
    %p112 = scmp.lt.s32.totalorder %s9, 5
    %p113 = pnand %p111, %p112
    %p114 = pneg %p113
    // Predicated region
    $region9: #{mlp_critic_forward.4} parent=5 // pred_check
      _
    $region10: #{mlp_critic_forward.4} parent=5 // pred_check_branch
      %116 = sbr.rel (%p113) target = $region12
    $region11: #{mlp_critic_forward.4} parent=5 // pred_region
      %s117 = ssub.s32 %s9, 1
      // Predicated region
      $region13: #{mlp_critic_forward.4} parent=11 // pred_check
        %p118 = pneg %p56
      $region14: #{mlp_critic_forward.4} parent=11 // pred_check_branch
        %120 = sbr.rel (%p118) target = $region16
      $region15: #{mlp_critic_forward.4} parent=11 // pred_region
        _
      $region16: #{mlp_critic_forward.4} parent=11 // pred_fallthru
        _
      // Predicated region
      $region17: #{mlp_critic_forward.4} parent=11 // pred_check
        %p121 = pneg %p77
      $region18: #{mlp_critic_forward.4} parent=11 // pred_check_branch
        %123 = sbr.rel (%p121) target = $region20
      $region19: #{mlp_critic_forward.4} parent=11 // pred_region
        _
      $region20: #{mlp_critic_forward.4} parent=11 // pred_fallthru
        _
    $region12: #{mlp_critic_forward.4} parent=5 // pred_fallthru
      _
    %p124 = scmp.lt.s32.totalorder %s9, 4
    // Predicated region
    $region21: #{mlp_critic_forward.4} parent=5 // pred_check
      %p125 = pneg %p124
    $region22: #{mlp_critic_forward.4} parent=5 // pred_check_branch
      %127 = sbr.rel (%p125) target = $region24
    $region23: #{mlp_critic_forward.4} parent=5 // pred_region
      // Predicated region
      $region25: #{mlp_critic_forward.4} parent=23 // pred_check
        %p128 = pneg %p29
      $region26: #{mlp_critic_forward.4} parent=23 // pred_check_branch
        %130 = sbr.rel (%p128) target = $region28
      $region27: #{mlp_critic_forward.4} parent=23 // pred_region
        %s131 = smul.u32 58, %s9
        %p132 = scmp.lt.s32.totalorder %s131, 231
        %s133 = scalar_select %p132, %s131, 231
        %s134 = smul.addr %s133, 4
        %s135 = scalar_lea.vmem %s0, %s134
        %s136 = smul.u32 58, %s9
      $region28: #{mlp_critic_forward.4} parent=23 // pred_fallthru
        _
    $region24: #{mlp_critic_forward.4} parent=5 // pred_fallthru
      _
    %p137 = scmp.le.s32.totalorder 1, %s9
    %p138 = scmp.lt.s32.totalorder %s9, 5
    %p139 = pnand %p137, %p138
    %p140 = pneg %p139
    // Predicated region
    $region29: #{mlp_critic_forward.4} parent=5 // pred_check
      _
    $region30: #{mlp_critic_forward.4} parent=5 // pred_check_branch
      %142 = sbr.rel (%p139) target = $region32
    $region31: #{mlp_critic_forward.4} parent=5 // pred_region
      %s143 = ssub.s32 %s9, 1
      %s144 = smul.u32 58, %s14
      %p145 = scmp.lt.s32.totalorder %s144, 231
      %s146 = scalar_select %p145, %s144, 231
      %s147 = smul.addr %s146, 4
      %s148 = scalar_lea.vmem %s0, %s147
      %p149 = pneg %p35
      %p150 = pneg %p32
      %p151 = pneg %p56
      %p152 = pneg %p53
      %p153 = pneg %p77
      %p154 = pneg %p74
      %p155 = pneg %p103
      %p156 = pneg %p100
      %s157 = smul.u32 58, %s14
      %p158 = scmp.lt.s32.totalorder %s157, 231
      %s159 = scalar_select %p158, %s157, 231
      %s160 = smul.addr %s159, 4
      %s161 = scalar_lea.vmem %s3, %s160
      %s162 = smul.u32 58, %s14
      %p163 = scmp.lt.s32.totalorder %s162, 231
      %s164 = scalar_select %p163, %s162, 231
      %s165 = smul.addr %s164, 4
      %s166 = scalar_lea.vmem %s0, %s165
      %s167 = smul.u32 58, %s14
      %s168 = smul.u32 58, %s14
      %p169 = scmp.lt.s32.totalorder %s168, 231
      %s170 = scalar_select %p169, %s168, 231
      %s171 = smul.addr %s170, 4
      %s172 = scalar_lea.vmem %s3, %s171
      %s173 = smul.u32 58, %s14
      %v174 = vld [vmem:[%s166] sm:$0xf]
      %v175 = vld [vmem:[%s166 + $0x4] sm:$0xf]
      %v176 = vld [vmem:[%s166 + $0x8] sm:$0xf]
      %v177 = vld [vmem:[%s166 + $0xc] sm:$0xf]
      %v178 = vld [vmem:[%s166 + $0x10] sm:$0xf]
      %v179 = vld [vmem:[%s166 + $0x14] sm:$0xf]
      %v180 = vld [vmem:[%s166 + $0x18] sm:$0xf]
      %v181 = vld [vmem:[%s166 + $0x1c] sm:$0xf]
      %v182 = vld [vmem:[%s166 + $0x20] sm:$0xf]
      %v183 = vld [vmem:[%s166 + $0x24] sm:$0xf]
      %v184 = vld [vmem:[%s166 + $0x28] sm:$0xf]
      %v185 = vld [vmem:[%s166 + $0x2c] sm:$0xf]
      %v186 = vld [vmem:[%s166 + $0x30] sm:$0xf]
      %v187 = vld [vmem:[%s166 + $0x34] sm:$0xf]
      %v188 = vld [vmem:[%s166 + $0x38] sm:$0xf]
      %v189 = vld [vmem:[%s166 + $0x3c] sm:$0xf]
      %v190 = vld [vmem:[%s166 + $0x40] sm:$0xf]
      %v191 = vld [vmem:[%s166 + $0x44] sm:$0xf]
      %v192 = vld [vmem:[%s166 + $0x48] sm:$0xf]
      %v193 = vld [vmem:[%s166 + $0x4c] sm:$0xf]
      %v194 = vld [vmem:[%s166 + $0x50] sm:$0xf]
      %v195 = vld [vmem:[%s166 + $0x54] sm:$0xf]
      %v196 = vld [vmem:[%s166 + $0x58] sm:$0xf]
      %v197 = vld [vmem:[%s166 + $0x5c] sm:$0xf]
      %v198 = vld [vmem:[%s166 + $0x60] sm:$0xf]
      %v199 = vld [vmem:[%s166 + $0x64] sm:$0xf]
      %v200 = vld [vmem:[%s166 + $0x68] sm:$0xf]
      %v201 = vld [vmem:[%s166 + $0x6c] sm:$0xf]
      %v202 = vld [vmem:[%s166 + $0x70] sm:$0xf]
      %v203 = vld [vmem:[%s166 + $0x74] sm:$0xf]
      %v204 = vld [vmem:[%s166 + $0x78] sm:$0xf]
      %v205 = vld [vmem:[%s166 + $0x7c] sm:$0xf]
      %v206 = vld [vmem:[%s166 + $0x80] sm:$0xf]
      %v207 = vld [vmem:[%s166 + $0x84] sm:$0xf]
      %v208 = vld [vmem:[%s166 + $0x88] sm:$0xf]
      %v209 = vld [vmem:[%s166 + $0x8c] sm:$0xf]
      %v210 = vld [vmem:[%s166 + $0x90] sm:$0xf]
      %v211 = vld [vmem:[%s166 + $0x94] sm:$0xf]
      %v212 = vld [vmem:[%s166 + $0x98] sm:$0xf]
      %v213 = vld [vmem:[%s166 + $0x9c] sm:$0xf]
      %v214 = vld [vmem:[%s166 + $0xa0] sm:$0xf]
      %v215 = vld [vmem:[%s166 + $0xa4] sm:$0xf]
      %v216 = vld [vmem:[%s166 + $0xa8] sm:$0xf]
      %v217 = vld [vmem:[%s166 + $0xac] sm:$0xf]
      %v218 = vld [vmem:[%s166 + $0xb0] sm:$0xf]
      %v219 = vld [vmem:[%s166 + $0xb4] sm:$0xf]
      %v220 = vld [vmem:[%s166 + $0xb8] sm:$0xf]
      %v221 = vld [vmem:[%s166 + $0xbc] sm:$0xf]
      %v222 = vld [vmem:[%s166 + $0xc0] sm:$0xf]
      %v223 = vld [vmem:[%s166 + $0xc4] sm:$0xf]
      %v224 = vld [vmem:[%s166 + $0xc8] sm:$0xf]
      %v225 = vld [vmem:[%s166 + $0xcc] sm:$0xf]
      %v226 = vld [vmem:[%s166 + $0xd0] sm:$0xf]
      %v227 = vld [vmem:[%s166 + $0xd4] sm:$0xf]
      %v228 = vld [vmem:[%s166 + $0xd8] sm:$0xf]
      %v229 = vld [vmem:[%s166 + $0xdc] sm:$0xf]
      %v230 = vld [vmem:[%s166 + $0xe0] sm:$0xf]
      %v231 = vld [vmem:[%s166 + $0xe4] sm:$0xf]
      %v232 = vld [vmem:[%s1] sm:$0xf]
      %v233 = vld [vmem:[%s1 + $0x4] sm:$0xf]
      %v234 = vld [vmem:[%s1 + $0x8] sm:$0xf]
      %v235 = vld [vmem:[%s1 + $0xc] sm:$0xf]
      %v236 = vld [vmem:[%s1 + $0x10] sm:$0xf]
      %v237 = vld [vmem:[%s1 + $0x14] sm:$0xf]
      %v238 = vld [vmem:[%s1 + $0x18] sm:$0xf]
      %v239 = vld [vmem:[%s1 + $0x1c] sm:$0xf]
      %v240 = vld [vmem:[%s1 + $0x20] sm:$0xf]
      %v241 = vld [vmem:[%s1 + $0x24] sm:$0xf]
      %v242 = vld [vmem:[%s1 + $0x28] sm:$0xf]
      %v243 = vld [vmem:[%s1 + $0x2c] sm:$0xf]
      %v244 = vld [vmem:[%s1 + $0x30] sm:$0xf]
      %v245 = vld [vmem:[%s1 + $0x34] sm:$0xf]
      %v246 = vld [vmem:[%s1 + $0x38] sm:$0xf]
      %v247 = vld [vmem:[%s1 + $0x3c] sm:$0xf]
      %v248 = vld [vmem:[%s2] sm:$0x1]
      %v250 = vperm.slane %v248, 0
      %v310 = vunpack.c.l.b16 %v174
      %v311 = vunpack.c.l.b16 %v175
      %v312 = vunpack.c.l.b16 %v176
      %v313 = vunpack.c.l.b16 %v177
      %v314 = vunpack.c.l.b16 %v178
      %v315 = vunpack.c.l.b16 %v179
      %v316 = vunpack.c.l.b16 %v180
      %v317 = vunpack.c.l.b16 %v181
      %v318 = vunpack.c.l.b16 %v182
      %v319 = vunpack.c.l.b16 %v183
      %v320 = vunpack.c.l.b16 %v184
      %v321 = vunpack.c.l.b16 %v185
      %v322 = vunpack.c.l.b16 %v186
      %v323 = vunpack.c.l.b16 %v187
      %v324 = vunpack.c.l.b16 %v188
      %v325 = vunpack.c.l.b16 %v189
      %v326 = vunpack.c.l.b16 %v190
      %v327 = vunpack.c.l.b16 %v191
      %v328 = vunpack.c.l.b16 %v192
      %v329 = vunpack.c.l.b16 %v193
      %v330 = vunpack.c.l.b16 %v194
      %v331 = vunpack.c.l.b16 %v195
      %v332 = vunpack.c.l.b16 %v196
      %v333 = vunpack.c.l.b16 %v197
      %v334 = vunpack.c.l.b16 %v198
      %v335 = vunpack.c.l.b16 %v199
      %v336 = vunpack.c.l.b16 %v200
      %v337 = vunpack.c.l.b16 %v201
      %v338 = vunpack.c.l.b16 %v202
      %v339 = vunpack.c.l.b16 %v203
      %v340 = vunpack.c.l.b16 %v204
      %v341 = vunpack.c.l.b16 %v205
      %v342 = vunpack.c.l.b16 %v206
      %v343 = vunpack.c.l.b16 %v207
      %v344 = vunpack.c.l.b16 %v208
      %v345 = vunpack.c.l.b16 %v209
      %v346 = vunpack.c.l.b16 %v210
      %v347 = vunpack.c.l.b16 %v211
      %v348 = vunpack.c.l.b16 %v212
      %v349 = vunpack.c.l.b16 %v213
      %v350 = vunpack.c.l.b16 %v214
      %v351 = vunpack.c.l.b16 %v215
      %v352 = vunpack.c.l.b16 %v216
      %v353 = vunpack.c.l.b16 %v217
      %v354 = vunpack.c.l.b16 %v218
      %v355 = vunpack.c.l.b16 %v219
      %v356 = vunpack.c.l.b16 %v220
      %v357 = vunpack.c.l.b16 %v221
      %v358 = vunpack.c.l.b16 %v222
      %v359 = vunpack.c.l.b16 %v223
      %v360 = vunpack.c.l.b16 %v224
      %v361 = vunpack.c.l.b16 %v225
      %v362 = vunpack.c.l.b16 %v226
      %v363 = vunpack.c.l.b16 %v227
      %v364 = vunpack.c.l.b16 %v228
      %v365 = vunpack.c.l.b16 %v229
      %v366 = vunpack.c.l.b16 %v230
      %v367 = vunpack.c.l.b16 %v231
      %v368 = vpack.c.b16 %v311, %v310
      %v369 = vpack.c.b16 %v313, %v312
      %v370 = vpack.c.b16 %v315, %v314
      %v371 = vpack.c.b16 %v317, %v316
      %v372 = vpack.c.b16 %v319, %v318
      %v373 = vpack.c.b16 %v321, %v320
      %v374 = vpack.c.b16 %v323, %v322
      %v375 = vpack.c.b16 %v325, %v324
      %v376 = vpack.c.b16 %v327, %v326
      %v377 = vpack.c.b16 %v329, %v328
      %v378 = vpack.c.b16 %v331, %v330
      %v379 = vpack.c.b16 %v333, %v332
      %v380 = vpack.c.b16 %v335, %v334
      %v381 = vpack.c.b16 %v337, %v336
      %v382 = vpack.c.b16 %v339, %v338
      %v383 = vpack.c.b16 %v341, %v340
      %v384 = vpack.c.b16 %v343, %v342
      %v385 = vpack.c.b16 %v345, %v344
      %v386 = vpack.c.b16 %v347, %v346
      %v387 = vpack.c.b16 %v349, %v348
      %v388 = vpack.c.b16 %v351, %v350
      %v389 = vpack.c.b16 %v353, %v352
      %v390 = vpack.c.b16 %v355, %v354
      %v391 = vpack.c.b16 %v357, %v356
      %v392 = vpack.c.b16 %v359, %v358
      %v393 = vpack.c.b16 %v361, %v360
      %v394 = vpack.c.b16 %v363, %v362
      %v395 = vpack.c.b16 %v365, %v364
      %v396 = vpack.c.b16 %v367, %v366
      %v442 = vunpack.c.l.b16 %v232
      %v443 = vunpack.c.l.b16 %v233
      %v444 = vunpack.c.l.b16 %v234
      %v445 = vunpack.c.l.b16 %v235
      %v446 = vunpack.c.l.b16 %v236
      %v447 = vunpack.c.l.b16 %v237
      %v448 = vunpack.c.l.b16 %v238
      %v449 = vunpack.c.l.b16 %v239
      %v450 = vunpack.c.l.b16 %v240
      %v451 = vunpack.c.l.b16 %v241
      %v452 = vunpack.c.l.b16 %v242
      %v453 = vunpack.c.l.b16 %v243
      %v454 = vunpack.c.l.b16 %v244
      %v455 = vunpack.c.l.b16 %v245
      %v456 = vunpack.c.l.b16 %v246
      %v457 = vunpack.c.l.b16 %v247
      %v458 = vpack.c.b16 %v443, %v442
      %v459 = vpack.c.b16 %v445, %v444
      %v460 = vpack.c.b16 %v447, %v446
      %v461 = vpack.c.b16 %v449, %v448
      %v462 = vpack.c.b16 %v451, %v450
      %v463 = vpack.c.b16 %v453, %v452
      %v464 = vpack.c.b16 %v455, %v454
      %v465 = vpack.c.b16 %v457, %v456
      %474 = vmatpush.bf16.msra.mxu0 %v465
      %475 = vmatpush.bf16.msra.mxu0 %v464
      %476 = vmatpush.bf16.msra.mxu0 %v463
      %477 = vmatpush.bf16.msra.mxu0 %v462
      %478 = vmatpush.bf16.msra.mxu0 %v461
      %479 = vmatpush.bf16.msra.mxu0 %v460
      %480 = vmatpush.bf16.msra.mxu0 %v459
      %481 = vmatpush.bf16.msra.mxu0 %v458
      %482 = vmatmul.bf16.gmra.mxu0 %v368
      %v483 = vpop.f32.mrf.mxu0
      %v484 = vadd.f32 %v250, %v483
      %v485 = vpop.f32.mrf.mxu0
      %v486 = vadd.f32 %v250, %v485
      %487 = vmatmul.bf16.gmra.mxu0 %v369
      %v488 = vpop.f32.mrf.mxu0
      %v489 = vadd.f32 %v250, %v488
      %v490 = vpop.f32.mrf.mxu0
      %v491 = vadd.f32 %v250, %v490
      %492 = vmatmul.bf16.gmra.mxu0 %v370
      %v493 = vpop.f32.mrf.mxu0
      %v494 = vadd.f32 %v250, %v493
      %v495 = vpop.f32.mrf.mxu0
      %v496 = vadd.f32 %v250, %v495
      %497 = vmatmul.bf16.gmra.mxu0 %v371
      %v498 = vpop.f32.mrf.mxu0
      %v499 = vadd.f32 %v250, %v498
      %v500 = vpop.f32.mrf.mxu0
      %v501 = vadd.f32 %v250, %v500
      %502 = vmatmul.bf16.gmra.mxu0 %v372
      %v503 = vpop.f32.mrf.mxu0
      %v504 = vadd.f32 %v250, %v503
      %v505 = vpop.f32.mrf.mxu0
      %v506 = vadd.f32 %v250, %v505
      %507 = vmatmul.bf16.gmra.mxu0 %v373
      %v508 = vpop.f32.mrf.mxu0
      %v509 = vadd.f32 %v250, %v508
      %v510 = vpop.f32.mrf.mxu0
      %v511 = vadd.f32 %v250, %v510
      %512 = vmatmul.bf16.gmra.mxu0 %v374
      %v513 = vpop.f32.mrf.mxu0
      %v514 = vadd.f32 %v250, %v513
      %v515 = vpop.f32.mrf.mxu0
      %v516 = vadd.f32 %v250, %v515
      %517 = vmatmul.bf16.gmra.mxu0 %v375
      %v518 = vpop.f32.mrf.mxu0
      %v519 = vadd.f32 %v250, %v518
      %v520 = vpop.f32.mrf.mxu0
      %v521 = vadd.f32 %v250, %v520
      %522 = vmatmul.bf16.gmra.mxu0 %v376
      %v523 = vpop.f32.mrf.mxu0
      %v524 = vadd.f32 %v250, %v523
      %v525 = vpop.f32.mrf.mxu0
      %v526 = vadd.f32 %v250, %v525
      %527 = vmatmul.bf16.gmra.mxu0 %v377
      %v528 = vpop.f32.mrf.mxu0
      %v529 = vadd.f32 %v250, %v528
      %v530 = vpop.f32.mrf.mxu0
      %v531 = vadd.f32 %v250, %v530
      %532 = vmatmul.bf16.gmra.mxu0 %v378
      %v533 = vpop.f32.mrf.mxu0
      %v534 = vadd.f32 %v250, %v533
      %v535 = vpop.f32.mrf.mxu0
      %v536 = vadd.f32 %v250, %v535
      %537 = vmatmul.bf16.gmra.mxu0 %v379
      %v538 = vpop.f32.mrf.mxu0
      %v539 = vadd.f32 %v250, %v538
      %v540 = vpop.f32.mrf.mxu0
      %v541 = vadd.f32 %v250, %v540
      %542 = vmatmul.bf16.gmra.mxu0 %v380
      %v543 = vpop.f32.mrf.mxu0
      %v544 = vadd.f32 %v250, %v543
      %v545 = vpop.f32.mrf.mxu0
      %v546 = vadd.f32 %v250, %v545
      %547 = vmatmul.bf16.gmra.mxu0 %v381
      %v548 = vpop.f32.mrf.mxu0
      %v549 = vadd.f32 %v250, %v548
      %v550 = vpop.f32.mrf.mxu0
      %v551 = vadd.f32 %v250, %v550
      %552 = vmatmul.bf16.gmra.mxu0 %v382
      %v553 = vpop.f32.mrf.mxu0
      %v554 = vadd.f32 %v250, %v553
      %v555 = vpop.f32.mrf.mxu0
      %v556 = vadd.f32 %v250, %v555
      %557 = vmatmul.bf16.gmra.mxu0 %v383
      %v558 = vpop.f32.mrf.mxu0
      %v559 = vadd.f32 %v250, %v558
      %v560 = vpop.f32.mrf.mxu0
      %v561 = vadd.f32 %v250, %v560
      %562 = vmatmul.bf16.gmra.mxu0 %v384
      %v563 = vpop.f32.mrf.mxu0
      %v564 = vadd.f32 %v250, %v563
      %v565 = vpop.f32.mrf.mxu0
      %v566 = vadd.f32 %v250, %v565
      %567 = vmatmul.bf16.gmra.mxu0 %v385
      %v568 = vpop.f32.mrf.mxu0
      %v569 = vadd.f32 %v250, %v568
      %v570 = vpop.f32.mrf.mxu0
      %v571 = vadd.f32 %v250, %v570
      %572 = vmatmul.bf16.gmra.mxu0 %v386
      %v573 = vpop.f32.mrf.mxu0
      %v574 = vadd.f32 %v250, %v573
      %v575 = vpop.f32.mrf.mxu0
      %v576 = vadd.f32 %v250, %v575
      %577 = vmatmul.bf16.gmra.mxu0 %v387
      %v578 = vpop.f32.mrf.mxu0
      %v579 = vadd.f32 %v250, %v578
      %v580 = vpop.f32.mrf.mxu0
      %v581 = vadd.f32 %v250, %v580
      %582 = vmatmul.bf16.gmra.mxu0 %v388
      %v583 = vpop.f32.mrf.mxu0
      %v584 = vadd.f32 %v250, %v583
      %v585 = vpop.f32.mrf.mxu0
      %v586 = vadd.f32 %v250, %v585
      %587 = vmatmul.bf16.gmra.mxu0 %v389
      %v588 = vpop.f32.mrf.mxu0
      %v589 = vadd.f32 %v250, %v588
      %v590 = vpop.f32.mrf.mxu0
      %v591 = vadd.f32 %v250, %v590
      %592 = vmatmul.bf16.gmra.mxu0 %v390
      %v593 = vpop.f32.mrf.mxu0
      %v594 = vadd.f32 %v250, %v593
      %v595 = vpop.f32.mrf.mxu0
      %v596 = vadd.f32 %v250, %v595
      %597 = vmatmul.bf16.gmra.mxu0 %v391
      %v598 = vpop.f32.mrf.mxu0
      %v599 = vadd.f32 %v250, %v598
      %v600 = vpop.f32.mrf.mxu0
      %v601 = vadd.f32 %v250, %v600
      %602 = vmatmul.bf16.gmra.mxu0 %v392
      %v603 = vpop.f32.mrf.mxu0
      %v604 = vadd.f32 %v250, %v603
      %v605 = vpop.f32.mrf.mxu0
      %v606 = vadd.f32 %v250, %v605
      %607 = vmatmul.bf16.gmra.mxu0 %v393
      %v608 = vpop.f32.mrf.mxu0
      %v609 = vadd.f32 %v250, %v608
      %v610 = vpop.f32.mrf.mxu0
      %v611 = vadd.f32 %v250, %v610
      %612 = vmatmul.bf16.gmra.mxu0 %v394
      %v613 = vpop.f32.mrf.mxu0
      %v614 = vadd.f32 %v250, %v613
      %v615 = vpop.f32.mrf.mxu0
      %v616 = vadd.f32 %v250, %v615
      %617 = vmatmul.bf16.gmra.mxu0 %v395
      %v618 = vpop.f32.mrf.mxu0
      %v619 = vadd.f32 %v250, %v618
      %v620 = vpop.f32.mrf.mxu0
      %v621 = vadd.f32 %v250, %v620
      %622 = vmatmul.bf16.gmra.mxu0 %v396
      %v623 = vpop.f32.mrf.mxu0
      %v624 = vadd.f32 %v250, %v623
      %v625 = vpop.f32.mrf.mxu0
      %v626 = vadd.f32 %v250, %v625
      %627 = vdwg.mxu0
      %v628 = vmax.f32 %v484, 0.0
      %v629 = vmax.f32 %v486, 0.0
      %v630 = vmax.f32 %v489, 0.0
      %v631 = vmax.f32 %v491, 0.0
      %v632 = vmax.f32 %v494, 0.0
      %v633 = vmax.f32 %v496, 0.0
      %v634 = vmax.f32 %v499, 0.0
      %v635 = vmax.f32 %v501, 0.0
      %v636 = vmax.f32 %v504, 0.0
      %v637 = vmax.f32 %v506, 0.0
      %v638 = vmax.f32 %v509, 0.0
      %v639 = vmax.f32 %v511, 0.0
      %v640 = vmax.f32 %v514, 0.0
      %v641 = vmax.f32 %v516, 0.0
      %v642 = vmax.f32 %v519, 0.0
      %v643 = vmax.f32 %v521, 0.0
      %v644 = vmax.f32 %v524, 0.0
      %v645 = vmax.f32 %v526, 0.0
      %v646 = vmax.f32 %v529, 0.0
      %v647 = vmax.f32 %v531, 0.0
      %v648 = vmax.f32 %v534, 0.0
      %v649 = vmax.f32 %v536, 0.0
      %v650 = vmax.f32 %v539, 0.0
      %v651 = vmax.f32 %v541, 0.0
      %v652 = vmax.f32 %v544, 0.0
      %v653 = vmax.f32 %v546, 0.0
      %v654 = vmax.f32 %v549, 0.0
      %v655 = vmax.f32 %v551, 0.0
      %v656 = vmax.f32 %v554, 0.0
      %v657 = vmax.f32 %v556, 0.0
      %v658 = vmax.f32 %v559, 0.0
      %v659 = vmax.f32 %v561, 0.0
      %v660 = vmax.f32 %v564, 0.0
      %v661 = vmax.f32 %v566, 0.0
      %v662 = vmax.f32 %v569, 0.0
      %v663 = vmax.f32 %v571, 0.0
      %v664 = vmax.f32 %v574, 0.0
      %v665 = vmax.f32 %v576, 0.0
      %v666 = vmax.f32 %v579, 0.0
      %v667 = vmax.f32 %v581, 0.0
      %v668 = vmax.f32 %v584, 0.0
      %v669 = vmax.f32 %v586, 0.0
      %v670 = vmax.f32 %v589, 0.0
      %v671 = vmax.f32 %v591, 0.0
      %v672 = vmax.f32 %v594, 0.0
      %v673 = vmax.f32 %v596, 0.0
      %v674 = vmax.f32 %v599, 0.0
      %v675 = vmax.f32 %v601, 0.0
      %v676 = vmax.f32 %v604, 0.0
      %v677 = vmax.f32 %v606, 0.0
      %v678 = vmax.f32 %v609, 0.0
      %v679 = vmax.f32 %v611, 0.0
      %v680 = vmax.f32 %v614, 0.0
      %v681 = vmax.f32 %v616, 0.0
      %v682 = vmax.f32 %v619, 0.0
      %v683 = vmax.f32 %v621, 0.0
      %v684 = vmax.f32 %v624, 0.0
      %v685 = vmax.f32 %v626, 0.0
      %v686 = vpack.c.bf16 %v628, %v628
      %v687 = vpack.c.bf16 %v629, %v629
      %v688 = vpack.c.bf16 %v630, %v630
      %v689 = vpack.c.bf16 %v631, %v631
      %v690 = vpack.c.bf16 %v632, %v632
      %v691 = vpack.c.bf16 %v633, %v633
      %v692 = vpack.c.bf16 %v634, %v634
      %v693 = vpack.c.bf16 %v635, %v635
      %v694 = vpack.c.bf16 %v636, %v636
      %v695 = vpack.c.bf16 %v637, %v637
      %v696 = vpack.c.bf16 %v638, %v638
      %v697 = vpack.c.bf16 %v639, %v639
      %v698 = vpack.c.bf16 %v640, %v640
      %v699 = vpack.c.bf16 %v641, %v641
      %v700 = vpack.c.bf16 %v642, %v642
      %v701 = vpack.c.bf16 %v643, %v643
      %v702 = vpack.c.bf16 %v644, %v644
      %v703 = vpack.c.bf16 %v645, %v645
      %v704 = vpack.c.bf16 %v646, %v646
      %v705 = vpack.c.bf16 %v647, %v647
      %v706 = vpack.c.bf16 %v648, %v648
      %v707 = vpack.c.bf16 %v649, %v649
      %v708 = vpack.c.bf16 %v650, %v650
      %v709 = vpack.c.bf16 %v651, %v651
      %v710 = vpack.c.bf16 %v652, %v652
      %v711 = vpack.c.bf16 %v653, %v653
      %v712 = vpack.c.bf16 %v654, %v654
      %v713 = vpack.c.bf16 %v655, %v655
      %v714 = vpack.c.bf16 %v656, %v656
      %v715 = vpack.c.bf16 %v657, %v657
      %v716 = vpack.c.bf16 %v658, %v658
      %v717 = vpack.c.bf16 %v659, %v659
      %v718 = vpack.c.bf16 %v660, %v660
      %v719 = vpack.c.bf16 %v661, %v661
      %v720 = vpack.c.bf16 %v662, %v662
      %v721 = vpack.c.bf16 %v663, %v663
      %v722 = vpack.c.bf16 %v664, %v664
      %v723 = vpack.c.bf16 %v665, %v665
      %v724 = vpack.c.bf16 %v666, %v666
      %v725 = vpack.c.bf16 %v667, %v667
      %v726 = vpack.c.bf16 %v668, %v668
      %v727 = vpack.c.bf16 %v669, %v669
      %v728 = vpack.c.bf16 %v670, %v670
      %v729 = vpack.c.bf16 %v671, %v671
      %v730 = vpack.c.bf16 %v672, %v672
      %v731 = vpack.c.bf16 %v673, %v673
      %v732 = vpack.c.bf16 %v674, %v674
      %v733 = vpack.c.bf16 %v675, %v675
      %v734 = vpack.c.bf16 %v676, %v676
      %v735 = vpack.c.bf16 %v677, %v677
      %v736 = vpack.c.bf16 %v678, %v678
      %v737 = vpack.c.bf16 %v679, %v679
      %v738 = vpack.c.bf16 %v680, %v680
      %v739 = vpack.c.bf16 %v681, %v681
      %v740 = vpack.c.bf16 %v682, %v682
      %v741 = vpack.c.bf16 %v683, %v683
      %v742 = vpack.c.bf16 %v684, %v684
      %v743 = vpack.c.bf16 %v685, %v685
      %744 = vst [vmem:[%s172] sm:$0xf] %v686
      %745 = vst [vmem:[%s172 + $0x4] sm:$0xf] %v687
      %746 = vst [vmem:[%s172 + $0x8] sm:$0xf] %v688
      %747 = vst [vmem:[%s172 + $0xc] sm:$0xf] %v689
      %748 = vst [vmem:[%s172 + $0x10] sm:$0xf] %v690
      %749 = vst [vmem:[%s172 + $0x14] sm:$0xf] %v691
      %750 = vst [vmem:[%s172 + $0x18] sm:$0xf] %v692
      %751 = vst [vmem:[%s172 + $0x1c] sm:$0xf] %v693
      %752 = vst [vmem:[%s172 + $0x20] sm:$0xf] %v694
      %753 = vst [vmem:[%s172 + $0x24] sm:$0xf] %v695
      %754 = vst [vmem:[%s172 + $0x28] sm:$0xf] %v696
      %755 = vst [vmem:[%s172 + $0x2c] sm:$0xf] %v697
      %756 = vst [vmem:[%s172 + $0x30] sm:$0xf] %v698
      %757 = vst [vmem:[%s172 + $0x34] sm:$0xf] %v699
      %758 = vst [vmem:[%s172 + $0x38] sm:$0xf] %v700
      %759 = vst [vmem:[%s172 + $0x3c] sm:$0xf] %v701
      %760 = vst [vmem:[%s172 + $0x40] sm:$0xf] %v702
      %761 = vst [vmem:[%s172 + $0x44] sm:$0xf] %v703
      %762 = vst [vmem:[%s172 + $0x48] sm:$0xf] %v704
      %763 = vst [vmem:[%s172 + $0x4c] sm:$0xf] %v705
      %764 = vst [vmem:[%s172 + $0x50] sm:$0xf] %v706
      %765 = vst [vmem:[%s172 + $0x54] sm:$0xf] %v707
      %766 = vst [vmem:[%s172 + $0x58] sm:$0xf] %v708
      %767 = vst [vmem:[%s172 + $0x5c] sm:$0xf] %v709
      %768 = vst [vmem:[%s172 + $0x60] sm:$0xf] %v710
      %769 = vst [vmem:[%s172 + $0x64] sm:$0xf] %v711
      %770 = vst [vmem:[%s172 + $0x68] sm:$0xf] %v712
      %771 = vst [vmem:[%s172 + $0x6c] sm:$0xf] %v713
      %772 = vst [vmem:[%s172 + $0x70] sm:$0xf] %v714
      %773 = vst [vmem:[%s172 + $0x74] sm:$0xf] %v715
      %774 = vst [vmem:[%s172 + $0x78] sm:$0xf] %v716
      %775 = vst [vmem:[%s172 + $0x7c] sm:$0xf] %v717
      %776 = vst [vmem:[%s172 + $0x80] sm:$0xf] %v718
      %777 = vst [vmem:[%s172 + $0x84] sm:$0xf] %v719
      %778 = vst [vmem:[%s172 + $0x88] sm:$0xf] %v720
      %779 = vst [vmem:[%s172 + $0x8c] sm:$0xf] %v721
      %780 = vst [vmem:[%s172 + $0x90] sm:$0xf] %v722
      %781 = vst [vmem:[%s172 + $0x94] sm:$0xf] %v723
      %782 = vst [vmem:[%s172 + $0x98] sm:$0xf] %v724
      %783 = vst [vmem:[%s172 + $0x9c] sm:$0xf] %v725
      %784 = vst [vmem:[%s172 + $0xa0] sm:$0xf] %v726
      %785 = vst [vmem:[%s172 + $0xa4] sm:$0xf] %v727
      %786 = vst [vmem:[%s172 + $0xa8] sm:$0xf] %v728
      %787 = vst [vmem:[%s172 + $0xac] sm:$0xf] %v729
      %788 = vst [vmem:[%s172 + $0xb0] sm:$0xf] %v730
      %789 = vst [vmem:[%s172 + $0xb4] sm:$0xf] %v731
      %790 = vst [vmem:[%s172 + $0xb8] sm:$0xf] %v732
      %791 = vst [vmem:[%s172 + $0xbc] sm:$0xf] %v733
      %792 = vst [vmem:[%s172 + $0xc0] sm:$0xf] %v734
      %793 = vst [vmem:[%s172 + $0xc4] sm:$0xf] %v735
      %794 = vst [vmem:[%s172 + $0xc8] sm:$0xf] %v736
      %795 = vst [vmem:[%s172 + $0xcc] sm:$0xf] %v737
      %796 = vst [vmem:[%s172 + $0xd0] sm:$0xf] %v738
      %797 = vst [vmem:[%s172 + $0xd4] sm:$0xf] %v739
      %798 = vst [vmem:[%s172 + $0xd8] sm:$0xf] %v740
      %799 = vst [vmem:[%s172 + $0xdc] sm:$0xf] %v741
      %800 = vst [vmem:[%s172 + $0xe0] sm:$0xf] %v742
      %801 = vst [vmem:[%s172 + $0xe4] sm:$0xf] %v743
      %s802 = smul.u32 58, %s14
      %p803 = scmp.lt.s32.totalorder %s802, 231
      %s804 = scalar_select %p803, %s802, 231
      %s805 = smul.addr %s804, 4
      %s806 = scalar_lea.vmem %s3, %s805
      // Predicated region
      $region33: #{mlp_critic_forward.4} parent=31 // pred_check
        %p807 = pneg %p100
      $region34: #{mlp_critic_forward.4} parent=31 // pred_check_branch
        %809 = sbr.rel (%p807) target = $region36
      $region35: #{mlp_critic_forward.4} parent=31 // pred_region
        %s810 = smul.u32 58, %s14
      $region36: #{mlp_critic_forward.4} parent=31 // pred_fallthru
        _
    $region32: #{mlp_critic_forward.4} parent=5 // pred_fallthru
      _
    %p811 = scmp.le.s32.totalorder 2, %s9
    // Predicated region
    $region37: #{mlp_critic_forward.4} parent=5 // pred_check
      %p812 = pneg %p811
    $region38: #{mlp_critic_forward.4} parent=5 // pred_check_branch
      %814 = sbr.rel (%p812) target = $region40
    $region39: #{mlp_critic_forward.4} parent=5 // pred_region
      %s815 = ssub.s32 %s9, 2
      // Predicated region
      $region41: #{mlp_critic_forward.4} parent=39 // pred_check
        %p816 = pneg %p106
      $region42: #{mlp_critic_forward.4} parent=39 // pred_check_branch
        %818 = sbr.rel (%p816) target = $region44
      $region43: #{mlp_critic_forward.4} parent=39 // pred_region
        %s819 = smul.u32 58, %s15
        %p820 = scmp.lt.s32.totalorder %s819, 231
        %s821 = scalar_select %p820, %s819, 231
        %s822 = smul.addr %s821, 4
        %s823 = scalar_lea.vmem %s3, %s822
      $region44: #{mlp_critic_forward.4} parent=39 // pred_fallthru
        _
    $region40: #{mlp_critic_forward.4} parent=5 // pred_fallthru
      _
  $region6: #{mlp_critic_forward.4} parent=0 // loop_footer
    %s13 = sadd.s32 1, %s9
  $region7: #{mlp_critic_forward.4} parent=0 // loop_footer_branch
    %8 = sbr.rel target = $region3
  $region8: #{mlp_critic_forward.4} parent=0 // loop_exit
    _

// kernel: mlp_critic_forward.5
$region0: #{mlp_critic_forward.5}
  #allocation0 [shape = 'u32[]', space=smem, size = 0x4, offset = 0x4, fixed_abs, tag = 'smem constant byte address 0x4 - core index']
  #allocation1 [shape = 'u32[72,128]{1,0:T(1,128)}', space=vmem, size = 0x9000, scoped, tag = 'internal scratch']
  %s0 = inlined_call_operand.vmem [shape: bf16[352,512], index: 0, kind: input, shape index: {}]
  %s1 = inlined_call_operand.vmem [shape: bf16[512,128], index: 1, kind: input, shape index: {}]
  %s2 = inlined_call_operand.vmem [shape: f32[1,128], index: 2, kind: input, shape index: {}]
  %s3 = inlined_call_operand.vmem [shape: bf16[352,128], index: 3, kind: output, shape index: {}]
  %s4 = sld [smem:[#allocation0]]
  $region22: #{mlp_critic_forward.5} parent=0
    _
  %s6 = ssub.s32 1, %s4
  %s7 = scalar_select 0, %s6, %s4
  // Predicated region
  $region2: #{mlp_critic_forward.5} parent=0 // pred_check
    _
  $region3: #{mlp_critic_forward.5} parent=0 // pred_check_branch
    %9 = sbr.rel (0) target = $region5
  $region4: #{mlp_critic_forward.5} parent=0 // pred_region
    _
  $region5: #{mlp_critic_forward.5} parent=0 // pred_fallthru
    _
  // Predicated region
  $region6: #{mlp_critic_forward.5} parent=0 // pred_check
    _
  $region7: #{mlp_critic_forward.5} parent=0 // pred_check_branch
    %11 = sbr.rel (0) target = $region9
  $region8: #{mlp_critic_forward.5} parent=0 // pred_region
    _
  $region9: #{mlp_critic_forward.5} parent=0 // pred_fallthru
    _
  // Predicated region
  $region10: #{mlp_critic_forward.5} parent=0 // pred_check
    _
  $region11: #{mlp_critic_forward.5} parent=0 // pred_check_branch
    %13 = sbr.rel (0) target = $region13
  $region12: #{mlp_critic_forward.5} parent=0 // pred_region
    _
  $region13: #{mlp_critic_forward.5} parent=0 // pred_fallthru
    _
  %v14 = vld [vmem:[%s0] sm:$0xff]
  %v15 = vld [vmem:[%s0 + $0x8] sm:$0xff]
  %v16 = vld [vmem:[%s0 + $0x10] sm:$0xff]
  %v17 = vld [vmem:[%s0 + $0x18] sm:$0xff]
  %v18 = vld [vmem:[%s0 + $0x20] sm:$0xff]
  %v19 = vld [vmem:[%s0 + $0x28] sm:$0xff]
  %v20 = vld [vmem:[%s0 + $0x30] sm:$0xff]
  %v21 = vld [vmem:[%s0 + $0x38] sm:$0xff]
  %v22 = vld [vmem:[%s0 + $0x40] sm:$0xff]
  %v23 = vld [vmem:[%s0 + $0x48] sm:$0xff]
  %v24 = vld [vmem:[%s0 + $0x50] sm:$0xff]
  %v25 = vld [vmem:[%s0 + $0x58] sm:$0xff]
  %v26 = vld [vmem:[%s0 + $0x60] sm:$0xff]
  %v27 = vld [vmem:[%s0 + $0x68] sm:$0xff]
  %v28 = vld [vmem:[%s0 + $0x70] sm:$0xff]
  %v29 = vld [vmem:[%s0 + $0x78] sm:$0xff]
  %v30 = vld [vmem:[%s0 + $0x80] sm:$0xff]
  %v31 = vld [vmem:[%s0 + $0x88] sm:$0xff]
  %v32 = vld [vmem:[%s0 + $0x90] sm:$0xff]
  %v33 = vld [vmem:[%s0 + $0x98] sm:$0xff]
  %v34 = vld [vmem:[%s0 + $0xa0] sm:$0xff]
  %v35 = vld [vmem:[%s0 + $0xa8] sm:$0xff]
  %v36 = vld [vmem:[%s0 + $0xb0] sm:$0xff]
  %v37 = vld [vmem:[%s0 + $0xb8] sm:$0xff]
  %v38 = vld [vmem:[%s0 + $0xc0] sm:$0xff]
  %v39 = vld [vmem:[%s0 + $0xc8] sm:$0xff]
  %v40 = vld [vmem:[%s0 + $0xd0] sm:$0xff]
  %v41 = vld [vmem:[%s0 + $0xd8] sm:$0xff]
  %v42 = vld [vmem:[%s0 + $0xe0] sm:$0xff]
  %v43 = vld [vmem:[%s0 + $0xe8] sm:$0xff]
  %v44 = vld [vmem:[%s0 + $0xf0] sm:$0xff]
  %v45 = vld [vmem:[%s0 + $0xf8] sm:$0xff]
  %v46 = vld [vmem:[%s0 + $0x100] sm:$0xff]
  %v47 = vld [vmem:[%s0 + $0x108] sm:$0xff]
  %v48 = vld [vmem:[%s0 + $0x110] sm:$0xff]
  %v49 = vld [vmem:[%s0 + $0x118] sm:$0xff]
  %v50 = vld [vmem:[%s0 + $0x120] sm:$0xff]
  %v51 = vld [vmem:[%s0 + $0x128] sm:$0xff]
  %v52 = vld [vmem:[%s0 + $0x130] sm:$0xff]
  %v53 = vld [vmem:[%s0 + $0x138] sm:$0xff]
  %v54 = vld [vmem:[%s0 + $0x140] sm:$0xff]
  %v55 = vld [vmem:[%s0 + $0x148] sm:$0xff]
  %v56 = vld [vmem:[%s0 + $0x150] sm:$0xff]
  %v57 = vld [vmem:[%s0 + $0x158] sm:$0xff]
  %v58 = vld [vmem:[%s0 + $0x160] sm:$0xff]
  %v59 = vld [vmem:[%s0 + $0x168] sm:$0xff]
  %v60 = vld [vmem:[%s0 + $0x170] sm:$0xff]
  %v61 = vld [vmem:[%s0 + $0x178] sm:$0xff]
  %v62 = vld [vmem:[%s0 + $0x180] sm:$0xff]
  %v63 = vld [vmem:[%s0 + $0x188] sm:$0xff]
  %v64 = vld [vmem:[%s0 + $0x190] sm:$0xff]
  %v65 = vld [vmem:[%s0 + $0x198] sm:$0xff]
  %v66 = vld [vmem:[%s0 + $0x1a0] sm:$0xff]
  %v67 = vld [vmem:[%s0 + $0x1a8] sm:$0xff]
  %v68 = vld [vmem:[%s0 + $0x1b0] sm:$0xff]
  %v69 = vld [vmem:[%s0 + $0x1b8] sm:$0xff]
  %v70 = vld [vmem:[%s0 + $0x1c0] sm:$0xff]
  %v71 = vld [vmem:[%s0 + $0x1c8] sm:$0xff]
  %v72 = vld [vmem:[%s0 + $0x1d0] sm:$0xff]
  %v73 = vld [vmem:[%s0 + $0x1d8] sm:$0xff]
  %v74 = vld [vmem:[%s0 + $0x1e0] sm:$0xff]
  %v75 = vld [vmem:[%s0 + $0x1e8] sm:$0xff]
  %v76 = vld [vmem:[%s0 + $0x1f0] sm:$0xff]
  %v77 = vld [vmem:[%s0 + $0x1f8] sm:$0xff]
  %v78 = vld [vmem:[%s0 + $0x200] sm:$0xff]
  %v79 = vld [vmem:[%s0 + $0x208] sm:$0xff]
  %v80 = vld [vmem:[%s0 + $0x210] sm:$0xff]
  %v81 = vld [vmem:[%s0 + $0x218] sm:$0xff]
  %v82 = vld [vmem:[%s0 + $0x220] sm:$0xff]
  %v83 = vld [vmem:[%s0 + $0x228] sm:$0xff]
  %v84 = vld [vmem:[%s0 + $0x230] sm:$0xff]
  %v85 = vld [vmem:[%s0 + $0x238] sm:$0xff]
  %v86 = vld [vmem:[%s0 + $0x240] sm:$0xff]
  %v87 = vld [vmem:[%s0 + $0x248] sm:$0xff]
  %v88 = vld [vmem:[%s0 + $0x250] sm:$0xff]
  %v89 = vld [vmem:[%s0 + $0x258] sm:$0xff]
  %v90 = vld [vmem:[%s0 + $0x260] sm:$0xff]
  %v91 = vld [vmem:[%s0 + $0x268] sm:$0xff]
  %v92 = vld [vmem:[%s0 + $0x270] sm:$0xff]
  %v93 = vld [vmem:[%s0 + $0x278] sm:$0xff]
  %v94 = vld [vmem:[%s0 + $0x280] sm:$0xff]
  %v95 = vld [vmem:[%s0 + $0x288] sm:$0xff]
  %v96 = vld [vmem:[%s0 + $0x290] sm:$0xff]
  %v97 = vld [vmem:[%s0 + $0x298] sm:$0xff]
  %v98 = vld [vmem:[%s0 + $0x2a0] sm:$0xff]
  %v99 = vld [vmem:[%s0 + $0x2a8] sm:$0xff]
  %v100 = vld [vmem:[%s0 + $0x2b0] sm:$0xff]
  %v101 = vld [vmem:[%s0 + $0x2b8] sm:$0xff]
  %v102 = vld [vmem:[%s1] sm:$0xf]
  %v103 = vld [vmem:[%s1 + $0x4] sm:$0xf]
  %v104 = vld [vmem:[%s1 + $0x8] sm:$0xf]
  %v105 = vld [vmem:[%s1 + $0xc] sm:$0xf]
  %v106 = vld [vmem:[%s1 + $0x10] sm:$0xf]
  %v107 = vld [vmem:[%s1 + $0x14] sm:$0xf]
  %v108 = vld [vmem:[%s1 + $0x18] sm:$0xf]
  %v109 = vld [vmem:[%s1 + $0x1c] sm:$0xf]
  %v110 = vld [vmem:[%s1 + $0x20] sm:$0xf]
  %v111 = vld [vmem:[%s1 + $0x24] sm:$0xf]
  %v112 = vld [vmem:[%s1 + $0x28] sm:$0xf]
  %v113 = vld [vmem:[%s1 + $0x2c] sm:$0xf]
  %v114 = vld [vmem:[%s1 + $0x30] sm:$0xf]
  %v115 = vld [vmem:[%s1 + $0x34] sm:$0xf]
  %v116 = vld [vmem:[%s1 + $0x38] sm:$0xf]
  %v117 = vld [vmem:[%s1 + $0x3c] sm:$0xf]
  %v118 = vld [vmem:[%s1 + $0x40] sm:$0xf]
  %v119 = vld [vmem:[%s1 + $0x44] sm:$0xf]
  %v120 = vld [vmem:[%s1 + $0x48] sm:$0xf]
  %v121 = vld [vmem:[%s1 + $0x4c] sm:$0xf]
  %v122 = vld [vmem:[%s1 + $0x50] sm:$0xf]
  %v123 = vld [vmem:[%s1 + $0x54] sm:$0xf]
  %v124 = vld [vmem:[%s1 + $0x58] sm:$0xf]
  %v125 = vld [vmem:[%s1 + $0x5c] sm:$0xf]
  %v126 = vld [vmem:[%s1 + $0x60] sm:$0xf]
  %v127 = vld [vmem:[%s1 + $0x64] sm:$0xf]
  %v128 = vld [vmem:[%s1 + $0x68] sm:$0xf]
  %v129 = vld [vmem:[%s1 + $0x6c] sm:$0xf]
  %v130 = vld [vmem:[%s1 + $0x70] sm:$0xf]
  %v131 = vld [vmem:[%s1 + $0x74] sm:$0xf]
  %v132 = vld [vmem:[%s1 + $0x78] sm:$0xf]
  %v133 = vld [vmem:[%s1 + $0x7c] sm:$0xf]
  %v134 = vld [vmem:[%s1 + $0x80] sm:$0xf]
  %v135 = vld [vmem:[%s1 + $0x84] sm:$0xf]
  %v136 = vld [vmem:[%s1 + $0x88] sm:$0xf]
  %v137 = vld [vmem:[%s1 + $0x8c] sm:$0xf]
  %v138 = vld [vmem:[%s1 + $0x90] sm:$0xf]
  %v139 = vld [vmem:[%s1 + $0x94] sm:$0xf]
  %v140 = vld [vmem:[%s1 + $0x98] sm:$0xf]
  %v141 = vld [vmem:[%s1 + $0x9c] sm:$0xf]
  %v142 = vld [vmem:[%s1 + $0xa0] sm:$0xf]
  %v143 = vld [vmem:[%s1 + $0xa4] sm:$0xf]
  %v144 = vld [vmem:[%s1 + $0xa8] sm:$0xf]
  %v145 = vld [vmem:[%s1 + $0xac] sm:$0xf]
  %v146 = vld [vmem:[%s1 + $0xb0] sm:$0xf]
  %v147 = vld [vmem:[%s1 + $0xb4] sm:$0xf]
  %v148 = vld [vmem:[%s1 + $0xb8] sm:$0xf]
  %v149 = vld [vmem:[%s1 + $0xbc] sm:$0xf]
  %v150 = vld [vmem:[%s1 + $0xc0] sm:$0xf]
  %v151 = vld [vmem:[%s1 + $0xc4] sm:$0xf]
  %v152 = vld [vmem:[%s1 + $0xc8] sm:$0xf]
  %v153 = vld [vmem:[%s1 + $0xcc] sm:$0xf]
  %v154 = vld [vmem:[%s1 + $0xd0] sm:$0xf]
  %v155 = vld [vmem:[%s1 + $0xd4] sm:$0xf]
  %v156 = vld [vmem:[%s1 + $0xd8] sm:$0xf]
  %v157 = vld [vmem:[%s1 + $0xdc] sm:$0xf]
  %v158 = vld [vmem:[%s1 + $0xe0] sm:$0xf]
  %v159 = vld [vmem:[%s1 + $0xe4] sm:$0xf]
  %v160 = vld [vmem:[%s1 + $0xe8] sm:$0xf]
  %v161 = vld [vmem:[%s1 + $0xec] sm:$0xf]
  %v162 = vld [vmem:[%s1 + $0xf0] sm:$0xf]
  %v163 = vld [vmem:[%s1 + $0xf4] sm:$0xf]
  %v164 = vld [vmem:[%s1 + $0xf8] sm:$0xf]
  %v165 = vld [vmem:[%s1 + $0xfc] sm:$0xf]
  %v166 = vld [vmem:[%s2] sm:$0x1]
  %v168 = vperm.slane %v166, 0
  %v258 = vunpack.c.l.b16 %v14
  %v259 = vunpack.c.h.b16 %v14
  %v260 = vunpack.c.l.b16 %v15
  %v261 = vunpack.c.h.b16 %v15
  %v262 = vunpack.c.l.b16 %v16
  %v263 = vunpack.c.h.b16 %v16
  %v264 = vunpack.c.l.b16 %v17
  %v265 = vunpack.c.h.b16 %v17
  %v266 = vunpack.c.l.b16 %v18
  %v267 = vunpack.c.h.b16 %v18
  %v268 = vunpack.c.l.b16 %v19
  %v269 = vunpack.c.h.b16 %v19
  %v270 = vunpack.c.l.b16 %v20
  %v271 = vunpack.c.h.b16 %v20
  %v272 = vunpack.c.l.b16 %v21
  %v273 = vunpack.c.h.b16 %v21
  %v274 = vunpack.c.l.b16 %v22
  %v275 = vunpack.c.h.b16 %v22
  %v276 = vunpack.c.l.b16 %v23
  %v277 = vunpack.c.h.b16 %v23
  %v278 = vunpack.c.l.b16 %v24
  %v279 = vunpack.c.h.b16 %v24
  %v280 = vunpack.c.l.b16 %v25
  %v281 = vunpack.c.h.b16 %v25
  %v282 = vunpack.c.l.b16 %v26
  %v283 = vunpack.c.h.b16 %v26
  %v284 = vunpack.c.l.b16 %v27
  %v285 = vunpack.c.h.b16 %v27
  %v286 = vunpack.c.l.b16 %v28
  %v287 = vunpack.c.h.b16 %v28
  %v288 = vunpack.c.l.b16 %v29
  %v289 = vunpack.c.h.b16 %v29
  %v290 = vunpack.c.l.b16 %v30
  %v291 = vunpack.c.h.b16 %v30
  %v292 = vunpack.c.l.b16 %v31
  %v293 = vunpack.c.h.b16 %v31
  %v294 = vunpack.c.l.b16 %v32
  %v295 = vunpack.c.h.b16 %v32
  %v296 = vunpack.c.l.b16 %v33
  %v297 = vunpack.c.h.b16 %v33
  %v298 = vunpack.c.l.b16 %v34
  %v299 = vunpack.c.h.b16 %v34
  %v300 = vunpack.c.l.b16 %v35
  %v301 = vunpack.c.h.b16 %v35
  %v302 = vunpack.c.l.b16 %v36
  %v303 = vunpack.c.h.b16 %v36
  %v304 = vunpack.c.l.b16 %v37
  %v305 = vunpack.c.h.b16 %v37
  %v306 = vunpack.c.l.b16 %v38
  %v307 = vunpack.c.h.b16 %v38
  %v308 = vunpack.c.l.b16 %v39
  %v309 = vunpack.c.h.b16 %v39
  %v310 = vunpack.c.l.b16 %v40
  %v311 = vunpack.c.h.b16 %v40
  %v312 = vunpack.c.l.b16 %v41
  %v313 = vunpack.c.h.b16 %v41
  %v314 = vunpack.c.l.b16 %v42
  %v315 = vunpack.c.h.b16 %v42
  %v316 = vunpack.c.l.b16 %v43
  %v317 = vunpack.c.h.b16 %v43
  %v318 = vunpack.c.l.b16 %v44
  %v319 = vunpack.c.h.b16 %v44
  %v320 = vunpack.c.l.b16 %v45
  %v321 = vunpack.c.h.b16 %v45
  %v322 = vunpack.c.l.b16 %v46
  %v323 = vunpack.c.h.b16 %v46
  %v324 = vunpack.c.l.b16 %v47
  %v325 = vunpack.c.h.b16 %v47
  %v326 = vunpack.c.l.b16 %v48
  %v327 = vunpack.c.h.b16 %v48
  %v328 = vunpack.c.l.b16 %v49
  %v329 = vunpack.c.h.b16 %v49
  %v330 = vunpack.c.l.b16 %v50
  %v331 = vunpack.c.h.b16 %v50
  %v332 = vunpack.c.l.b16 %v51
  %v333 = vunpack.c.h.b16 %v51
  %v334 = vunpack.c.l.b16 %v52
  %v335 = vunpack.c.h.b16 %v52
  %v336 = vunpack.c.l.b16 %v53
  %v337 = vunpack.c.h.b16 %v53
  %v338 = vunpack.c.l.b16 %v54
  %v339 = vunpack.c.h.b16 %v54
  %v340 = vunpack.c.l.b16 %v55
  %v341 = vunpack.c.h.b16 %v55
  %v342 = vunpack.c.l.b16 %v56
  %v343 = vunpack.c.h.b16 %v56
  %v344 = vunpack.c.l.b16 %v57
  %v345 = vunpack.c.h.b16 %v57
  %v346 = vunpack.c.l.b16 %v58
  %v347 = vunpack.c.h.b16 %v58
  %v348 = vunpack.c.l.b16 %v59
  %v349 = vunpack.c.h.b16 %v59
  %v350 = vunpack.c.l.b16 %v60
  %v351 = vunpack.c.h.b16 %v60
  %v352 = vunpack.c.l.b16 %v61
  %v353 = vunpack.c.h.b16 %v61
  %v354 = vunpack.c.l.b16 %v62
  %v355 = vunpack.c.h.b16 %v62
  %v356 = vunpack.c.l.b16 %v63
  %v357 = vunpack.c.h.b16 %v63
  %v358 = vunpack.c.l.b16 %v64
  %v359 = vunpack.c.h.b16 %v64
  %v360 = vunpack.c.l.b16 %v65
  %v361 = vunpack.c.h.b16 %v65
  %v362 = vunpack.c.l.b16 %v66
  %v363 = vunpack.c.h.b16 %v66
  %v364 = vunpack.c.l.b16 %v67
  %v365 = vunpack.c.h.b16 %v67
  %v366 = vunpack.c.l.b16 %v68
  %v367 = vunpack.c.h.b16 %v68
  %v368 = vunpack.c.l.b16 %v69
  %v369 = vunpack.c.h.b16 %v69
  %v370 = vunpack.c.l.b16 %v70
  %v371 = vunpack.c.h.b16 %v70
  %v372 = vunpack.c.l.b16 %v71
  %v373 = vunpack.c.h.b16 %v71
  %v374 = vunpack.c.l.b16 %v72
  %v375 = vunpack.c.h.b16 %v72
  %v376 = vunpack.c.l.b16 %v73
  %v377 = vunpack.c.h.b16 %v73
  %v378 = vunpack.c.l.b16 %v74
  %v379 = vunpack.c.h.b16 %v74
  %v380 = vunpack.c.l.b16 %v75
  %v381 = vunpack.c.h.b16 %v75
  %v382 = vunpack.c.l.b16 %v76
  %v383 = vunpack.c.h.b16 %v76
  %v384 = vunpack.c.l.b16 %v77
  %v385 = vunpack.c.h.b16 %v77
  %v386 = vunpack.c.l.b16 %v78
  %v387 = vunpack.c.h.b16 %v78
  %v388 = vunpack.c.l.b16 %v79
  %v389 = vunpack.c.h.b16 %v79
  %v390 = vunpack.c.l.b16 %v80
  %v391 = vunpack.c.h.b16 %v80
  %v392 = vunpack.c.l.b16 %v81
  %v393 = vunpack.c.h.b16 %v81
  %v394 = vunpack.c.l.b16 %v82
  %v395 = vunpack.c.h.b16 %v82
  %v396 = vunpack.c.l.b16 %v83
  %v397 = vunpack.c.h.b16 %v83
  %v398 = vunpack.c.l.b16 %v84
  %v399 = vunpack.c.h.b16 %v84
  %v400 = vunpack.c.l.b16 %v85
  %v401 = vunpack.c.h.b16 %v85
  %v402 = vunpack.c.l.b16 %v86
  %v403 = vunpack.c.h.b16 %v86
  %v404 = vunpack.c.l.b16 %v87
  %v405 = vunpack.c.h.b16 %v87
  %v406 = vunpack.c.l.b16 %v88
  %v407 = vunpack.c.h.b16 %v88
  %v408 = vunpack.c.l.b16 %v89
  %v409 = vunpack.c.h.b16 %v89
  %v410 = vunpack.c.l.b16 %v90
  %v411 = vunpack.c.h.b16 %v90
  %v412 = vunpack.c.l.b16 %v91
  %v413 = vunpack.c.h.b16 %v91
  %v414 = vunpack.c.l.b16 %v92
  %v415 = vunpack.c.h.b16 %v92
  %v416 = vunpack.c.l.b16 %v93
  %v417 = vunpack.c.h.b16 %v93
  %v418 = vunpack.c.l.b16 %v94
  %v419 = vunpack.c.h.b16 %v94
  %v420 = vunpack.c.l.b16 %v95
  %v421 = vunpack.c.h.b16 %v95
  %v422 = vunpack.c.l.b16 %v96
  %v423 = vunpack.c.h.b16 %v96
  %v424 = vunpack.c.l.b16 %v97
  %v425 = vunpack.c.h.b16 %v97
  %v426 = vunpack.c.l.b16 %v98
  %v427 = vunpack.c.h.b16 %v98
  %v428 = vunpack.c.l.b16 %v99
  %v429 = vunpack.c.h.b16 %v99
  %v430 = vunpack.c.l.b16 %v100
  %v431 = vunpack.c.h.b16 %v100
  %v432 = vunpack.c.l.b16 %v101
  %v433 = vunpack.c.h.b16 %v101
  %v434 = vpack.c.b16 %v262, %v258
  %v435 = vpack.c.b16 %v263, %v259
  %v436 = vpack.c.b16 %v264, %v260
  %v437 = vpack.c.b16 %v265, %v261
  %v438 = vpack.c.b16 %v270, %v266
  %v439 = vpack.c.b16 %v271, %v267
  %v440 = vpack.c.b16 %v272, %v268
  %v441 = vpack.c.b16 %v273, %v269
  %v442 = vpack.c.b16 %v278, %v274
  %v443 = vpack.c.b16 %v279, %v275
  %v444 = vpack.c.b16 %v280, %v276
  %v445 = vpack.c.b16 %v281, %v277
  %v446 = vpack.c.b16 %v286, %v282
  %v447 = vpack.c.b16 %v287, %v283
  %v448 = vpack.c.b16 %v288, %v284
  %v449 = vpack.c.b16 %v289, %v285
  %v450 = vpack.c.b16 %v294, %v290
  %v451 = vpack.c.b16 %v295, %v291
  %v452 = vpack.c.b16 %v296, %v292
  %v453 = vpack.c.b16 %v297, %v293
  %v454 = vpack.c.b16 %v302, %v298
  %v455 = vpack.c.b16 %v303, %v299
  %v456 = vpack.c.b16 %v304, %v300
  %v457 = vpack.c.b16 %v305, %v301
  %v458 = vpack.c.b16 %v310, %v306
  %v459 = vpack.c.b16 %v311, %v307
  %v460 = vpack.c.b16 %v312, %v308
  %v461 = vpack.c.b16 %v313, %v309
  %v462 = vpack.c.b16 %v318, %v314
  %v463 = vpack.c.b16 %v319, %v315
  %v464 = vpack.c.b16 %v320, %v316
  %v465 = vpack.c.b16 %v321, %v317
  %v466 = vpack.c.b16 %v326, %v322
  %v467 = vpack.c.b16 %v327, %v323
  %v468 = vpack.c.b16 %v328, %v324
  %v469 = vpack.c.b16 %v329, %v325
  %v470 = vpack.c.b16 %v334, %v330
  %v471 = vpack.c.b16 %v335, %v331
  %v472 = vpack.c.b16 %v336, %v332
  %v473 = vpack.c.b16 %v337, %v333
  %v474 = vpack.c.b16 %v342, %v338
  %v475 = vpack.c.b16 %v343, %v339
  %v476 = vpack.c.b16 %v344, %v340
  %v477 = vpack.c.b16 %v345, %v341
  %v478 = vpack.c.b16 %v350, %v346
  %v479 = vpack.c.b16 %v351, %v347
  %v480 = vpack.c.b16 %v352, %v348
  %v481 = vpack.c.b16 %v353, %v349
  %v482 = vpack.c.b16 %v358, %v354
  %v483 = vpack.c.b16 %v359, %v355
  %v484 = vpack.c.b16 %v360, %v356
  %v485 = vpack.c.b16 %v361, %v357
  %v486 = vpack.c.b16 %v366, %v362
  %v487 = vpack.c.b16 %v367, %v363
  %v488 = vpack.c.b16 %v368, %v364
  %v489 = vpack.c.b16 %v369, %v365
  %v490 = vpack.c.b16 %v374, %v370
  %v491 = vpack.c.b16 %v375, %v371
  %v492 = vpack.c.b16 %v376, %v372
  %v493 = vpack.c.b16 %v377, %v373
  %v494 = vpack.c.b16 %v382, %v378
  %v495 = vpack.c.b16 %v383, %v379
  %v496 = vpack.c.b16 %v384, %v380
  %v497 = vpack.c.b16 %v385, %v381
  %v498 = vpack.c.b16 %v390, %v386
  %v499 = vpack.c.b16 %v391, %v387
  %v500 = vpack.c.b16 %v392, %v388
  %v501 = vpack.c.b16 %v393, %v389
  %v502 = vpack.c.b16 %v398, %v394
  %v503 = vpack.c.b16 %v399, %v395
  %v504 = vpack.c.b16 %v400, %v396
  %v505 = vpack.c.b16 %v401, %v397
  %v506 = vpack.c.b16 %v406, %v402
  %v507 = vpack.c.b16 %v407, %v403
  %v508 = vpack.c.b16 %v408, %v404
  %v509 = vpack.c.b16 %v409, %v405
  %v510 = vpack.c.b16 %v414, %v410
  %v511 = vpack.c.b16 %v415, %v411
  %v512 = vpack.c.b16 %v416, %v412
  %v513 = vpack.c.b16 %v417, %v413
  %v514 = vpack.c.b16 %v422, %v418
  %v515 = vpack.c.b16 %v423, %v419
  %v516 = vpack.c.b16 %v424, %v420
  %v517 = vpack.c.b16 %v425, %v421
  %v518 = vpack.c.b16 %v430, %v426
  %v519 = vpack.c.b16 %v431, %v427
  %v520 = vpack.c.b16 %v432, %v428
  %v521 = vpack.c.b16 %v433, %v429
  %v674 = vunpack.c.l.b16 %v102
  %v675 = vunpack.c.l.b16 %v103
  %v676 = vunpack.c.l.b16 %v104
  %v677 = vunpack.c.l.b16 %v105
  %v678 = vunpack.c.l.b16 %v106
  %v679 = vunpack.c.l.b16 %v107
  %v680 = vunpack.c.l.b16 %v108
  %v681 = vunpack.c.l.b16 %v109
  %v682 = vunpack.c.l.b16 %v110
  %v683 = vunpack.c.l.b16 %v111
  %v684 = vunpack.c.l.b16 %v112
  %v685 = vunpack.c.l.b16 %v113
  %v686 = vunpack.c.l.b16 %v114
  %v687 = vunpack.c.l.b16 %v115
  %v688 = vunpack.c.l.b16 %v116
  %v689 = vunpack.c.l.b16 %v117
  %v690 = vunpack.c.l.b16 %v118
  %v691 = vunpack.c.l.b16 %v119
  %v692 = vunpack.c.l.b16 %v120
  %v693 = vunpack.c.l.b16 %v121
  %v694 = vunpack.c.l.b16 %v122
  %v695 = vunpack.c.l.b16 %v123
  %v696 = vunpack.c.l.b16 %v124
  %v697 = vunpack.c.l.b16 %v125
  %v698 = vunpack.c.l.b16 %v126
  %v699 = vunpack.c.l.b16 %v127
  %v700 = vunpack.c.l.b16 %v128
  %v701 = vunpack.c.l.b16 %v129
  %v702 = vunpack.c.l.b16 %v130
  %v703 = vunpack.c.l.b16 %v131
  %v704 = vunpack.c.l.b16 %v132
  %v705 = vunpack.c.l.b16 %v133
  %v706 = vunpack.c.l.b16 %v134
  %v707 = vunpack.c.l.b16 %v135
  %v708 = vunpack.c.l.b16 %v136
  %v709 = vunpack.c.l.b16 %v137
  %v710 = vunpack.c.l.b16 %v138
  %v711 = vunpack.c.l.b16 %v139
  %v712 = vunpack.c.l.b16 %v140
  %v713 = vunpack.c.l.b16 %v141
  %v714 = vunpack.c.l.b16 %v142
  %v715 = vunpack.c.l.b16 %v143
  %v716 = vunpack.c.l.b16 %v144
  %v717 = vunpack.c.l.b16 %v145
  %v718 = vunpack.c.l.b16 %v146
  %v719 = vunpack.c.l.b16 %v147
  %v720 = vunpack.c.l.b16 %v148
  %v721 = vunpack.c.l.b16 %v149
  %v722 = vunpack.c.l.b16 %v150
  %v723 = vunpack.c.l.b16 %v151
  %v724 = vunpack.c.l.b16 %v152
  %v725 = vunpack.c.l.b16 %v153
  %v726 = vunpack.c.l.b16 %v154
  %v727 = vunpack.c.l.b16 %v155
  %v728 = vunpack.c.l.b16 %v156
  %v729 = vunpack.c.l.b16 %v157
  %v730 = vunpack.c.l.b16 %v158
  %v731 = vunpack.c.l.b16 %v159
  %v732 = vunpack.c.l.b16 %v160
  %v733 = vunpack.c.l.b16 %v161
  %v734 = vunpack.c.l.b16 %v162
  %v735 = vunpack.c.l.b16 %v163
  %v736 = vunpack.c.l.b16 %v164
  %v737 = vunpack.c.l.b16 %v165
  %v738 = vpack.c.b16 %v675, %v674
  %v739 = vpack.c.b16 %v677, %v676
  %v740 = vpack.c.b16 %v679, %v678
  %v741 = vpack.c.b16 %v681, %v680
  %v742 = vpack.c.b16 %v683, %v682
  %v743 = vpack.c.b16 %v685, %v684
  %v744 = vpack.c.b16 %v687, %v686
  %v745 = vpack.c.b16 %v689, %v688
  %v746 = vpack.c.b16 %v691, %v690
  %v747 = vpack.c.b16 %v693, %v692
  %v748 = vpack.c.b16 %v695, %v694
  %v749 = vpack.c.b16 %v697, %v696
  %v750 = vpack.c.b16 %v699, %v698
  %v751 = vpack.c.b16 %v701, %v700
  %v752 = vpack.c.b16 %v703, %v702
  %v753 = vpack.c.b16 %v705, %v704
  %v754 = vpack.c.b16 %v707, %v706
  %v755 = vpack.c.b16 %v709, %v708
  %v756 = vpack.c.b16 %v711, %v710
  %v757 = vpack.c.b16 %v713, %v712
  %v758 = vpack.c.b16 %v715, %v714
  %v759 = vpack.c.b16 %v717, %v716
  %v760 = vpack.c.b16 %v719, %v718
  %v761 = vpack.c.b16 %v721, %v720
  %v762 = vpack.c.b16 %v723, %v722
  %v763 = vpack.c.b16 %v725, %v724
  %v764 = vpack.c.b16 %v727, %v726
  %v765 = vpack.c.b16 %v729, %v728
  %v766 = vpack.c.b16 %v731, %v730
  %v767 = vpack.c.b16 %v733, %v732
  %v768 = vpack.c.b16 %v735, %v734
  %v769 = vpack.c.b16 %v737, %v736
  %802 = vmatpush.bf16.msra.mxu0 %v745
  %803 = vmatpush.bf16.msra.mxu0 %v744
  %804 = vmatpush.bf16.msra.mxu0 %v743
  %805 = vmatpush.bf16.msra.mxu0 %v742
  %806 = vmatpush.bf16.msra.mxu0 %v741
  %807 = vmatpush.bf16.msra.mxu0 %v740
  %808 = vmatpush.bf16.msra.mxu0 %v739
  %809 = vmatpush.bf16.msra.mxu0 %v738
  %810 = vmatmul.bf16.gmra.mxu0 %v434
  %v811 = vpop.f32.mrf.mxu0
  %v812 = vadd.f32 %v168, %v811
  %v813 = vpop.f32.mrf.mxu0
  %v814 = vadd.f32 %v168, %v813
  %815 = vmatmul.bf16.gmra.mxu0 %v438
  %v816 = vpop.f32.mrf.mxu0
  %v817 = vadd.f32 %v168, %v816
  %v818 = vpop.f32.mrf.mxu0
  %v819 = vadd.f32 %v168, %v818
  %820 = vmatmul.bf16.gmra.mxu0 %v442
  %v821 = vpop.f32.mrf.mxu0
  %v822 = vadd.f32 %v168, %v821
  %v823 = vpop.f32.mrf.mxu0
  %v824 = vadd.f32 %v168, %v823
  %825 = vmatmul.bf16.gmra.mxu0 %v446
  %v826 = vpop.f32.mrf.mxu0
  %v827 = vadd.f32 %v168, %v826
  %v828 = vpop.f32.mrf.mxu0
  %v829 = vadd.f32 %v168, %v828
  %830 = vmatmul.bf16.gmra.mxu0 %v450
  %v831 = vpop.f32.mrf.mxu0
  %v832 = vadd.f32 %v168, %v831
  %v833 = vpop.f32.mrf.mxu0
  %v834 = vadd.f32 %v168, %v833
  %835 = vmatmul.bf16.gmra.mxu0 %v454
  %v836 = vpop.f32.mrf.mxu0
  %v837 = vadd.f32 %v168, %v836
  %v838 = vpop.f32.mrf.mxu0
  %v839 = vadd.f32 %v168, %v838
  %840 = vmatmul.bf16.gmra.mxu0 %v458
  %v841 = vpop.f32.mrf.mxu0
  %v842 = vadd.f32 %v168, %v841
  %v843 = vpop.f32.mrf.mxu0
  %v844 = vadd.f32 %v168, %v843
  %845 = vmatmul.bf16.gmra.mxu0 %v462
  %v846 = vpop.f32.mrf.mxu0
  %v847 = vadd.f32 %v168, %v846
  %v848 = vpop.f32.mrf.mxu0
  %v849 = vadd.f32 %v168, %v848
  %850 = vmatmul.bf16.gmra.mxu0 %v466
  %v851 = vpop.f32.mrf.mxu0
  %v852 = vadd.f32 %v168, %v851
  %v853 = vpop.f32.mrf.mxu0
  %v854 = vadd.f32 %v168, %v853
  %855 = vmatmul.bf16.gmra.mxu0 %v470
  %v856 = vpop.f32.mrf.mxu0
  %v857 = vadd.f32 %v168, %v856
  %v858 = vpop.f32.mrf.mxu0
  %v859 = vadd.f32 %v168, %v858
  %860 = vmatmul.bf16.gmra.mxu0 %v474
  %v861 = vpop.f32.mrf.mxu0
  %v862 = vadd.f32 %v168, %v861
  %v863 = vpop.f32.mrf.mxu0
  %v864 = vadd.f32 %v168, %v863
  %865 = vmatmul.bf16.gmra.mxu0 %v478
  %v866 = vpop.f32.mrf.mxu0
  %v867 = vadd.f32 %v168, %v866
  %v868 = vpop.f32.mrf.mxu0
  %v869 = vadd.f32 %v168, %v868
  %870 = vmatmul.bf16.gmra.mxu0 %v482
  %v871 = vpop.f32.mrf.mxu0
  %v872 = vadd.f32 %v168, %v871
  %v873 = vpop.f32.mrf.mxu0
  %v874 = vadd.f32 %v168, %v873
  %875 = vmatmul.bf16.gmra.mxu0 %v486
  %v876 = vpop.f32.mrf.mxu0
  %v877 = vadd.f32 %v168, %v876
  %v878 = vpop.f32.mrf.mxu0
  %v879 = vadd.f32 %v168, %v878
  %880 = vmatmul.bf16.gmra.mxu0 %v490
  %v881 = vpop.f32.mrf.mxu0
  %v882 = vadd.f32 %v168, %v881
  %v883 = vpop.f32.mrf.mxu0
  %v884 = vadd.f32 %v168, %v883
  %885 = vmatmul.bf16.gmra.mxu0 %v494
  %v886 = vpop.f32.mrf.mxu0
  %v887 = vadd.f32 %v168, %v886
  %v888 = vpop.f32.mrf.mxu0
  %v889 = vadd.f32 %v168, %v888
  %890 = vmatmul.bf16.gmra.mxu0 %v498
  %v891 = vpop.f32.mrf.mxu0
  %v892 = vadd.f32 %v168, %v891
  %v893 = vpop.f32.mrf.mxu0
  %v894 = vadd.f32 %v168, %v893
  %895 = vmatmul.bf16.gmra.mxu0 %v502
  %v896 = vpop.f32.mrf.mxu0
  %v897 = vadd.f32 %v168, %v896
  %v898 = vpop.f32.mrf.mxu0
  %v899 = vadd.f32 %v168, %v898
  %900 = vmatmul.bf16.gmra.mxu0 %v506
  %v901 = vpop.f32.mrf.mxu0
  %v902 = vadd.f32 %v168, %v901
  %v903 = vpop.f32.mrf.mxu0
  %v904 = vadd.f32 %v168, %v903
  %905 = vmatmul.bf16.gmra.mxu0 %v510
  %v906 = vpop.f32.mrf.mxu0
  %v907 = vadd.f32 %v168, %v906
  %v908 = vpop.f32.mrf.mxu0
  %v909 = vadd.f32 %v168, %v908
  %910 = vmatmul.bf16.gmra.mxu0 %v514
  %v911 = vpop.f32.mrf.mxu0
  %v912 = vadd.f32 %v168, %v911
  %v913 = vpop.f32.mrf.mxu0
  %v914 = vadd.f32 %v168, %v913
  %915 = vmatmul.bf16.gmra.mxu0 %v518
  %v916 = vpop.f32.mrf.mxu0
  %v917 = vadd.f32 %v168, %v916
  %v918 = vpop.f32.mrf.mxu0
  %v919 = vadd.f32 %v168, %v918
  %920 = vdwg.mxu0
  %921 = vmatpush.bf16.msra.mxu0 %v753
  %922 = vmatpush.bf16.msra.mxu0 %v752
  %923 = vmatpush.bf16.msra.mxu0 %v751
  %924 = vmatpush.bf16.msra.mxu0 %v750
  %925 = vmatpush.bf16.msra.mxu0 %v749
  %926 = vmatpush.bf16.msra.mxu0 %v748
  %927 = vmatpush.bf16.msra.mxu0 %v747
  %928 = vmatpush.bf16.msra.mxu0 %v746
  %929 = vmatmul.bf16.gmra.mxu0 %v435
  %v930 = vpop.f32.mrf.mxu0
  %v931 = vadd.f32 %v812, %v930
  %v932 = vpop.f32.mrf.mxu0
  %v933 = vadd.f32 %v814, %v932
  %934 = vmatmul.bf16.gmra.mxu0 %v439
  %v935 = vpop.f32.mrf.mxu0
  %v936 = vadd.f32 %v817, %v935
  %v937 = vpop.f32.mrf.mxu0
  %v938 = vadd.f32 %v819, %v937
  %939 = vmatmul.bf16.gmra.mxu0 %v443
  %v940 = vpop.f32.mrf.mxu0
  %v941 = vadd.f32 %v822, %v940
  %v942 = vpop.f32.mrf.mxu0
  %v943 = vadd.f32 %v824, %v942
  %944 = vmatmul.bf16.gmra.mxu0 %v447
  %v945 = vpop.f32.mrf.mxu0
  %v946 = vadd.f32 %v827, %v945
  %v947 = vpop.f32.mrf.mxu0
  %v948 = vadd.f32 %v829, %v947
  %949 = vmatmul.bf16.gmra.mxu0 %v451
  %v950 = vpop.f32.mrf.mxu0
  %v951 = vadd.f32 %v832, %v950
  %v952 = vpop.f32.mrf.mxu0
  %v953 = vadd.f32 %v834, %v952
  %954 = vmatmul.bf16.gmra.mxu0 %v455
  %v955 = vpop.f32.mrf.mxu0
  %v956 = vadd.f32 %v837, %v955
  %v957 = vpop.f32.mrf.mxu0
  %v958 = vadd.f32 %v839, %v957
  %959 = vmatmul.bf16.gmra.mxu0 %v459
  %v960 = vpop.f32.mrf.mxu0
  %v961 = vadd.f32 %v842, %v960
  %v962 = vpop.f32.mrf.mxu0
  %v963 = vadd.f32 %v844, %v962
  %964 = vmatmul.bf16.gmra.mxu0 %v463
  %v965 = vpop.f32.mrf.mxu0
  %v966 = vadd.f32 %v847, %v965
  %v967 = vpop.f32.mrf.mxu0
  %v968 = vadd.f32 %v849, %v967
  %969 = vmatmul.bf16.gmra.mxu0 %v467
  %v970 = vpop.f32.mrf.mxu0
  %v971 = vadd.f32 %v852, %v970
  %v972 = vpop.f32.mrf.mxu0
  %v973 = vadd.f32 %v854, %v972
  %974 = vmatmul.bf16.gmra.mxu0 %v471
  %v975 = vpop.f32.mrf.mxu0
  %v976 = vadd.f32 %v857, %v975
  %v977 = vpop.f32.mrf.mxu0
  %v978 = vadd.f32 %v859, %v977
  %979 = vmatmul.bf16.gmra.mxu0 %v475
  %v980 = vpop.f32.mrf.mxu0
  %v981 = vadd.f32 %v862, %v980
  %v982 = vpop.f32.mrf.mxu0
  %v983 = vadd.f32 %v864, %v982
  %984 = vmatmul.bf16.gmra.mxu0 %v479
  %v985 = vpop.f32.mrf.mxu0
  %v986 = vadd.f32 %v867, %v985
  %v987 = vpop.f32.mrf.mxu0
  %v988 = vadd.f32 %v869, %v987
  %989 = vmatmul.bf16.gmra.mxu0 %v483
  %v990 = vpop.f32.mrf.mxu0
  %v991 = vadd.f32 %v872, %v990
  %v992 = vpop.f32.mrf.mxu0
  %v993 = vadd.f32 %v874, %v992
  %994 = vmatmul.bf16.gmra.mxu0 %v487
  %v995 = vpop.f32.mrf.mxu0
  %v996 = vadd.f32 %v877, %v995
  %v997 = vpop.f32.mrf.mxu0
  %v998 = vadd.f32 %v879, %v997
  %999 = vmatmul.bf16.gmra.mxu0 %v491
  %v1000 = vpop.f32.mrf.mxu0
  %v1001 = vadd.f32 %v882, %v1000
  %v1002 = vpop.f32.mrf.mxu0
  %v1003 = vadd.f32 %v884, %v1002
  %1004 = vmatmul.bf16.gmra.mxu0 %v495
  %v1005 = vpop.f32.mrf.mxu0
  %v1006 = vadd.f32 %v887, %v1005
  %v1007 = vpop.f32.mrf.mxu0
  %v1008 = vadd.f32 %v889, %v1007
  %1009 = vmatmul.bf16.gmra.mxu0 %v499
  %v1010 = vpop.f32.mrf.mxu0
  %v1011 = vadd.f32 %v892, %v1010
  %v1012 = vpop.f32.mrf.mxu0
  %v1013 = vadd.f32 %v894, %v1012
  %1014 = vmatmul.bf16.gmra.mxu0 %v503
  %v1015 = vpop.f32.mrf.mxu0
  %v1016 = vadd.f32 %v897, %v1015
  %v1017 = vpop.f32.mrf.mxu0
  %v1018 = vadd.f32 %v899, %v1017
  %1019 = vmatmul.bf16.gmra.mxu0 %v507
  %v1020 = vpop.f32.mrf.mxu0
  %v1021 = vadd.f32 %v902, %v1020
  %v1022 = vpop.f32.mrf.mxu0
  %v1023 = vadd.f32 %v904, %v1022
  %1024 = vmatmul.bf16.gmra.mxu0 %v511
  %v1025 = vpop.f32.mrf.mxu0
  %v1026 = vadd.f32 %v907, %v1025
  %v1027 = vpop.f32.mrf.mxu0
  %v1028 = vadd.f32 %v909, %v1027
  %1029 = vmatmul.bf16.gmra.mxu0 %v515
  %v1030 = vpop.f32.mrf.mxu0
  %v1031 = vadd.f32 %v912, %v1030
  %v1032 = vpop.f32.mrf.mxu0
  %v1033 = vadd.f32 %v914, %v1032
  %1034 = vmatmul.bf16.gmra.mxu0 %v519
  %v1035 = vpop.f32.mrf.mxu0
  %v1036 = vadd.f32 %v917, %v1035
  %v1037 = vpop.f32.mrf.mxu0
  %v1038 = vadd.f32 %v919, %v1037
  %1039 = vdwg.mxu0
  %1040 = vmatpush.bf16.msra.mxu0 %v761
  %1041 = vmatpush.bf16.msra.mxu0 %v760
  %1042 = vmatpush.bf16.msra.mxu0 %v759
  %1043 = vmatpush.bf16.msra.mxu0 %v758
  %1044 = vmatpush.bf16.msra.mxu0 %v757
  %1045 = vmatpush.bf16.msra.mxu0 %v756
  %1046 = vmatpush.bf16.msra.mxu0 %v755
  %1047 = vmatpush.bf16.msra.mxu0 %v754
  %1048 = vmatmul.bf16.gmra.mxu0 %v436
  %v1049 = vpop.f32.mrf.mxu0
  %v1050 = vadd.f32 %v931, %v1049
  %v1051 = vpop.f32.mrf.mxu0
  %v1052 = vadd.f32 %v933, %v1051
  %1053 = vmatmul.bf16.gmra.mxu0 %v440
  %v1054 = vpop.f32.mrf.mxu0
  %v1055 = vadd.f32 %v936, %v1054
  %v1056 = vpop.f32.mrf.mxu0
  %v1057 = vadd.f32 %v938, %v1056
  %1058 = vmatmul.bf16.gmra.mxu0 %v444
  %v1059 = vpop.f32.mrf.mxu0
  %v1060 = vadd.f32 %v941, %v1059
  %v1061 = vpop.f32.mrf.mxu0
  %v1062 = vadd.f32 %v943, %v1061
  %1063 = vmatmul.bf16.gmra.mxu0 %v448
  %v1064 = vpop.f32.mrf.mxu0
  %v1065 = vadd.f32 %v946, %v1064
  %v1066 = vpop.f32.mrf.mxu0
  %v1067 = vadd.f32 %v948, %v1066
  %1068 = vmatmul.bf16.gmra.mxu0 %v452
  %v1069 = vpop.f32.mrf.mxu0
  %v1070 = vadd.f32 %v951, %v1069
  %v1071 = vpop.f32.mrf.mxu0
  %v1072 = vadd.f32 %v953, %v1071
  %1073 = vmatmul.bf16.gmra.mxu0 %v456
  %v1074 = vpop.f32.mrf.mxu0
  %v1075 = vadd.f32 %v956, %v1074
  %v1076 = vpop.f32.mrf.mxu0
  %v1077 = vadd.f32 %v958, %v1076
  %1078 = vmatmul.bf16.gmra.mxu0 %v460
  %v1079 = vpop.f32.mrf.mxu0
  %v1080 = vadd.f32 %v961, %v1079
  %v1081 = vpop.f32.mrf.mxu0
  %v1082 = vadd.f32 %v963, %v1081
  %1083 = vmatmul.bf16.gmra.mxu0 %v464
  %v1084 = vpop.f32.mrf.mxu0
  %v1085 = vadd.f32 %v966, %v1084
  %v1086 = vpop.f32.mrf.mxu0
  %v1087 = vadd.f32 %v968, %v1086
  %1088 = vmatmul.bf16.gmra.mxu0 %v468
  %v1089 = vpop.f32.mrf.mxu0
  %v1090 = vadd.f32 %v971, %v1089
  %v1091 = vpop.f32.mrf.mxu0
  %v1092 = vadd.f32 %v973, %v1091
  %1093 = vmatmul.bf16.gmra.mxu0 %v472
  %v1094 = vpop.f32.mrf.mxu0
  %v1095 = vadd.f32 %v976, %v1094
  %v1096 = vpop.f32.mrf.mxu0
  %v1097 = vadd.f32 %v978, %v1096
  %1098 = vmatmul.bf16.gmra.mxu0 %v476
  %v1099 = vpop.f32.mrf.mxu0
  %v1100 = vadd.f32 %v981, %v1099
  %v1101 = vpop.f32.mrf.mxu0
  %v1102 = vadd.f32 %v983, %v1101
  %1103 = vmatmul.bf16.gmra.mxu0 %v480
  %v1104 = vpop.f32.mrf.mxu0
  %v1105 = vadd.f32 %v986, %v1104
  %v1106 = vpop.f32.mrf.mxu0
  %v1107 = vadd.f32 %v988, %v1106
  %1108 = vmatmul.bf16.gmra.mxu0 %v484
  %v1109 = vpop.f32.mrf.mxu0
  %v1110 = vadd.f32 %v991, %v1109
  %v1111 = vpop.f32.mrf.mxu0
  %v1112 = vadd.f32 %v993, %v1111
  %1113 = vmatmul.bf16.gmra.mxu0 %v488
  %v1114 = vpop.f32.mrf.mxu0
  %v1115 = vadd.f32 %v996, %v1114
  %v1116 = vpop.f32.mrf.mxu0
  %v1117 = vadd.f32 %v998, %v1116
  %1118 = vmatmul.bf16.gmra.mxu0 %v492
  %v1119 = vpop.f32.mrf.mxu0
  %v1120 = vadd.f32 %v1001, %v1119
  %v1121 = vpop.f32.mrf.mxu0
  %v1122 = vadd.f32 %v1003, %v1121
  %1123 = vmatmul.bf16.gmra.mxu0 %v496
  %v1124 = vpop.f32.mrf.mxu0
  %v1125 = vadd.f32 %v1006, %v1124
  %v1126 = vpop.f32.mrf.mxu0
  %v1127 = vadd.f32 %v1008, %v1126
  %1128 = vmatmul.bf16.gmra.mxu0 %v500
  %v1129 = vpop.f32.mrf.mxu0
  %v1130 = vadd.f32 %v1011, %v1129
  %v1131 = vpop.f32.mrf.mxu0
  %v1132 = vadd.f32 %v1013, %v1131
  %1133 = vmatmul.bf16.gmra.mxu0 %v504
  %v1134 = vpop.f32.mrf.mxu0
  %v1135 = vadd.f32 %v1016, %v1134
  %v1136 = vpop.f32.mrf.mxu0
  %v1137 = vadd.f32 %v1018, %v1136
  %1138 = vmatmul.bf16.gmra.mxu0 %v508
  %v1139 = vpop.f32.mrf.mxu0
  %v1140 = vadd.f32 %v1021, %v1139
  %v1141 = vpop.f32.mrf.mxu0
  %v1142 = vadd.f32 %v1023, %v1141
  %1143 = vmatmul.bf16.gmra.mxu0 %v512
  %v1144 = vpop.f32.mrf.mxu0
  %v1145 = vadd.f32 %v1026, %v1144
  %v1146 = vpop.f32.mrf.mxu0
  %v1147 = vadd.f32 %v1028, %v1146
  %1148 = vmatmul.bf16.gmra.mxu0 %v516
  %v1149 = vpop.f32.mrf.mxu0
  %v1150 = vadd.f32 %v1031, %v1149
  %v1151 = vpop.f32.mrf.mxu0
  %v1152 = vadd.f32 %v1033, %v1151
  %1153 = vmatmul.bf16.gmra.mxu0 %v520
  %v1154 = vpop.f32.mrf.mxu0
  %v1155 = vadd.f32 %v1036, %v1154
  %v1156 = vpop.f32.mrf.mxu0
  %v1157 = vadd.f32 %v1038, %v1156
  %1158 = vdwg.mxu0
  %1159 = vmatpush.bf16.msra.mxu0 %v769
  %1160 = vmatpush.bf16.msra.mxu0 %v768
  %1161 = vmatpush.bf16.msra.mxu0 %v767
  %1162 = vmatpush.bf16.msra.mxu0 %v766
  %1163 = vmatpush.bf16.msra.mxu0 %v765
  %1164 = vmatpush.bf16.msra.mxu0 %v764
  %1165 = vmatpush.bf16.msra.mxu0 %v763
  %1166 = vmatpush.bf16.msra.mxu0 %v762
  %1167 = vmatmul.bf16.gmra.mxu0 %v437
  %v1168 = vpop.f32.mrf.mxu0
  %v1169 = vadd.f32 %v1050, %v1168
  %v1170 = vpop.f32.mrf.mxu0
  %v1171 = vadd.f32 %v1052, %v1170
  %1172 = vmatmul.bf16.gmra.mxu0 %v441
  %v1173 = vpop.f32.mrf.mxu0
  %v1174 = vadd.f32 %v1055, %v1173
  %v1175 = vpop.f32.mrf.mxu0
  %v1176 = vadd.f32 %v1057, %v1175
  %1177 = vmatmul.bf16.gmra.mxu0 %v445
  %v1178 = vpop.f32.mrf.mxu0
  %v1179 = vadd.f32 %v1060, %v1178
  %v1180 = vpop.f32.mrf.mxu0
  %v1181 = vadd.f32 %v1062, %v1180
  %1182 = vmatmul.bf16.gmra.mxu0 %v449
  %v1183 = vpop.f32.mrf.mxu0
  %v1184 = vadd.f32 %v1065, %v1183
  %v1185 = vpop.f32.mrf.mxu0
  %v1186 = vadd.f32 %v1067, %v1185
  %1187 = vmatmul.bf16.gmra.mxu0 %v453
  %v1188 = vpop.f32.mrf.mxu0
  %v1189 = vadd.f32 %v1070, %v1188
  %v1190 = vpop.f32.mrf.mxu0
  %v1191 = vadd.f32 %v1072, %v1190
  %1192 = vmatmul.bf16.gmra.mxu0 %v457
  %v1193 = vpop.f32.mrf.mxu0
  %v1194 = vadd.f32 %v1075, %v1193
  %v1195 = vpop.f32.mrf.mxu0
  %v1196 = vadd.f32 %v1077, %v1195
  %1197 = vmatmul.bf16.gmra.mxu0 %v461
  %v1198 = vpop.f32.mrf.mxu0
  %v1199 = vadd.f32 %v1080, %v1198
  %v1200 = vpop.f32.mrf.mxu0
  %v1201 = vadd.f32 %v1082, %v1200
  %1202 = vmatmul.bf16.gmra.mxu0 %v465
  %v1203 = vpop.f32.mrf.mxu0
  %v1204 = vadd.f32 %v1085, %v1203
  %v1205 = vpop.f32.mrf.mxu0
  %v1206 = vadd.f32 %v1087, %v1205
  %1207 = vmatmul.bf16.gmra.mxu0 %v469
  %v1208 = vpop.f32.mrf.mxu0
  %v1209 = vadd.f32 %v1090, %v1208
  %v1210 = vpop.f32.mrf.mxu0
  %v1211 = vadd.f32 %v1092, %v1210
  %1212 = vmatmul.bf16.gmra.mxu0 %v473
  %v1213 = vpop.f32.mrf.mxu0
  %v1214 = vadd.f32 %v1095, %v1213
  %v1215 = vpop.f32.mrf.mxu0
  %v1216 = vadd.f32 %v1097, %v1215
  %1217 = vmatmul.bf16.gmra.mxu0 %v477
  %v1218 = vpop.f32.mrf.mxu0
  %v1219 = vadd.f32 %v1100, %v1218
  %v1220 = vpop.f32.mrf.mxu0
  %v1221 = vadd.f32 %v1102, %v1220
  %1222 = vmatmul.bf16.gmra.mxu0 %v481
  %v1223 = vpop.f32.mrf.mxu0
  %v1224 = vadd.f32 %v1105, %v1223
  %v1225 = vpop.f32.mrf.mxu0
  %v1226 = vadd.f32 %v1107, %v1225
  %1227 = vmatmul.bf16.gmra.mxu0 %v485
  %v1228 = vpop.f32.mrf.mxu0
  %v1229 = vadd.f32 %v1110, %v1228
  %v1230 = vpop.f32.mrf.mxu0
  %v1231 = vadd.f32 %v1112, %v1230
  %1232 = vmatmul.bf16.gmra.mxu0 %v489
  %v1233 = vpop.f32.mrf.mxu0
  %v1234 = vadd.f32 %v1115, %v1233
  %v1235 = vpop.f32.mrf.mxu0
  %v1236 = vadd.f32 %v1117, %v1235
  %1237 = vmatmul.bf16.gmra.mxu0 %v493
  %v1238 = vpop.f32.mrf.mxu0
  %v1239 = vadd.f32 %v1120, %v1238
  %v1240 = vpop.f32.mrf.mxu0
  %v1241 = vadd.f32 %v1122, %v1240
  %1242 = vmatmul.bf16.gmra.mxu0 %v497
  %v1243 = vpop.f32.mrf.mxu0
  %v1244 = vadd.f32 %v1125, %v1243
  %v1245 = vpop.f32.mrf.mxu0
  %v1246 = vadd.f32 %v1127, %v1245
  %1247 = vmatmul.bf16.gmra.mxu0 %v501
  %v1248 = vpop.f32.mrf.mxu0
  %v1249 = vadd.f32 %v1130, %v1248
  %v1250 = vpop.f32.mrf.mxu0
  %v1251 = vadd.f32 %v1132, %v1250
  %1252 = vmatmul.bf16.gmra.mxu0 %v505
  %v1253 = vpop.f32.mrf.mxu0
  %v1254 = vadd.f32 %v1135, %v1253
  %v1255 = vpop.f32.mrf.mxu0
  %v1256 = vadd.f32 %v1137, %v1255
  %1257 = vmatmul.bf16.gmra.mxu0 %v509
  %v1258 = vpop.f32.mrf.mxu0
  %v1259 = vadd.f32 %v1140, %v1258
  %v1260 = vpop.f32.mrf.mxu0
  %v1261 = vadd.f32 %v1142, %v1260
  %1262 = vmatmul.bf16.gmra.mxu0 %v513
  %v1263 = vpop.f32.mrf.mxu0
  %v1264 = vadd.f32 %v1145, %v1263
  %v1265 = vpop.f32.mrf.mxu0
  %v1266 = vadd.f32 %v1147, %v1265
  %1267 = vmatmul.bf16.gmra.mxu0 %v517
  %v1268 = vpop.f32.mrf.mxu0
  %v1269 = vadd.f32 %v1150, %v1268
  %v1270 = vpop.f32.mrf.mxu0
  %v1271 = vadd.f32 %v1152, %v1270
  %1272 = vmatmul.bf16.gmra.mxu0 %v521
  %v1273 = vpop.f32.mrf.mxu0
  %v1274 = vadd.f32 %v1155, %v1273
  %v1275 = vpop.f32.mrf.mxu0
  %v1276 = vadd.f32 %v1157, %v1275
  %1277 = vdwg.mxu0
  %v1278 = vmax.f32 %v1169, 0.0
  %v1279 = vmax.f32 %v1171, 0.0
  %v1280 = vmax.f32 %v1174, 0.0
  %v1281 = vmax.f32 %v1176, 0.0
  %v1282 = vmax.f32 %v1179, 0.0
  %v1283 = vmax.f32 %v1181, 0.0
  %v1284 = vmax.f32 %v1184, 0.0
  %v1285 = vmax.f32 %v1186, 0.0
  %v1286 = vmax.f32 %v1189, 0.0
  %v1287 = vmax.f32 %v1191, 0.0
  %v1288 = vmax.f32 %v1194, 0.0
  %v1289 = vmax.f32 %v1196, 0.0
  %v1290 = vmax.f32 %v1199, 0.0
  %v1291 = vmax.f32 %v1201, 0.0
  %v1292 = vmax.f32 %v1204, 0.0
  %v1293 = vmax.f32 %v1206, 0.0
  %v1294 = vmax.f32 %v1209, 0.0
  %v1295 = vmax.f32 %v1211, 0.0
  %v1296 = vmax.f32 %v1214, 0.0
  %v1297 = vmax.f32 %v1216, 0.0
  %v1298 = vmax.f32 %v1219, 0.0
  %v1299 = vmax.f32 %v1221, 0.0
  %v1300 = vmax.f32 %v1224, 0.0
  %v1301 = vmax.f32 %v1226, 0.0
  %v1302 = vmax.f32 %v1229, 0.0
  %v1303 = vmax.f32 %v1231, 0.0
  %v1304 = vmax.f32 %v1234, 0.0
  %v1305 = vmax.f32 %v1236, 0.0
  %v1306 = vmax.f32 %v1239, 0.0
  %v1307 = vmax.f32 %v1241, 0.0
  %v1308 = vmax.f32 %v1244, 0.0
  %v1309 = vmax.f32 %v1246, 0.0
  %v1310 = vmax.f32 %v1249, 0.0
  %v1311 = vmax.f32 %v1251, 0.0
  %v1312 = vmax.f32 %v1254, 0.0
  %v1313 = vmax.f32 %v1256, 0.0
  %v1314 = vmax.f32 %v1259, 0.0
  %v1315 = vmax.f32 %v1261, 0.0
  %v1316 = vmax.f32 %v1264, 0.0
  %v1317 = vmax.f32 %v1266, 0.0
  %v1318 = vmax.f32 %v1269, 0.0
  %v1319 = vmax.f32 %v1271, 0.0
  %v1320 = vmax.f32 %v1274, 0.0
  %v1321 = vmax.f32 %v1276, 0.0
  %v1322 = vpack.c.bf16 %v1278, %v1278
  %v1323 = vpack.c.bf16 %v1279, %v1279
  %v1324 = vpack.c.bf16 %v1280, %v1280
  %v1325 = vpack.c.bf16 %v1281, %v1281
  %v1326 = vpack.c.bf16 %v1282, %v1282
  %v1327 = vpack.c.bf16 %v1283, %v1283
  %v1328 = vpack.c.bf16 %v1284, %v1284
  %v1329 = vpack.c.bf16 %v1285, %v1285
  %v1330 = vpack.c.bf16 %v1286, %v1286
  %v1331 = vpack.c.bf16 %v1287, %v1287
  %v1332 = vpack.c.bf16 %v1288, %v1288
  %v1333 = vpack.c.bf16 %v1289, %v1289
  %v1334 = vpack.c.bf16 %v1290, %v1290
  %v1335 = vpack.c.bf16 %v1291, %v1291
  %v1336 = vpack.c.bf16 %v1292, %v1292
  %v1337 = vpack.c.bf16 %v1293, %v1293
  %v1338 = vpack.c.bf16 %v1294, %v1294
  %v1339 = vpack.c.bf16 %v1295, %v1295
  %v1340 = vpack.c.bf16 %v1296, %v1296
  %v1341 = vpack.c.bf16 %v1297, %v1297
  %v1342 = vpack.c.bf16 %v1298, %v1298
  %v1343 = vpack.c.bf16 %v1299, %v1299
  %v1344 = vpack.c.bf16 %v1300, %v1300
  %v1345 = vpack.c.bf16 %v1301, %v1301
  %v1346 = vpack.c.bf16 %v1302, %v1302
  %v1347 = vpack.c.bf16 %v1303, %v1303
  %v1348 = vpack.c.bf16 %v1304, %v1304
  %v1349 = vpack.c.bf16 %v1305, %v1305
  %v1350 = vpack.c.bf16 %v1306, %v1306
  %v1351 = vpack.c.bf16 %v1307, %v1307
  %v1352 = vpack.c.bf16 %v1308, %v1308
  %v1353 = vpack.c.bf16 %v1309, %v1309
  %v1354 = vpack.c.bf16 %v1310, %v1310
  %v1355 = vpack.c.bf16 %v1311, %v1311
  %v1356 = vpack.c.bf16 %v1312, %v1312
  %v1357 = vpack.c.bf16 %v1313, %v1313
  %v1358 = vpack.c.bf16 %v1314, %v1314
  %v1359 = vpack.c.bf16 %v1315, %v1315
  %v1360 = vpack.c.bf16 %v1316, %v1316
  %v1361 = vpack.c.bf16 %v1317, %v1317
  %v1362 = vpack.c.bf16 %v1318, %v1318
  %v1363 = vpack.c.bf16 %v1319, %v1319
  %v1364 = vpack.c.bf16 %v1320, %v1320
  %v1365 = vpack.c.bf16 %v1321, %v1321
  %1366 = vst [vmem:[%s3] sm:$0xf] %v1322
  %1367 = vst [vmem:[%s3 + $0x4] sm:$0xf] %v1323
  %1368 = vst [vmem:[%s3 + $0x8] sm:$0xf] %v1324
  %1369 = vst [vmem:[%s3 + $0xc] sm:$0xf] %v1325
  %1370 = vst [vmem:[%s3 + $0x10] sm:$0xf] %v1326
  %1371 = vst [vmem:[%s3 + $0x14] sm:$0xf] %v1327
  %1372 = vst [vmem:[%s3 + $0x18] sm:$0xf] %v1328
  %1373 = vst [vmem:[%s3 + $0x1c] sm:$0xf] %v1329
  %1374 = vst [vmem:[%s3 + $0x20] sm:$0xf] %v1330
  %1375 = vst [vmem:[%s3 + $0x24] sm:$0xf] %v1331
  %1376 = vst [vmem:[%s3 + $0x28] sm:$0xf] %v1332
  %1377 = vst [vmem:[%s3 + $0x2c] sm:$0xf] %v1333
  %1378 = vst [vmem:[%s3 + $0x30] sm:$0xf] %v1334
  %1379 = vst [vmem:[%s3 + $0x34] sm:$0xf] %v1335
  %1380 = vst [vmem:[%s3 + $0x38] sm:$0xf] %v1336
  %1381 = vst [vmem:[%s3 + $0x3c] sm:$0xf] %v1337
  %1382 = vst [vmem:[%s3 + $0x40] sm:$0xf] %v1338
  %1383 = vst [vmem:[%s3 + $0x44] sm:$0xf] %v1339
  %1384 = vst [vmem:[%s3 + $0x48] sm:$0xf] %v1340
  %1385 = vst [vmem:[%s3 + $0x4c] sm:$0xf] %v1341
  %1386 = vst [vmem:[%s3 + $0x50] sm:$0xf] %v1342
  %1387 = vst [vmem:[%s3 + $0x54] sm:$0xf] %v1343
  %1388 = vst [vmem:[%s3 + $0x58] sm:$0xf] %v1344
  %1389 = vst [vmem:[%s3 + $0x5c] sm:$0xf] %v1345
  %1390 = vst [vmem:[%s3 + $0x60] sm:$0xf] %v1346
  %1391 = vst [vmem:[%s3 + $0x64] sm:$0xf] %v1347
  %1392 = vst [vmem:[%s3 + $0x68] sm:$0xf] %v1348
  %1393 = vst [vmem:[%s3 + $0x6c] sm:$0xf] %v1349
  %1394 = vst [vmem:[%s3 + $0x70] sm:$0xf] %v1350
  %1395 = vst [vmem:[%s3 + $0x74] sm:$0xf] %v1351
  %1396 = vst [vmem:[%s3 + $0x78] sm:$0xf] %v1352
  %1397 = vst [vmem:[%s3 + $0x7c] sm:$0xf] %v1353
  %1398 = vst [vmem:[%s3 + $0x80] sm:$0xf] %v1354
  %1399 = vst [vmem:[%s3 + $0x84] sm:$0xf] %v1355
  %1400 = vst [vmem:[%s3 + $0x88] sm:$0xf] %v1356
  %1401 = vst [vmem:[%s3 + $0x8c] sm:$0xf] %v1357
  %1402 = vst [vmem:[%s3 + $0x90] sm:$0xf] %v1358
  %1403 = vst [vmem:[%s3 + $0x94] sm:$0xf] %v1359
  %1404 = vst [vmem:[%s3 + $0x98] sm:$0xf] %v1360
  %1405 = vst [vmem:[%s3 + $0x9c] sm:$0xf] %v1361
  %1406 = vst [vmem:[%s3 + $0xa0] sm:$0xf] %v1362
  %1407 = vst [vmem:[%s3 + $0xa4] sm:$0xf] %v1363
  %1408 = vst [vmem:[%s3 + $0xa8] sm:$0xf] %v1364
  %1409 = vst [vmem:[%s3 + $0xac] sm:$0xf] %v1365
  // Predicated region
  $region14: #{mlp_critic_forward.5} parent=0 // pred_check
    _
  $region15: #{mlp_critic_forward.5} parent=0 // pred_check_branch
    %1411 = sbr.rel (0) target = $region17
  $region16: #{mlp_critic_forward.5} parent=0 // pred_region
    _
  $region17: #{mlp_critic_forward.5} parent=0 // pred_fallthru
    _
  // Predicated region
  $region18: #{mlp_critic_forward.5} parent=0 // pred_check
    _
  $region19: #{mlp_critic_forward.5} parent=0 // pred_check_branch
    %1413 = sbr.rel (0) target = $region21
  $region20: #{mlp_critic_forward.5} parent=0 // pred_region
    _
  $region21: #{mlp_critic_forward.5} parent=0 // pred_fallthru
    _

// kernel: mlp_critic_forward.7
$region0: #{mlp_critic_forward.7}
  #allocation0 [shape = 'u32[]', space=smem, size = 0x4, offset = 0x4, fixed_abs, tag = 'smem constant byte address 0x4 - core index']
  #allocation1 [shape = 'u32[72,128]{1,0:T(1,128)}', space=vmem, size = 0x9000, scoped, tag = 'internal scratch']
  %s0 = inlined_call_operand.vmem [shape: bf16[16,896], index: 0, kind: input, shape index: {}]
  %s1 = inlined_call_operand.vmem [shape: bf16[896,128], index: 1, kind: input, shape index: {}]
  %s2 = inlined_call_operand.vmem [shape: f32[1,128], index: 2, kind: input, shape index: {}]
  %s3 = inlined_call_operand.vmem [shape: bf16[128,128], index: 3, kind: input, shape index: {}]
  %s4 = inlined_call_operand.vmem [shape: f32[1,128], index: 4, kind: input, shape index: {}]
  %s5 = inlined_call_operand.vmem [shape: bf16[128,128], index: 5, kind: input, shape index: {}]
  %s6 = inlined_call_operand.vmem [shape: f32[1,128], index: 6, kind: input, shape index: {}]
  %s7 = inlined_call_operand.vmem [shape: bf16[128,128], index: 7, kind: input, shape index: {}]
  %s8 = inlined_call_operand.vmem [shape: f32[1,128], index: 8, kind: input, shape index: {}]
  %s9 = inlined_call_operand.vmem [shape: f32[16,128], index: 9, kind: output, shape index: {}]
  %s10 = sld [smem:[#allocation0]]
  $region46: #{mlp_critic_forward.7} parent=0
    _
  %s12 = ssub.s32 1, %s10
  %s13 = scalar_select 0, %s12, %s10
  // Predicated region
  $region2: #{mlp_critic_forward.7} parent=0 // pred_check
    _
  $region3: #{mlp_critic_forward.7} parent=0 // pred_check_branch
    %15 = sbr.rel (0) target = $region5
  $region4: #{mlp_critic_forward.7} parent=0 // pred_region
    _
  $region5: #{mlp_critic_forward.7} parent=0 // pred_fallthru
    _
  // Predicated region
  $region6: #{mlp_critic_forward.7} parent=0 // pred_check
    _
  $region7: #{mlp_critic_forward.7} parent=0 // pred_check_branch
    %17 = sbr.rel (0) target = $region9
  $region8: #{mlp_critic_forward.7} parent=0 // pred_region
    _
  $region9: #{mlp_critic_forward.7} parent=0 // pred_fallthru
    _
  // Predicated region
  $region10: #{mlp_critic_forward.7} parent=0 // pred_check
    _
  $region11: #{mlp_critic_forward.7} parent=0 // pred_check_branch
    %19 = sbr.rel (0) target = $region13
  $region12: #{mlp_critic_forward.7} parent=0 // pred_region
    _
  $region13: #{mlp_critic_forward.7} parent=0 // pred_fallthru
    _
  // Predicated region
  $region14: #{mlp_critic_forward.7} parent=0 // pred_check
    _
  $region15: #{mlp_critic_forward.7} parent=0 // pred_check_branch
    %21 = sbr.rel (0) target = $region17
  $region16: #{mlp_critic_forward.7} parent=0 // pred_region
    _
  $region17: #{mlp_critic_forward.7} parent=0 // pred_fallthru
    _
  // Predicated region
  $region18: #{mlp_critic_forward.7} parent=0 // pred_check
    _
  $region19: #{mlp_critic_forward.7} parent=0 // pred_check_branch
    %23 = sbr.rel (0) target = $region21
  $region20: #{mlp_critic_forward.7} parent=0 // pred_region
    _
  $region21: #{mlp_critic_forward.7} parent=0 // pred_fallthru
    _
  // Predicated region
  $region22: #{mlp_critic_forward.7} parent=0 // pred_check
    _
  $region23: #{mlp_critic_forward.7} parent=0 // pred_check_branch
    %25 = sbr.rel (0) target = $region25
  $region24: #{mlp_critic_forward.7} parent=0 // pred_region
    _
  $region25: #{mlp_critic_forward.7} parent=0 // pred_fallthru
    _
  // Predicated region
  $region26: #{mlp_critic_forward.7} parent=0 // pred_check
    _
  $region27: #{mlp_critic_forward.7} parent=0 // pred_check_branch
    %27 = sbr.rel (0) target = $region29
  $region28: #{mlp_critic_forward.7} parent=0 // pred_region
    _
  $region29: #{mlp_critic_forward.7} parent=0 // pred_fallthru
    _
  // Predicated region
  $region30: #{mlp_critic_forward.7} parent=0 // pred_check
    _
  $region31: #{mlp_critic_forward.7} parent=0 // pred_check_branch
    %29 = sbr.rel (0) target = $region33
  $region32: #{mlp_critic_forward.7} parent=0 // pred_region
    _
  $region33: #{mlp_critic_forward.7} parent=0 // pred_fallthru
    _
  // Predicated region
  $region34: #{mlp_critic_forward.7} parent=0 // pred_check
    _
  $region35: #{mlp_critic_forward.7} parent=0 // pred_check_branch
    %31 = sbr.rel (0) target = $region37
  $region36: #{mlp_critic_forward.7} parent=0 // pred_region
    _
  $region37: #{mlp_critic_forward.7} parent=0 // pred_fallthru
    _
  %v32 = vld [vmem:[%s0] sm:$0xff]
  %v33 = vld [vmem:[%s0 + $0x8] sm:$0xff]
  %v34 = vld [vmem:[%s0 + $0x10] sm:$0xff]
  %v35 = vld [vmem:[%s0 + $0x18] sm:$0xf]
  %v36 = vld [vmem:[%s0 + $0x1c] sm:$0xff]
  %v37 = vld [vmem:[%s0 + $0x24] sm:$0xff]
  %v38 = vld [vmem:[%s0 + $0x2c] sm:$0xff]
  %v39 = vld [vmem:[%s0 + $0x34] sm:$0xf]
  %v40 = vld [vmem:[%s1] sm:$0xf]
  %v41 = vld [vmem:[%s1 + $0x4] sm:$0xf]
  %v42 = vld [vmem:[%s1 + $0x8] sm:$0xf]
  %v43 = vld [vmem:[%s1 + $0xc] sm:$0xf]
  %v44 = vld [vmem:[%s1 + $0x10] sm:$0xf]
  %v45 = vld [vmem:[%s1 + $0x14] sm:$0xf]
  %v46 = vld [vmem:[%s1 + $0x18] sm:$0xf]
  %v47 = vld [vmem:[%s1 + $0x1c] sm:$0xf]
  %v48 = vld [vmem:[%s1 + $0x20] sm:$0xf]
  %v49 = vld [vmem:[%s1 + $0x24] sm:$0xf]
  %v50 = vld [vmem:[%s1 + $0x28] sm:$0xf]
  %v51 = vld [vmem:[%s1 + $0x2c] sm:$0xf]
  %v52 = vld [vmem:[%s1 + $0x30] sm:$0xf]
  %v53 = vld [vmem:[%s1 + $0x34] sm:$0xf]
  %v54 = vld [vmem:[%s1 + $0x38] sm:$0xf]
  %v55 = vld [vmem:[%s1 + $0x3c] sm:$0xf]
  %v56 = vld [vmem:[%s1 + $0x40] sm:$0xf]
  %v57 = vld [vmem:[%s1 + $0x44] sm:$0xf]
  %v58 = vld [vmem:[%s1 + $0x48] sm:$0xf]
  %v59 = vld [vmem:[%s1 + $0x4c] sm:$0xf]
  %v60 = vld [vmem:[%s1 + $0x50] sm:$0xf]
  %v61 = vld [vmem:[%s1 + $0x54] sm:$0xf]
  %v62 = vld [vmem:[%s1 + $0x58] sm:$0xf]
  %v63 = vld [vmem:[%s1 + $0x5c] sm:$0xf]
  %v64 = vld [vmem:[%s1 + $0x60] sm:$0xf]
  %v65 = vld [vmem:[%s1 + $0x64] sm:$0xf]
  %v66 = vld [vmem:[%s1 + $0x68] sm:$0xf]
  %v67 = vld [vmem:[%s1 + $0x6c] sm:$0xf]
  %v68 = vld [vmem:[%s1 + $0x70] sm:$0xf]
  %v69 = vld [vmem:[%s1 + $0x74] sm:$0xf]
  %v70 = vld [vmem:[%s1 + $0x78] sm:$0xf]
  %v71 = vld [vmem:[%s1 + $0x7c] sm:$0xf]
  %v72 = vld [vmem:[%s1 + $0x80] sm:$0xf]
  %v73 = vld [vmem:[%s1 + $0x84] sm:$0xf]
  %v74 = vld [vmem:[%s1 + $0x88] sm:$0xf]
  %v75 = vld [vmem:[%s1 + $0x8c] sm:$0xf]
  %v76 = vld [vmem:[%s1 + $0x90] sm:$0xf]
  %v77 = vld [vmem:[%s1 + $0x94] sm:$0xf]
  %v78 = vld [vmem:[%s1 + $0x98] sm:$0xf]
  %v79 = vld [vmem:[%s1 + $0x9c] sm:$0xf]
  %v80 = vld [vmem:[%s1 + $0xa0] sm:$0xf]
  %v81 = vld [vmem:[%s1 + $0xa4] sm:$0xf]
  %v82 = vld [vmem:[%s1 + $0xa8] sm:$0xf]
  %v83 = vld [vmem:[%s1 + $0xac] sm:$0xf]
  %v84 = vld [vmem:[%s1 + $0xb0] sm:$0xf]
  %v85 = vld [vmem:[%s1 + $0xb4] sm:$0xf]
  %v86 = vld [vmem:[%s1 + $0xb8] sm:$0xf]
  %v87 = vld [vmem:[%s1 + $0xbc] sm:$0xf]
  %v88 = vld [vmem:[%s1 + $0xc0] sm:$0xf]
  %v89 = vld [vmem:[%s1 + $0xc4] sm:$0xf]
  %v90 = vld [vmem:[%s1 + $0xc8] sm:$0xf]
  %v91 = vld [vmem:[%s1 + $0xcc] sm:$0xf]
  %v92 = vld [vmem:[%s1 + $0xd0] sm:$0xf]
  %v93 = vld [vmem:[%s1 + $0xd4] sm:$0xf]
  %v94 = vld [vmem:[%s1 + $0xd8] sm:$0xf]
  %v95 = vld [vmem:[%s1 + $0xdc] sm:$0xf]
  %v96 = vld [vmem:[%s1 + $0xe0] sm:$0xf]
  %v97 = vld [vmem:[%s1 + $0xe4] sm:$0xf]
  %v98 = vld [vmem:[%s1 + $0xe8] sm:$0xf]
  %v99 = vld [vmem:[%s1 + $0xec] sm:$0xf]
  %v100 = vld [vmem:[%s1 + $0xf0] sm:$0xf]
  %v101 = vld [vmem:[%s1 + $0xf4] sm:$0xf]
  %v102 = vld [vmem:[%s1 + $0xf8] sm:$0xf]
  %v103 = vld [vmem:[%s1 + $0xfc] sm:$0xf]
  %v104 = vld [vmem:[%s1 + $0x100] sm:$0xf]
  %v105 = vld [vmem:[%s1 + $0x104] sm:$0xf]
  %v106 = vld [vmem:[%s1 + $0x108] sm:$0xf]
  %v107 = vld [vmem:[%s1 + $0x10c] sm:$0xf]
  %v108 = vld [vmem:[%s1 + $0x110] sm:$0xf]
  %v109 = vld [vmem:[%s1 + $0x114] sm:$0xf]
  %v110 = vld [vmem:[%s1 + $0x118] sm:$0xf]
  %v111 = vld [vmem:[%s1 + $0x11c] sm:$0xf]
  %v112 = vld [vmem:[%s1 + $0x120] sm:$0xf]
  %v113 = vld [vmem:[%s1 + $0x124] sm:$0xf]
  %v114 = vld [vmem:[%s1 + $0x128] sm:$0xf]
  %v115 = vld [vmem:[%s1 + $0x12c] sm:$0xf]
  %v116 = vld [vmem:[%s1 + $0x130] sm:$0xf]
  %v117 = vld [vmem:[%s1 + $0x134] sm:$0xf]
  %v118 = vld [vmem:[%s1 + $0x138] sm:$0xf]
  %v119 = vld [vmem:[%s1 + $0x13c] sm:$0xf]
  %v120 = vld [vmem:[%s1 + $0x140] sm:$0xf]
  %v121 = vld [vmem:[%s1 + $0x144] sm:$0xf]
  %v122 = vld [vmem:[%s1 + $0x148] sm:$0xf]
  %v123 = vld [vmem:[%s1 + $0x14c] sm:$0xf]
  %v124 = vld [vmem:[%s1 + $0x150] sm:$0xf]
  %v125 = vld [vmem:[%s1 + $0x154] sm:$0xf]
  %v126 = vld [vmem:[%s1 + $0x158] sm:$0xf]
  %v127 = vld [vmem:[%s1 + $0x15c] sm:$0xf]
  %v128 = vld [vmem:[%s1 + $0x160] sm:$0xf]
  %v129 = vld [vmem:[%s1 + $0x164] sm:$0xf]
  %v130 = vld [vmem:[%s1 + $0x168] sm:$0xf]
  %v131 = vld [vmem:[%s1 + $0x16c] sm:$0xf]
  %v132 = vld [vmem:[%s1 + $0x170] sm:$0xf]
  %v133 = vld [vmem:[%s1 + $0x174] sm:$0xf]
  %v134 = vld [vmem:[%s1 + $0x178] sm:$0xf]
  %v135 = vld [vmem:[%s1 + $0x17c] sm:$0xf]
  %v136 = vld [vmem:[%s1 + $0x180] sm:$0xf]
  %v137 = vld [vmem:[%s1 + $0x184] sm:$0xf]
  %v138 = vld [vmem:[%s1 + $0x188] sm:$0xf]
  %v139 = vld [vmem:[%s1 + $0x18c] sm:$0xf]
  %v140 = vld [vmem:[%s1 + $0x190] sm:$0xf]
  %v141 = vld [vmem:[%s1 + $0x194] sm:$0xf]
  %v142 = vld [vmem:[%s1 + $0x198] sm:$0xf]
  %v143 = vld [vmem:[%s1 + $0x19c] sm:$0xf]
  %v144 = vld [vmem:[%s1 + $0x1a0] sm:$0xf]
  %v145 = vld [vmem:[%s1 + $0x1a4] sm:$0xf]
  %v146 = vld [vmem:[%s1 + $0x1a8] sm:$0xf]
  %v147 = vld [vmem:[%s1 + $0x1ac] sm:$0xf]
  %v148 = vld [vmem:[%s1 + $0x1b0] sm:$0xf]
  %v149 = vld [vmem:[%s1 + $0x1b4] sm:$0xf]
  %v150 = vld [vmem:[%s1 + $0x1b8] sm:$0xf]
  %v151 = vld [vmem:[%s1 + $0x1bc] sm:$0xf]
  %v152 = vld [vmem:[%s2] sm:$0x1]
  %v154 = vperm.slane %v152, 0
  %v164 = vunpack.c.l.b16 %v32
  %v165 = vunpack.c.h.b16 %v32
  %v166 = vunpack.c.l.b16 %v33
  %v167 = vunpack.c.h.b16 %v33
  %v168 = vunpack.c.l.b16 %v34
  %v169 = vunpack.c.h.b16 %v34
  %v170 = vunpack.c.l.b16 %v35
  %v171 = vunpack.c.l.b16 %v36
  %v172 = vunpack.c.h.b16 %v36
  %v173 = vunpack.c.l.b16 %v37
  %v174 = vunpack.c.h.b16 %v37
  %v175 = vunpack.c.l.b16 %v38
  %v176 = vunpack.c.h.b16 %v38
  %v177 = vunpack.c.l.b16 %v39
  %v178 = vpack.c.b16 %v171, %v164
  %v179 = vpack.c.b16 %v172, %v165
  %v180 = vpack.c.b16 %v173, %v166
  %v181 = vpack.c.b16 %v174, %v167
  %v182 = vpack.c.b16 %v175, %v168
  %v183 = vpack.c.b16 %v176, %v169
  %v184 = vpack.c.b16 %v177, %v170
  %v304 = vunpack.c.l.b16 %v40
  %v305 = vunpack.c.l.b16 %v41
  %v306 = vunpack.c.l.b16 %v42
  %v307 = vunpack.c.l.b16 %v43
  %v308 = vunpack.c.l.b16 %v44
  %v309 = vunpack.c.l.b16 %v45
  %v310 = vunpack.c.l.b16 %v46
  %v311 = vunpack.c.l.b16 %v47
  %v312 = vunpack.c.l.b16 %v48
  %v313 = vunpack.c.l.b16 %v49
  %v314 = vunpack.c.l.b16 %v50
  %v315 = vunpack.c.l.b16 %v51
  %v316 = vunpack.c.l.b16 %v52
  %v317 = vunpack.c.l.b16 %v53
  %v318 = vunpack.c.l.b16 %v54
  %v319 = vunpack.c.l.b16 %v55
  %v320 = vunpack.c.l.b16 %v56
  %v321 = vunpack.c.l.b16 %v57
  %v322 = vunpack.c.l.b16 %v58
  %v323 = vunpack.c.l.b16 %v59
  %v324 = vunpack.c.l.b16 %v60
  %v325 = vunpack.c.l.b16 %v61
  %v326 = vunpack.c.l.b16 %v62
  %v327 = vunpack.c.l.b16 %v63
  %v328 = vunpack.c.l.b16 %v64
  %v329 = vunpack.c.l.b16 %v65
  %v330 = vunpack.c.l.b16 %v66
  %v331 = vunpack.c.l.b16 %v67
  %v332 = vunpack.c.l.b16 %v68
  %v333 = vunpack.c.l.b16 %v69
  %v334 = vunpack.c.l.b16 %v70
  %v335 = vunpack.c.l.b16 %v71
  %v336 = vunpack.c.l.b16 %v72
  %v337 = vunpack.c.l.b16 %v73
  %v338 = vunpack.c.l.b16 %v74
  %v339 = vunpack.c.l.b16 %v75
  %v340 = vunpack.c.l.b16 %v76
  %v341 = vunpack.c.l.b16 %v77
  %v342 = vunpack.c.l.b16 %v78
  %v343 = vunpack.c.l.b16 %v79
  %v344 = vunpack.c.l.b16 %v80
  %v345 = vunpack.c.l.b16 %v81
  %v346 = vunpack.c.l.b16 %v82
  %v347 = vunpack.c.l.b16 %v83
  %v348 = vunpack.c.l.b16 %v84
  %v349 = vunpack.c.l.b16 %v85
  %v350 = vunpack.c.l.b16 %v86
  %v351 = vunpack.c.l.b16 %v87
  %v352 = vunpack.c.l.b16 %v88
  %v353 = vunpack.c.l.b16 %v89
  %v354 = vunpack.c.l.b16 %v90
  %v355 = vunpack.c.l.b16 %v91
  %v356 = vunpack.c.l.b16 %v92
  %v357 = vunpack.c.l.b16 %v93
  %v358 = vunpack.c.l.b16 %v94
  %v359 = vunpack.c.l.b16 %v95
  %v360 = vunpack.c.l.b16 %v96
  %v361 = vunpack.c.l.b16 %v97
  %v362 = vunpack.c.l.b16 %v98
  %v363 = vunpack.c.l.b16 %v99
  %v364 = vunpack.c.l.b16 %v100
  %v365 = vunpack.c.l.b16 %v101
  %v366 = vunpack.c.l.b16 %v102
  %v367 = vunpack.c.l.b16 %v103
  %v368 = vunpack.c.l.b16 %v104
  %v369 = vunpack.c.l.b16 %v105
  %v370 = vunpack.c.l.b16 %v106
  %v371 = vunpack.c.l.b16 %v107
  %v372 = vunpack.c.l.b16 %v108
  %v373 = vunpack.c.l.b16 %v109
  %v374 = vunpack.c.l.b16 %v110
  %v375 = vunpack.c.l.b16 %v111
  %v376 = vunpack.c.l.b16 %v112
  %v377 = vunpack.c.l.b16 %v113
  %v378 = vunpack.c.l.b16 %v114
  %v379 = vunpack.c.l.b16 %v115
  %v380 = vunpack.c.l.b16 %v116
  %v381 = vunpack.c.l.b16 %v117
  %v382 = vunpack.c.l.b16 %v118
  %v383 = vunpack.c.l.b16 %v119
  %v384 = vunpack.c.l.b16 %v120
  %v385 = vunpack.c.l.b16 %v121
  %v386 = vunpack.c.l.b16 %v122
  %v387 = vunpack.c.l.b16 %v123
  %v388 = vunpack.c.l.b16 %v124
  %v389 = vunpack.c.l.b16 %v125
  %v390 = vunpack.c.l.b16 %v126
  %v391 = vunpack.c.l.b16 %v127
  %v392 = vunpack.c.l.b16 %v128
  %v393 = vunpack.c.l.b16 %v129
  %v394 = vunpack.c.l.b16 %v130
  %v395 = vunpack.c.l.b16 %v131
  %v396 = vunpack.c.l.b16 %v132
  %v397 = vunpack.c.l.b16 %v133
  %v398 = vunpack.c.l.b16 %v134
  %v399 = vunpack.c.l.b16 %v135
  %v400 = vunpack.c.l.b16 %v136
  %v401 = vunpack.c.l.b16 %v137
  %v402 = vunpack.c.l.b16 %v138
  %v403 = vunpack.c.l.b16 %v139
  %v404 = vunpack.c.l.b16 %v140
  %v405 = vunpack.c.l.b16 %v141
  %v406 = vunpack.c.l.b16 %v142
  %v407 = vunpack.c.l.b16 %v143
  %v408 = vunpack.c.l.b16 %v144
  %v409 = vunpack.c.l.b16 %v145
  %v410 = vunpack.c.l.b16 %v146
  %v411 = vunpack.c.l.b16 %v147
  %v412 = vunpack.c.l.b16 %v148
  %v413 = vunpack.c.l.b16 %v149
  %v414 = vunpack.c.l.b16 %v150
  %v415 = vunpack.c.l.b16 %v151
  %v416 = vpack.c.b16 %v305, %v304
  %v417 = vpack.c.b16 %v307, %v306
  %v418 = vpack.c.b16 %v309, %v308
  %v419 = vpack.c.b16 %v311, %v310
  %v420 = vpack.c.b16 %v313, %v312
  %v421 = vpack.c.b16 %v315, %v314
  %v422 = vpack.c.b16 %v317, %v316
  %v423 = vpack.c.b16 %v319, %v318
  %v424 = vpack.c.b16 %v321, %v320
  %v425 = vpack.c.b16 %v323, %v322
  %v426 = vpack.c.b16 %v325, %v324
  %v427 = vpack.c.b16 %v327, %v326
  %v428 = vpack.c.b16 %v329, %v328
  %v429 = vpack.c.b16 %v331, %v330
  %v430 = vpack.c.b16 %v333, %v332
  %v431 = vpack.c.b16 %v335, %v334
  %v432 = vpack.c.b16 %v337, %v336
  %v433 = vpack.c.b16 %v339, %v338
  %v434 = vpack.c.b16 %v341, %v340
  %v435 = vpack.c.b16 %v343, %v342
  %v436 = vpack.c.b16 %v345, %v344
  %v437 = vpack.c.b16 %v347, %v346
  %v438 = vpack.c.b16 %v349, %v348
  %v439 = vpack.c.b16 %v351, %v350
  %v440 = vpack.c.b16 %v353, %v352
  %v441 = vpack.c.b16 %v355, %v354
  %v442 = vpack.c.b16 %v357, %v356
  %v443 = vpack.c.b16 %v359, %v358
  %v444 = vpack.c.b16 %v361, %v360
  %v445 = vpack.c.b16 %v363, %v362
  %v446 = vpack.c.b16 %v365, %v364
  %v447 = vpack.c.b16 %v367, %v366
  %v448 = vpack.c.b16 %v369, %v368
  %v449 = vpack.c.b16 %v371, %v370
  %v450 = vpack.c.b16 %v373, %v372
  %v451 = vpack.c.b16 %v375, %v374
  %v452 = vpack.c.b16 %v377, %v376
  %v453 = vpack.c.b16 %v379, %v378
  %v454 = vpack.c.b16 %v381, %v380
  %v455 = vpack.c.b16 %v383, %v382
  %v456 = vpack.c.b16 %v385, %v384
  %v457 = vpack.c.b16 %v387, %v386
  %v458 = vpack.c.b16 %v389, %v388
  %v459 = vpack.c.b16 %v391, %v390
  %v460 = vpack.c.b16 %v393, %v392
  %v461 = vpack.c.b16 %v395, %v394
  %v462 = vpack.c.b16 %v397, %v396
  %v463 = vpack.c.b16 %v399, %v398
  %v464 = vpack.c.b16 %v401, %v400
  %v465 = vpack.c.b16 %v403, %v402
  %v466 = vpack.c.b16 %v405, %v404
  %v467 = vpack.c.b16 %v407, %v406
  %v468 = vpack.c.b16 %v409, %v408
  %v469 = vpack.c.b16 %v411, %v410
  %v470 = vpack.c.b16 %v413, %v412
  %v471 = vpack.c.b16 %v415, %v414
  %528 = vmatpush.bf16.msra.mxu0 %v423
  %529 = vmatpush.bf16.msra.mxu0 %v422
  %530 = vmatpush.bf16.msra.mxu0 %v421
  %531 = vmatpush.bf16.msra.mxu0 %v420
  %532 = vmatpush.bf16.msra.mxu0 %v419
  %533 = vmatpush.bf16.msra.mxu0 %v418
  %534 = vmatpush.bf16.msra.mxu0 %v417
  %535 = vmatpush.bf16.msra.mxu0 %v416
  %536 = vmatmul.bf16.gmra.mxu0 %v178
  %v537 = vpop.f32.mrf.mxu0
  %v538 = vadd.f32 %v154, %v537
  %v539 = vpop.f32.mrf.mxu0
  %v540 = vadd.f32 %v154, %v539
  %541 = vdwg.mxu0
  %542 = vmatpush.bf16.msra.mxu0 %v431
  %543 = vmatpush.bf16.msra.mxu0 %v430
  %544 = vmatpush.bf16.msra.mxu0 %v429
  %545 = vmatpush.bf16.msra.mxu0 %v428
  %546 = vmatpush.bf16.msra.mxu0 %v427
  %547 = vmatpush.bf16.msra.mxu0 %v426
  %548 = vmatpush.bf16.msra.mxu0 %v425
  %549 = vmatpush.bf16.msra.mxu0 %v424
  %550 = vmatmul.bf16.gmra.mxu0 %v179
  %v551 = vpop.f32.mrf.mxu0
  %v552 = vadd.f32 %v538, %v551
  %v553 = vpop.f32.mrf.mxu0
  %v554 = vadd.f32 %v540, %v553
  %555 = vdwg.mxu0
  %556 = vmatpush.bf16.msra.mxu0 %v439
  %557 = vmatpush.bf16.msra.mxu0 %v438
  %558 = vmatpush.bf16.msra.mxu0 %v437
  %559 = vmatpush.bf16.msra.mxu0 %v436
  %560 = vmatpush.bf16.msra.mxu0 %v435
  %561 = vmatpush.bf16.msra.mxu0 %v434
  %562 = vmatpush.bf16.msra.mxu0 %v433
  %563 = vmatpush.bf16.msra.mxu0 %v432
  %564 = vmatmul.bf16.gmra.mxu0 %v180
  %v565 = vpop.f32.mrf.mxu0
  %v566 = vadd.f32 %v552, %v565
  %v567 = vpop.f32.mrf.mxu0
  %v568 = vadd.f32 %v554, %v567
  %569 = vdwg.mxu0
  %570 = vmatpush.bf16.msra.mxu0 %v447
  %571 = vmatpush.bf16.msra.mxu0 %v446
  %572 = vmatpush.bf16.msra.mxu0 %v445
  %573 = vmatpush.bf16.msra.mxu0 %v444
  %574 = vmatpush.bf16.msra.mxu0 %v443
  %575 = vmatpush.bf16.msra.mxu0 %v442
  %576 = vmatpush.bf16.msra.mxu0 %v441
  %577 = vmatpush.bf16.msra.mxu0 %v440
  %578 = vmatmul.bf16.gmra.mxu0 %v181
  %v579 = vpop.f32.mrf.mxu0
  %v580 = vadd.f32 %v566, %v579
  %v581 = vpop.f32.mrf.mxu0
  %v582 = vadd.f32 %v568, %v581
  %583 = vdwg.mxu0
  %584 = vmatpush.bf16.msra.mxu0 %v455
  %585 = vmatpush.bf16.msra.mxu0 %v454
  %586 = vmatpush.bf16.msra.mxu0 %v453
  %587 = vmatpush.bf16.msra.mxu0 %v452
  %588 = vmatpush.bf16.msra.mxu0 %v451
  %589 = vmatpush.bf16.msra.mxu0 %v450
  %590 = vmatpush.bf16.msra.mxu0 %v449
  %591 = vmatpush.bf16.msra.mxu0 %v448
  %592 = vmatmul.bf16.gmra.mxu0 %v182
  %v593 = vpop.f32.mrf.mxu0
  %v594 = vadd.f32 %v580, %v593
  %v595 = vpop.f32.mrf.mxu0
  %v596 = vadd.f32 %v582, %v595
  %597 = vdwg.mxu0
  %598 = vmatpush.bf16.msra.mxu0 %v463
  %599 = vmatpush.bf16.msra.mxu0 %v462
  %600 = vmatpush.bf16.msra.mxu0 %v461
  %601 = vmatpush.bf16.msra.mxu0 %v460
  %602 = vmatpush.bf16.msra.mxu0 %v459
  %603 = vmatpush.bf16.msra.mxu0 %v458
  %604 = vmatpush.bf16.msra.mxu0 %v457
  %605 = vmatpush.bf16.msra.mxu0 %v456
  %606 = vmatmul.bf16.gmra.mxu0 %v183
  %v607 = vpop.f32.mrf.mxu0
  %v608 = vadd.f32 %v594, %v607
  %v609 = vpop.f32.mrf.mxu0
  %v610 = vadd.f32 %v596, %v609
  %611 = vdwg.mxu0
  %612 = vmatpush.bf16.msra.mxu0 %v471
  %613 = vmatpush.bf16.msra.mxu0 %v470
  %614 = vmatpush.bf16.msra.mxu0 %v469
  %615 = vmatpush.bf16.msra.mxu0 %v468
  %616 = vmatpush.bf16.msra.mxu0 %v467
  %617 = vmatpush.bf16.msra.mxu0 %v466
  %618 = vmatpush.bf16.msra.mxu0 %v465
  %619 = vmatpush.bf16.msra.mxu0 %v464
  %620 = vmatmul.bf16.gmra.mxu0 %v184
  %v621 = vpop.f32.mrf.mxu0
  %v622 = vadd.f32 %v608, %v621
  %v623 = vpop.f32.mrf.mxu0
  %v624 = vadd.f32 %v610, %v623
  %625 = vdwg.mxu0
  %v626 = vpack.c.bf16 %v624, %v622
  %v627 = vld [vmem:[%s3] sm:$0xf]
  %v628 = vld [vmem:[%s3 + $0x4] sm:$0xf]
  %v629 = vld [vmem:[%s3 + $0x8] sm:$0xf]
  %v630 = vld [vmem:[%s3 + $0xc] sm:$0xf]
  %v631 = vld [vmem:[%s3 + $0x10] sm:$0xf]
  %v632 = vld [vmem:[%s3 + $0x14] sm:$0xf]
  %v633 = vld [vmem:[%s3 + $0x18] sm:$0xf]
  %v634 = vld [vmem:[%s3 + $0x1c] sm:$0xf]
  %v635 = vld [vmem:[%s3 + $0x20] sm:$0xf]
  %v636 = vld [vmem:[%s3 + $0x24] sm:$0xf]
  %v637 = vld [vmem:[%s3 + $0x28] sm:$0xf]
  %v638 = vld [vmem:[%s3 + $0x2c] sm:$0xf]
  %v639 = vld [vmem:[%s3 + $0x30] sm:$0xf]
  %v640 = vld [vmem:[%s3 + $0x34] sm:$0xf]
  %v641 = vld [vmem:[%s3 + $0x38] sm:$0xf]
  %v642 = vld [vmem:[%s3 + $0x3c] sm:$0xf]
  %v643 = vld [vmem:[%s4] sm:$0x1]
  %v645 = vperm.slane %v643, 0
  %v663 = vunpack.c.l.b16 %v627
  %v664 = vunpack.c.l.b16 %v628
  %v665 = vunpack.c.l.b16 %v629
  %v666 = vunpack.c.l.b16 %v630
  %v667 = vunpack.c.l.b16 %v631
  %v668 = vunpack.c.l.b16 %v632
  %v669 = vunpack.c.l.b16 %v633
  %v670 = vunpack.c.l.b16 %v634
  %v671 = vunpack.c.l.b16 %v635
  %v672 = vunpack.c.l.b16 %v636
  %v673 = vunpack.c.l.b16 %v637
  %v674 = vunpack.c.l.b16 %v638
  %v675 = vunpack.c.l.b16 %v639
  %v676 = vunpack.c.l.b16 %v640
  %v677 = vunpack.c.l.b16 %v641
  %v678 = vunpack.c.l.b16 %v642
  %v679 = vpack.c.b16 %v664, %v663
  %v680 = vpack.c.b16 %v666, %v665
  %v681 = vpack.c.b16 %v668, %v667
  %v682 = vpack.c.b16 %v670, %v669
  %v683 = vpack.c.b16 %v672, %v671
  %v684 = vpack.c.b16 %v674, %v673
  %v685 = vpack.c.b16 %v676, %v675
  %v686 = vpack.c.b16 %v678, %v677
  %695 = vmatpush.bf16.msra.mxu0 %v686
  %696 = vmatpush.bf16.msra.mxu0 %v685
  %697 = vmatpush.bf16.msra.mxu0 %v684
  %698 = vmatpush.bf16.msra.mxu0 %v683
  %699 = vmatpush.bf16.msra.mxu0 %v682
  %700 = vmatpush.bf16.msra.mxu0 %v681
  %701 = vmatpush.bf16.msra.mxu0 %v680
  %702 = vmatpush.bf16.msra.mxu0 %v679
  %703 = vmatmul.bf16.gmra.mxu0 %v626
  %v704 = vpop.f32.mrf.mxu0
  %v705 = vadd.f32 %v645, %v704
  %v706 = vpop.f32.mrf.mxu0
  %v707 = vadd.f32 %v645, %v706
  %708 = vdwg.mxu0
  %v709 = vtanh.pop %v705
  %v710 = vtanh.pop %v707
  %v711 = vpack.c.bf16 %v710, %v709
  %v712 = vld [vmem:[%s5] sm:$0xf]
  %v713 = vld [vmem:[%s5 + $0x4] sm:$0xf]
  %v714 = vld [vmem:[%s5 + $0x8] sm:$0xf]
  %v715 = vld [vmem:[%s5 + $0xc] sm:$0xf]
  %v716 = vld [vmem:[%s5 + $0x10] sm:$0xf]
  %v717 = vld [vmem:[%s5 + $0x14] sm:$0xf]
  %v718 = vld [vmem:[%s5 + $0x18] sm:$0xf]
  %v719 = vld [vmem:[%s5 + $0x1c] sm:$0xf]
  %v720 = vld [vmem:[%s5 + $0x20] sm:$0xf]
  %v721 = vld [vmem:[%s5 + $0x24] sm:$0xf]
  %v722 = vld [vmem:[%s5 + $0x28] sm:$0xf]
  %v723 = vld [vmem:[%s5 + $0x2c] sm:$0xf]
  %v724 = vld [vmem:[%s5 + $0x30] sm:$0xf]
  %v725 = vld [vmem:[%s5 + $0x34] sm:$0xf]
  %v726 = vld [vmem:[%s5 + $0x38] sm:$0xf]
  %v727 = vld [vmem:[%s5 + $0x3c] sm:$0xf]
  %v728 = vld [vmem:[%s6] sm:$0x1]
  %v730 = vperm.slane %v728, 0
  %v748 = vunpack.c.l.b16 %v712
  %v749 = vunpack.c.l.b16 %v713
  %v750 = vunpack.c.l.b16 %v714
  %v751 = vunpack.c.l.b16 %v715
  %v752 = vunpack.c.l.b16 %v716
  %v753 = vunpack.c.l.b16 %v717
  %v754 = vunpack.c.l.b16 %v718
  %v755 = vunpack.c.l.b16 %v719
  %v756 = vunpack.c.l.b16 %v720
  %v757 = vunpack.c.l.b16 %v721
  %v758 = vunpack.c.l.b16 %v722
  %v759 = vunpack.c.l.b16 %v723
  %v760 = vunpack.c.l.b16 %v724
  %v761 = vunpack.c.l.b16 %v725
  %v762 = vunpack.c.l.b16 %v726
  %v763 = vunpack.c.l.b16 %v727
  %v764 = vpack.c.b16 %v749, %v748
  %v765 = vpack.c.b16 %v751, %v750
  %v766 = vpack.c.b16 %v753, %v752
  %v767 = vpack.c.b16 %v755, %v754
  %v768 = vpack.c.b16 %v757, %v756
  %v769 = vpack.c.b16 %v759, %v758
  %v770 = vpack.c.b16 %v761, %v760
  %v771 = vpack.c.b16 %v763, %v762
  %780 = vmatpush.bf16.msra.mxu0 %v771
  %781 = vmatpush.bf16.msra.mxu0 %v770
  %782 = vmatpush.bf16.msra.mxu0 %v769
  %783 = vmatpush.bf16.msra.mxu0 %v768
  %784 = vmatpush.bf16.msra.mxu0 %v767
  %785 = vmatpush.bf16.msra.mxu0 %v766
  %786 = vmatpush.bf16.msra.mxu0 %v765
  %787 = vmatpush.bf16.msra.mxu0 %v764
  %788 = vmatmul.bf16.gmra.mxu0 %v711
  %v789 = vpop.f32.mrf.mxu0
  %v790 = vadd.f32 %v730, %v789
  %v791 = vpop.f32.mrf.mxu0
  %v792 = vadd.f32 %v730, %v791
  %793 = vdwg.mxu0
  %v794 = vtanh.pop %v790
  %v795 = vtanh.pop %v792
  %v796 = vpack.c.bf16 %v795, %v794
  %v797 = vld [vmem:[%s7] sm:$0xf]
  %v798 = vld [vmem:[%s7 + $0x4] sm:$0xf]
  %v799 = vld [vmem:[%s7 + $0x8] sm:$0xf]
  %v800 = vld [vmem:[%s7 + $0xc] sm:$0xf]
  %v801 = vld [vmem:[%s7 + $0x10] sm:$0xf]
  %v802 = vld [vmem:[%s7 + $0x14] sm:$0xf]
  %v803 = vld [vmem:[%s7 + $0x18] sm:$0xf]
  %v804 = vld [vmem:[%s7 + $0x1c] sm:$0xf]
  %v805 = vld [vmem:[%s7 + $0x20] sm:$0xf]
  %v806 = vld [vmem:[%s7 + $0x24] sm:$0xf]
  %v807 = vld [vmem:[%s7 + $0x28] sm:$0xf]
  %v808 = vld [vmem:[%s7 + $0x2c] sm:$0xf]
  %v809 = vld [vmem:[%s7 + $0x30] sm:$0xf]
  %v810 = vld [vmem:[%s7 + $0x34] sm:$0xf]
  %v811 = vld [vmem:[%s7 + $0x38] sm:$0xf]
  %v812 = vld [vmem:[%s7 + $0x3c] sm:$0xf]
  %v813 = vld [vmem:[%s8] sm:$0x1]
  %v815 = vperm.slane %v813, 0
  %v833 = vunpack.c.l.b16 %v797
  %v834 = vunpack.c.l.b16 %v798
  %v835 = vunpack.c.l.b16 %v799
  %v836 = vunpack.c.l.b16 %v800
  %v837 = vunpack.c.l.b16 %v801
  %v838 = vunpack.c.l.b16 %v802
  %v839 = vunpack.c.l.b16 %v803
  %v840 = vunpack.c.l.b16 %v804
  %v841 = vunpack.c.l.b16 %v805
  %v842 = vunpack.c.l.b16 %v806
  %v843 = vunpack.c.l.b16 %v807
  %v844 = vunpack.c.l.b16 %v808
  %v845 = vunpack.c.l.b16 %v809
  %v846 = vunpack.c.l.b16 %v810
  %v847 = vunpack.c.l.b16 %v811
  %v848 = vunpack.c.l.b16 %v812
  %v849 = vpack.c.b16 %v834, %v833
  %v850 = vpack.c.b16 %v836, %v835
  %v851 = vpack.c.b16 %v838, %v837
  %v852 = vpack.c.b16 %v840, %v839
  %v853 = vpack.c.b16 %v842, %v841
  %v854 = vpack.c.b16 %v844, %v843
  %v855 = vpack.c.b16 %v846, %v845
  %v856 = vpack.c.b16 %v848, %v847
  %865 = vmatpush.bf16.msra.mxu0 %v856
  %866 = vmatpush.bf16.msra.mxu0 %v855
  %867 = vmatpush.bf16.msra.mxu0 %v854
  %868 = vmatpush.bf16.msra.mxu0 %v853
  %869 = vmatpush.bf16.msra.mxu0 %v852
  %870 = vmatpush.bf16.msra.mxu0 %v851
  %871 = vmatpush.bf16.msra.mxu0 %v850
  %872 = vmatpush.bf16.msra.mxu0 %v849
  %873 = vmatmul.bf16.gmra.mxu0 %v796
  %v874 = vpop.f32.mrf.mxu0
  %v875 = vadd.f32 %v815, %v874
  %v876 = vpop.f32.mrf.mxu0
  %v877 = vadd.f32 %v815, %v876
  %878 = vdwg.mxu0
  %879 = vst [vmem:[%s9] sm:$0xff] %v875
  %880 = vst [vmem:[%s9 + $0x8] sm:$0xff] %v877
  // Predicated region
  $region38: #{mlp_critic_forward.7} parent=0 // pred_check
    _
  $region39: #{mlp_critic_forward.7} parent=0 // pred_check_branch
    %882 = sbr.rel (0) target = $region41
  $region40: #{mlp_critic_forward.7} parent=0 // pred_region
    _
  $region41: #{mlp_critic_forward.7} parent=0 // pred_fallthru
    _
  // Predicated region
  $region42: #{mlp_critic_forward.7} parent=0 // pred_check
    _
  $region43: #{mlp_critic_forward.7} parent=0 // pred_check_branch
    %884 = sbr.rel (0) target = $region45
  $region44: #{mlp_critic_forward.7} parent=0 // pred_region
    _
  $region45: #{mlp_critic_forward.7} parent=0 // pred_fallthru
    _

// kernel: mlp_critic_forward.6
$region0: #{mlp_critic_forward.6}
  #allocation0 [shape = 'u32[]', space=smem, size = 0x4, offset = 0x4, fixed_abs, tag = 'smem constant byte address 0x4 - core index']
  #allocation1 [shape = 'u32[72,128]{1,0:T(1,128)}', space=vmem, size = 0x9000, scoped, tag = 'internal scratch']
  %s0 = inlined_call_operand.vmem [shape: bf16[64,896], index: 0, kind: input, shape index: {}]
  %s1 = inlined_call_operand.vmem [shape: bf16[896,128], index: 1, kind: input, shape index: {}]
  %s2 = inlined_call_operand.vmem [shape: f32[1,128], index: 2, kind: input, shape index: {}]
  %s3 = inlined_call_operand.vmem [shape: bf16[64,128], index: 3, kind: output, shape index: {}]
  %s4 = sld [smem:[#allocation0]]
  $region22: #{mlp_critic_forward.6} parent=0
    _
  %s6 = ssub.s32 1, %s4
  %s7 = scalar_select 0, %s6, %s4
  // Predicated region
  $region2: #{mlp_critic_forward.6} parent=0 // pred_check
    _
  $region3: #{mlp_critic_forward.6} parent=0 // pred_check_branch
    %9 = sbr.rel (0) target = $region5
  $region4: #{mlp_critic_forward.6} parent=0 // pred_region
    _
  $region5: #{mlp_critic_forward.6} parent=0 // pred_fallthru
    _
  // Predicated region
  $region6: #{mlp_critic_forward.6} parent=0 // pred_check
    _
  $region7: #{mlp_critic_forward.6} parent=0 // pred_check_branch
    %11 = sbr.rel (0) target = $region9
  $region8: #{mlp_critic_forward.6} parent=0 // pred_region
    _
  $region9: #{mlp_critic_forward.6} parent=0 // pred_fallthru
    _
  // Predicated region
  $region10: #{mlp_critic_forward.6} parent=0 // pred_check
    _
  $region11: #{mlp_critic_forward.6} parent=0 // pred_check_branch
    %13 = sbr.rel (0) target = $region13
  $region12: #{mlp_critic_forward.6} parent=0 // pred_region
    _
  $region13: #{mlp_critic_forward.6} parent=0 // pred_fallthru
    _
  %v14 = vld [vmem:[%s0] sm:$0xff]
  %v15 = vld [vmem:[%s0 + $0x8] sm:$0xff]
  %v16 = vld [vmem:[%s0 + $0x10] sm:$0xff]
  %v17 = vld [vmem:[%s0 + $0x18] sm:$0xf]
  %v18 = vld [vmem:[%s0 + $0x1c] sm:$0xff]
  %v19 = vld [vmem:[%s0 + $0x24] sm:$0xff]
  %v20 = vld [vmem:[%s0 + $0x2c] sm:$0xff]
  %v21 = vld [vmem:[%s0 + $0x34] sm:$0xf]
  %v22 = vld [vmem:[%s0 + $0x38] sm:$0xff]
  %v23 = vld [vmem:[%s0 + $0x40] sm:$0xff]
  %v24 = vld [vmem:[%s0 + $0x48] sm:$0xff]
  %v25 = vld [vmem:[%s0 + $0x50] sm:$0xf]
  %v26 = vld [vmem:[%s0 + $0x54] sm:$0xff]
  %v27 = vld [vmem:[%s0 + $0x5c] sm:$0xff]
  %v28 = vld [vmem:[%s0 + $0x64] sm:$0xff]
  %v29 = vld [vmem:[%s0 + $0x6c] sm:$0xf]
  %v30 = vld [vmem:[%s0 + $0x70] sm:$0xff]
  %v31 = vld [vmem:[%s0 + $0x78] sm:$0xff]
  %v32 = vld [vmem:[%s0 + $0x80] sm:$0xff]
  %v33 = vld [vmem:[%s0 + $0x88] sm:$0xf]
  %v34 = vld [vmem:[%s0 + $0x8c] sm:$0xff]
  %v35 = vld [vmem:[%s0 + $0x94] sm:$0xff]
  %v36 = vld [vmem:[%s0 + $0x9c] sm:$0xff]
  %v37 = vld [vmem:[%s0 + $0xa4] sm:$0xf]
  %v38 = vld [vmem:[%s0 + $0xa8] sm:$0xff]
  %v39 = vld [vmem:[%s0 + $0xb0] sm:$0xff]
  %v40 = vld [vmem:[%s0 + $0xb8] sm:$0xff]
  %v41 = vld [vmem:[%s0 + $0xc0] sm:$0xf]
  %v42 = vld [vmem:[%s0 + $0xc4] sm:$0xff]
  %v43 = vld [vmem:[%s0 + $0xcc] sm:$0xff]
  %v44 = vld [vmem:[%s0 + $0xd4] sm:$0xff]
  %v45 = vld [vmem:[%s0 + $0xdc] sm:$0xf]
  %v46 = vld [vmem:[%s1] sm:$0xf]
  %v47 = vld [vmem:[%s1 + $0x4] sm:$0xf]
  %v48 = vld [vmem:[%s1 + $0x8] sm:$0xf]
  %v49 = vld [vmem:[%s1 + $0xc] sm:$0xf]
  %v50 = vld [vmem:[%s1 + $0x10] sm:$0xf]
  %v51 = vld [vmem:[%s1 + $0x14] sm:$0xf]
  %v52 = vld [vmem:[%s1 + $0x18] sm:$0xf]
  %v53 = vld [vmem:[%s1 + $0x1c] sm:$0xf]
  %v54 = vld [vmem:[%s1 + $0x20] sm:$0xf]
  %v55 = vld [vmem:[%s1 + $0x24] sm:$0xf]
  %v56 = vld [vmem:[%s1 + $0x28] sm:$0xf]
  %v57 = vld [vmem:[%s1 + $0x2c] sm:$0xf]
  %v58 = vld [vmem:[%s1 + $0x30] sm:$0xf]
  %v59 = vld [vmem:[%s1 + $0x34] sm:$0xf]
  %v60 = vld [vmem:[%s1 + $0x38] sm:$0xf]
  %v61 = vld [vmem:[%s1 + $0x3c] sm:$0xf]
  %v62 = vld [vmem:[%s1 + $0x40] sm:$0xf]
  %v63 = vld [vmem:[%s1 + $0x44] sm:$0xf]
  %v64 = vld [vmem:[%s1 + $0x48] sm:$0xf]
  %v65 = vld [vmem:[%s1 + $0x4c] sm:$0xf]
  %v66 = vld [vmem:[%s1 + $0x50] sm:$0xf]
  %v67 = vld [vmem:[%s1 + $0x54] sm:$0xf]
  %v68 = vld [vmem:[%s1 + $0x58] sm:$0xf]
  %v69 = vld [vmem:[%s1 + $0x5c] sm:$0xf]
  %v70 = vld [vmem:[%s1 + $0x60] sm:$0xf]
  %v71 = vld [vmem:[%s1 + $0x64] sm:$0xf]
  %v72 = vld [vmem:[%s1 + $0x68] sm:$0xf]
  %v73 = vld [vmem:[%s1 + $0x6c] sm:$0xf]
  %v74 = vld [vmem:[%s1 + $0x70] sm:$0xf]
  %v75 = vld [vmem:[%s1 + $0x74] sm:$0xf]
  %v76 = vld [vmem:[%s1 + $0x78] sm:$0xf]
  %v77 = vld [vmem:[%s1 + $0x7c] sm:$0xf]
  %v78 = vld [vmem:[%s1 + $0x80] sm:$0xf]
  %v79 = vld [vmem:[%s1 + $0x84] sm:$0xf]
  %v80 = vld [vmem:[%s1 + $0x88] sm:$0xf]
  %v81 = vld [vmem:[%s1 + $0x8c] sm:$0xf]
  %v82 = vld [vmem:[%s1 + $0x90] sm:$0xf]
  %v83 = vld [vmem:[%s1 + $0x94] sm:$0xf]
  %v84 = vld [vmem:[%s1 + $0x98] sm:$0xf]
  %v85 = vld [vmem:[%s1 + $0x9c] sm:$0xf]
  %v86 = vld [vmem:[%s1 + $0xa0] sm:$0xf]
  %v87 = vld [vmem:[%s1 + $0xa4] sm:$0xf]
  %v88 = vld [vmem:[%s1 + $0xa8] sm:$0xf]
  %v89 = vld [vmem:[%s1 + $0xac] sm:$0xf]
  %v90 = vld [vmem:[%s1 + $0xb0] sm:$0xf]
  %v91 = vld [vmem:[%s1 + $0xb4] sm:$0xf]
  %v92 = vld [vmem:[%s1 + $0xb8] sm:$0xf]
  %v93 = vld [vmem:[%s1 + $0xbc] sm:$0xf]
  %v94 = vld [vmem:[%s1 + $0xc0] sm:$0xf]
  %v95 = vld [vmem:[%s1 + $0xc4] sm:$0xf]
  %v96 = vld [vmem:[%s1 + $0xc8] sm:$0xf]
  %v97 = vld [vmem:[%s1 + $0xcc] sm:$0xf]
  %v98 = vld [vmem:[%s1 + $0xd0] sm:$0xf]
  %v99 = vld [vmem:[%s1 + $0xd4] sm:$0xf]
  %v100 = vld [vmem:[%s1 + $0xd8] sm:$0xf]
  %v101 = vld [vmem:[%s1 + $0xdc] sm:$0xf]
  %v102 = vld [vmem:[%s1 + $0xe0] sm:$0xf]
  %v103 = vld [vmem:[%s1 + $0xe4] sm:$0xf]
  %v104 = vld [vmem:[%s1 + $0xe8] sm:$0xf]
  %v105 = vld [vmem:[%s1 + $0xec] sm:$0xf]
  %v106 = vld [vmem:[%s1 + $0xf0] sm:$0xf]
  %v107 = vld [vmem:[%s1 + $0xf4] sm:$0xf]
  %v108 = vld [vmem:[%s1 + $0xf8] sm:$0xf]
  %v109 = vld [vmem:[%s1 + $0xfc] sm:$0xf]
  %v110 = vld [vmem:[%s1 + $0x100] sm:$0xf]
  %v111 = vld [vmem:[%s1 + $0x104] sm:$0xf]
  %v112 = vld [vmem:[%s1 + $0x108] sm:$0xf]
  %v113 = vld [vmem:[%s1 + $0x10c] sm:$0xf]
  %v114 = vld [vmem:[%s1 + $0x110] sm:$0xf]
  %v115 = vld [vmem:[%s1 + $0x114] sm:$0xf]
  %v116 = vld [vmem:[%s1 + $0x118] sm:$0xf]
  %v117 = vld [vmem:[%s1 + $0x11c] sm:$0xf]
  %v118 = vld [vmem:[%s1 + $0x120] sm:$0xf]
  %v119 = vld [vmem:[%s1 + $0x124] sm:$0xf]
  %v120 = vld [vmem:[%s1 + $0x128] sm:$0xf]
  %v121 = vld [vmem:[%s1 + $0x12c] sm:$0xf]
  %v122 = vld [vmem:[%s1 + $0x130] sm:$0xf]
  %v123 = vld [vmem:[%s1 + $0x134] sm:$0xf]
  %v124 = vld [vmem:[%s1 + $0x138] sm:$0xf]
  %v125 = vld [vmem:[%s1 + $0x13c] sm:$0xf]
  %v126 = vld [vmem:[%s1 + $0x140] sm:$0xf]
  %v127 = vld [vmem:[%s1 + $0x144] sm:$0xf]
  %v128 = vld [vmem:[%s1 + $0x148] sm:$0xf]
  %v129 = vld [vmem:[%s1 + $0x14c] sm:$0xf]
  %v130 = vld [vmem:[%s1 + $0x150] sm:$0xf]
  %v131 = vld [vmem:[%s1 + $0x154] sm:$0xf]
  %v132 = vld [vmem:[%s1 + $0x158] sm:$0xf]
  %v133 = vld [vmem:[%s1 + $0x15c] sm:$0xf]
  %v134 = vld [vmem:[%s1 + $0x160] sm:$0xf]
  %v135 = vld [vmem:[%s1 + $0x164] sm:$0xf]
  %v136 = vld [vmem:[%s1 + $0x168] sm:$0xf]
  %v137 = vld [vmem:[%s1 + $0x16c] sm:$0xf]
  %v138 = vld [vmem:[%s1 + $0x170] sm:$0xf]
  %v139 = vld [vmem:[%s1 + $0x174] sm:$0xf]
  %v140 = vld [vmem:[%s1 + $0x178] sm:$0xf]
  %v141 = vld [vmem:[%s1 + $0x17c] sm:$0xf]
  %v142 = vld [vmem:[%s1 + $0x180] sm:$0xf]
  %v143 = vld [vmem:[%s1 + $0x184] sm:$0xf]
  %v144 = vld [vmem:[%s1 + $0x188] sm:$0xf]
  %v145 = vld [vmem:[%s1 + $0x18c] sm:$0xf]
  %v146 = vld [vmem:[%s1 + $0x190] sm:$0xf]
  %v147 = vld [vmem:[%s1 + $0x194] sm:$0xf]
  %v148 = vld [vmem:[%s1 + $0x198] sm:$0xf]
  %v149 = vld [vmem:[%s1 + $0x19c] sm:$0xf]
  %v150 = vld [vmem:[%s1 + $0x1a0] sm:$0xf]
  %v151 = vld [vmem:[%s1 + $0x1a4] sm:$0xf]
  %v152 = vld [vmem:[%s1 + $0x1a8] sm:$0xf]
  %v153 = vld [vmem:[%s1 + $0x1ac] sm:$0xf]
  %v154 = vld [vmem:[%s1 + $0x1b0] sm:$0xf]
  %v155 = vld [vmem:[%s1 + $0x1b4] sm:$0xf]
  %v156 = vld [vmem:[%s1 + $0x1b8] sm:$0xf]
  %v157 = vld [vmem:[%s1 + $0x1bc] sm:$0xf]
  %v158 = vld [vmem:[%s2] sm:$0x1]
  %v160 = vperm.slane %v158, 0
  %v194 = vunpack.c.l.b16 %v14
  %v195 = vunpack.c.h.b16 %v14
  %v196 = vunpack.c.l.b16 %v15
  %v197 = vunpack.c.h.b16 %v15
  %v198 = vunpack.c.l.b16 %v16
  %v199 = vunpack.c.h.b16 %v16
  %v200 = vunpack.c.l.b16 %v17
  %v201 = vunpack.c.l.b16 %v18
  %v202 = vunpack.c.h.b16 %v18
  %v203 = vunpack.c.l.b16 %v19
  %v204 = vunpack.c.h.b16 %v19
  %v205 = vunpack.c.l.b16 %v20
  %v206 = vunpack.c.h.b16 %v20
  %v207 = vunpack.c.l.b16 %v21
  %v208 = vunpack.c.l.b16 %v22
  %v209 = vunpack.c.h.b16 %v22
  %v210 = vunpack.c.l.b16 %v23
  %v211 = vunpack.c.h.b16 %v23
  %v212 = vunpack.c.l.b16 %v24
  %v213 = vunpack.c.h.b16 %v24
  %v214 = vunpack.c.l.b16 %v25
  %v215 = vunpack.c.l.b16 %v26
  %v216 = vunpack.c.h.b16 %v26
  %v217 = vunpack.c.l.b16 %v27
  %v218 = vunpack.c.h.b16 %v27
  %v219 = vunpack.c.l.b16 %v28
  %v220 = vunpack.c.h.b16 %v28
  %v221 = vunpack.c.l.b16 %v29
  %v222 = vunpack.c.l.b16 %v30
  %v223 = vunpack.c.h.b16 %v30
  %v224 = vunpack.c.l.b16 %v31
  %v225 = vunpack.c.h.b16 %v31
  %v226 = vunpack.c.l.b16 %v32
  %v227 = vunpack.c.h.b16 %v32
  %v228 = vunpack.c.l.b16 %v33
  %v229 = vunpack.c.l.b16 %v34
  %v230 = vunpack.c.h.b16 %v34
  %v231 = vunpack.c.l.b16 %v35
  %v232 = vunpack.c.h.b16 %v35
  %v233 = vunpack.c.l.b16 %v36
  %v234 = vunpack.c.h.b16 %v36
  %v235 = vunpack.c.l.b16 %v37
  %v236 = vunpack.c.l.b16 %v38
  %v237 = vunpack.c.h.b16 %v38
  %v238 = vunpack.c.l.b16 %v39
  %v239 = vunpack.c.h.b16 %v39
  %v240 = vunpack.c.l.b16 %v40
  %v241 = vunpack.c.h.b16 %v40
  %v242 = vunpack.c.l.b16 %v41
  %v243 = vunpack.c.l.b16 %v42
  %v244 = vunpack.c.h.b16 %v42
  %v245 = vunpack.c.l.b16 %v43
  %v246 = vunpack.c.h.b16 %v43
  %v247 = vunpack.c.l.b16 %v44
  %v248 = vunpack.c.h.b16 %v44
  %v249 = vunpack.c.l.b16 %v45
  %v250 = vpack.c.b16 %v201, %v194
  %v251 = vpack.c.b16 %v202, %v195
  %v252 = vpack.c.b16 %v203, %v196
  %v253 = vpack.c.b16 %v204, %v197
  %v254 = vpack.c.b16 %v205, %v198
  %v255 = vpack.c.b16 %v206, %v199
  %v256 = vpack.c.b16 %v207, %v200
  %v257 = vpack.c.b16 %v215, %v208
  %v258 = vpack.c.b16 %v216, %v209
  %v259 = vpack.c.b16 %v217, %v210
  %v260 = vpack.c.b16 %v218, %v211
  %v261 = vpack.c.b16 %v219, %v212
  %v262 = vpack.c.b16 %v220, %v213
  %v263 = vpack.c.b16 %v221, %v214
  %v264 = vpack.c.b16 %v229, %v222
  %v265 = vpack.c.b16 %v230, %v223
  %v266 = vpack.c.b16 %v231, %v224
  %v267 = vpack.c.b16 %v232, %v225
  %v268 = vpack.c.b16 %v233, %v226
  %v269 = vpack.c.b16 %v234, %v227
  %v270 = vpack.c.b16 %v235, %v228
  %v271 = vpack.c.b16 %v243, %v236
  %v272 = vpack.c.b16 %v244, %v237
  %v273 = vpack.c.b16 %v245, %v238
  %v274 = vpack.c.b16 %v246, %v239
  %v275 = vpack.c.b16 %v247, %v240
  %v276 = vpack.c.b16 %v248, %v241
  %v277 = vpack.c.b16 %v249, %v242
  %v418 = vunpack.c.l.b16 %v46
  %v419 = vunpack.c.l.b16 %v47
  %v420 = vunpack.c.l.b16 %v48
  %v421 = vunpack.c.l.b16 %v49
  %v422 = vunpack.c.l.b16 %v50
  %v423 = vunpack.c.l.b16 %v51
  %v424 = vunpack.c.l.b16 %v52
  %v425 = vunpack.c.l.b16 %v53
  %v426 = vunpack.c.l.b16 %v54
  %v427 = vunpack.c.l.b16 %v55
  %v428 = vunpack.c.l.b16 %v56
  %v429 = vunpack.c.l.b16 %v57
  %v430 = vunpack.c.l.b16 %v58
  %v431 = vunpack.c.l.b16 %v59
  %v432 = vunpack.c.l.b16 %v60
  %v433 = vunpack.c.l.b16 %v61
  %v434 = vunpack.c.l.b16 %v62
  %v435 = vunpack.c.l.b16 %v63
  %v436 = vunpack.c.l.b16 %v64
  %v437 = vunpack.c.l.b16 %v65
  %v438 = vunpack.c.l.b16 %v66
  %v439 = vunpack.c.l.b16 %v67
  %v440 = vunpack.c.l.b16 %v68
  %v441 = vunpack.c.l.b16 %v69
  %v442 = vunpack.c.l.b16 %v70
  %v443 = vunpack.c.l.b16 %v71
  %v444 = vunpack.c.l.b16 %v72
  %v445 = vunpack.c.l.b16 %v73
  %v446 = vunpack.c.l.b16 %v74
  %v447 = vunpack.c.l.b16 %v75
  %v448 = vunpack.c.l.b16 %v76
  %v449 = vunpack.c.l.b16 %v77
  %v450 = vunpack.c.l.b16 %v78
  %v451 = vunpack.c.l.b16 %v79
  %v452 = vunpack.c.l.b16 %v80
  %v453 = vunpack.c.l.b16 %v81
  %v454 = vunpack.c.l.b16 %v82
  %v455 = vunpack.c.l.b16 %v83
  %v456 = vunpack.c.l.b16 %v84
  %v457 = vunpack.c.l.b16 %v85
  %v458 = vunpack.c.l.b16 %v86
  %v459 = vunpack.c.l.b16 %v87
  %v460 = vunpack.c.l.b16 %v88
  %v461 = vunpack.c.l.b16 %v89
  %v462 = vunpack.c.l.b16 %v90
  %v463 = vunpack.c.l.b16 %v91
  %v464 = vunpack.c.l.b16 %v92
  %v465 = vunpack.c.l.b16 %v93
  %v466 = vunpack.c.l.b16 %v94
  %v467 = vunpack.c.l.b16 %v95
  %v468 = vunpack.c.l.b16 %v96
  %v469 = vunpack.c.l.b16 %v97
  %v470 = vunpack.c.l.b16 %v98
  %v471 = vunpack.c.l.b16 %v99
  %v472 = vunpack.c.l.b16 %v100
  %v473 = vunpack.c.l.b16 %v101
  %v474 = vunpack.c.l.b16 %v102
  %v475 = vunpack.c.l.b16 %v103
  %v476 = vunpack.c.l.b16 %v104
  %v477 = vunpack.c.l.b16 %v105
  %v478 = vunpack.c.l.b16 %v106
  %v479 = vunpack.c.l.b16 %v107
  %v480 = vunpack.c.l.b16 %v108
  %v481 = vunpack.c.l.b16 %v109
  %v482 = vunpack.c.l.b16 %v110
  %v483 = vunpack.c.l.b16 %v111
  %v484 = vunpack.c.l.b16 %v112
  %v485 = vunpack.c.l.b16 %v113
  %v486 = vunpack.c.l.b16 %v114
  %v487 = vunpack.c.l.b16 %v115
  %v488 = vunpack.c.l.b16 %v116
  %v489 = vunpack.c.l.b16 %v117
  %v490 = vunpack.c.l.b16 %v118
  %v491 = vunpack.c.l.b16 %v119
  %v492 = vunpack.c.l.b16 %v120
  %v493 = vunpack.c.l.b16 %v121
  %v494 = vunpack.c.l.b16 %v122
  %v495 = vunpack.c.l.b16 %v123
  %v496 = vunpack.c.l.b16 %v124
  %v497 = vunpack.c.l.b16 %v125
  %v498 = vunpack.c.l.b16 %v126
  %v499 = vunpack.c.l.b16 %v127
  %v500 = vunpack.c.l.b16 %v128
  %v501 = vunpack.c.l.b16 %v129
  %v502 = vunpack.c.l.b16 %v130
  %v503 = vunpack.c.l.b16 %v131
  %v504 = vunpack.c.l.b16 %v132
  %v505 = vunpack.c.l.b16 %v133
  %v506 = vunpack.c.l.b16 %v134
  %v507 = vunpack.c.l.b16 %v135
  %v508 = vunpack.c.l.b16 %v136
  %v509 = vunpack.c.l.b16 %v137
  %v510 = vunpack.c.l.b16 %v138
  %v511 = vunpack.c.l.b16 %v139
  %v512 = vunpack.c.l.b16 %v140
  %v513 = vunpack.c.l.b16 %v141
  %v514 = vunpack.c.l.b16 %v142
  %v515 = vunpack.c.l.b16 %v143
  %v516 = vunpack.c.l.b16 %v144
  %v517 = vunpack.c.l.b16 %v145
  %v518 = vunpack.c.l.b16 %v146
  %v519 = vunpack.c.l.b16 %v147
  %v520 = vunpack.c.l.b16 %v148
  %v521 = vunpack.c.l.b16 %v149
  %v522 = vunpack.c.l.b16 %v150
  %v523 = vunpack.c.l.b16 %v151
  %v524 = vunpack.c.l.b16 %v152
  %v525 = vunpack.c.l.b16 %v153
  %v526 = vunpack.c.l.b16 %v154
  %v527 = vunpack.c.l.b16 %v155
  %v528 = vunpack.c.l.b16 %v156
  %v529 = vunpack.c.l.b16 %v157
  %v530 = vpack.c.b16 %v419, %v418
  %v531 = vpack.c.b16 %v421, %v420
  %v532 = vpack.c.b16 %v423, %v422
  %v533 = vpack.c.b16 %v425, %v424
  %v534 = vpack.c.b16 %v427, %v426
  %v535 = vpack.c.b16 %v429, %v428
  %v536 = vpack.c.b16 %v431, %v430
  %v537 = vpack.c.b16 %v433, %v432
  %v538 = vpack.c.b16 %v435, %v434
  %v539 = vpack.c.b16 %v437, %v436
  %v540 = vpack.c.b16 %v439, %v438
  %v541 = vpack.c.b16 %v441, %v440
  %v542 = vpack.c.b16 %v443, %v442
  %v543 = vpack.c.b16 %v445, %v444
  %v544 = vpack.c.b16 %v447, %v446
  %v545 = vpack.c.b16 %v449, %v448
  %v546 = vpack.c.b16 %v451, %v450
  %v547 = vpack.c.b16 %v453, %v452
  %v548 = vpack.c.b16 %v455, %v454
  %v549 = vpack.c.b16 %v457, %v456
  %v550 = vpack.c.b16 %v459, %v458
  %v551 = vpack.c.b16 %v461, %v460
  %v552 = vpack.c.b16 %v463, %v462
  %v553 = vpack.c.b16 %v465, %v464
  %v554 = vpack.c.b16 %v467, %v466
  %v555 = vpack.c.b16 %v469, %v468
  %v556 = vpack.c.b16 %v471, %v470
  %v557 = vpack.c.b16 %v473, %v472
  %v558 = vpack.c.b16 %v475, %v474
  %v559 = vpack.c.b16 %v477, %v476
  %v560 = vpack.c.b16 %v479, %v478
  %v561 = vpack.c.b16 %v481, %v480
  %v562 = vpack.c.b16 %v483, %v482
  %v563 = vpack.c.b16 %v485, %v484
  %v564 = vpack.c.b16 %v487, %v486
  %v565 = vpack.c.b16 %v489, %v488
  %v566 = vpack.c.b16 %v491, %v490
  %v567 = vpack.c.b16 %v493, %v492
  %v568 = vpack.c.b16 %v495, %v494
  %v569 = vpack.c.b16 %v497, %v496
  %v570 = vpack.c.b16 %v499, %v498
  %v571 = vpack.c.b16 %v501, %v500
  %v572 = vpack.c.b16 %v503, %v502
  %v573 = vpack.c.b16 %v505, %v504
  %v574 = vpack.c.b16 %v507, %v506
  %v575 = vpack.c.b16 %v509, %v508
  %v576 = vpack.c.b16 %v511, %v510
  %v577 = vpack.c.b16 %v513, %v512
  %v578 = vpack.c.b16 %v515, %v514
  %v579 = vpack.c.b16 %v517, %v516
  %v580 = vpack.c.b16 %v519, %v518
  %v581 = vpack.c.b16 %v521, %v520
  %v582 = vpack.c.b16 %v523, %v522
  %v583 = vpack.c.b16 %v525, %v524
  %v584 = vpack.c.b16 %v527, %v526
  %v585 = vpack.c.b16 %v529, %v528
  %642 = vmatpush.bf16.msra.mxu0 %v537
  %643 = vmatpush.bf16.msra.mxu0 %v536
  %644 = vmatpush.bf16.msra.mxu0 %v535
  %645 = vmatpush.bf16.msra.mxu0 %v534
  %646 = vmatpush.bf16.msra.mxu0 %v533
  %647 = vmatpush.bf16.msra.mxu0 %v532
  %648 = vmatpush.bf16.msra.mxu0 %v531
  %649 = vmatpush.bf16.msra.mxu0 %v530
  %650 = vmatmul.bf16.gmra.mxu0 %v250
  %v651 = vpop.f32.mrf.mxu0
  %v652 = vadd.f32 %v160, %v651
  %v653 = vpop.f32.mrf.mxu0
  %v654 = vadd.f32 %v160, %v653
  %655 = vmatmul.bf16.gmra.mxu0 %v257
  %v656 = vpop.f32.mrf.mxu0
  %v657 = vadd.f32 %v160, %v656
  %v658 = vpop.f32.mrf.mxu0
  %v659 = vadd.f32 %v160, %v658
  %660 = vmatmul.bf16.gmra.mxu0 %v264
  %v661 = vpop.f32.mrf.mxu0
  %v662 = vadd.f32 %v160, %v661
  %v663 = vpop.f32.mrf.mxu0
  %v664 = vadd.f32 %v160, %v663
  %665 = vmatmul.bf16.gmra.mxu0 %v271
  %v666 = vpop.f32.mrf.mxu0
  %v667 = vadd.f32 %v160, %v666
  %v668 = vpop.f32.mrf.mxu0
  %v669 = vadd.f32 %v160, %v668
  %670 = vdwg.mxu0
  %671 = vmatpush.bf16.msra.mxu0 %v545
  %672 = vmatpush.bf16.msra.mxu0 %v544
  %673 = vmatpush.bf16.msra.mxu0 %v543
  %674 = vmatpush.bf16.msra.mxu0 %v542
  %675 = vmatpush.bf16.msra.mxu0 %v541
  %676 = vmatpush.bf16.msra.mxu0 %v540
  %677 = vmatpush.bf16.msra.mxu0 %v539
  %678 = vmatpush.bf16.msra.mxu0 %v538
  %679 = vmatmul.bf16.gmra.mxu0 %v251
  %v680 = vpop.f32.mrf.mxu0
  %v681 = vadd.f32 %v652, %v680
  %v682 = vpop.f32.mrf.mxu0
  %v683 = vadd.f32 %v654, %v682
  %684 = vmatmul.bf16.gmra.mxu0 %v258
  %v685 = vpop.f32.mrf.mxu0
  %v686 = vadd.f32 %v657, %v685
  %v687 = vpop.f32.mrf.mxu0
  %v688 = vadd.f32 %v659, %v687
  %689 = vmatmul.bf16.gmra.mxu0 %v265
  %v690 = vpop.f32.mrf.mxu0
  %v691 = vadd.f32 %v662, %v690
  %v692 = vpop.f32.mrf.mxu0
  %v693 = vadd.f32 %v664, %v692
  %694 = vmatmul.bf16.gmra.mxu0 %v272
  %v695 = vpop.f32.mrf.mxu0
  %v696 = vadd.f32 %v667, %v695
  %v697 = vpop.f32.mrf.mxu0
  %v698 = vadd.f32 %v669, %v697
  %699 = vdwg.mxu0
  %700 = vmatpush.bf16.msra.mxu0 %v553
  %701 = vmatpush.bf16.msra.mxu0 %v552
  %702 = vmatpush.bf16.msra.mxu0 %v551
  %703 = vmatpush.bf16.msra.mxu0 %v550
  %704 = vmatpush.bf16.msra.mxu0 %v549
  %705 = vmatpush.bf16.msra.mxu0 %v548
  %706 = vmatpush.bf16.msra.mxu0 %v547
  %707 = vmatpush.bf16.msra.mxu0 %v546
  %708 = vmatmul.bf16.gmra.mxu0 %v252
  %v709 = vpop.f32.mrf.mxu0
  %v710 = vadd.f32 %v681, %v709
  %v711 = vpop.f32.mrf.mxu0
  %v712 = vadd.f32 %v683, %v711
  %713 = vmatmul.bf16.gmra.mxu0 %v259
  %v714 = vpop.f32.mrf.mxu0
  %v715 = vadd.f32 %v686, %v714
  %v716 = vpop.f32.mrf.mxu0
  %v717 = vadd.f32 %v688, %v716
  %718 = vmatmul.bf16.gmra.mxu0 %v266
  %v719 = vpop.f32.mrf.mxu0
  %v720 = vadd.f32 %v691, %v719
  %v721 = vpop.f32.mrf.mxu0
  %v722 = vadd.f32 %v693, %v721
  %723 = vmatmul.bf16.gmra.mxu0 %v273
  %v724 = vpop.f32.mrf.mxu0
  %v725 = vadd.f32 %v696, %v724
  %v726 = vpop.f32.mrf.mxu0
  %v727 = vadd.f32 %v698, %v726
  %728 = vdwg.mxu0
  %729 = vmatpush.bf16.msra.mxu0 %v561
  %730 = vmatpush.bf16.msra.mxu0 %v560
  %731 = vmatpush.bf16.msra.mxu0 %v559
  %732 = vmatpush.bf16.msra.mxu0 %v558
  %733 = vmatpush.bf16.msra.mxu0 %v557
  %734 = vmatpush.bf16.msra.mxu0 %v556
  %735 = vmatpush.bf16.msra.mxu0 %v555
  %736 = vmatpush.bf16.msra.mxu0 %v554
  %737 = vmatmul.bf16.gmra.mxu0 %v253
  %v738 = vpop.f32.mrf.mxu0
  %v739 = vadd.f32 %v710, %v738
  %v740 = vpop.f32.mrf.mxu0
  %v741 = vadd.f32 %v712, %v740
  %742 = vmatmul.bf16.gmra.mxu0 %v260
  %v743 = vpop.f32.mrf.mxu0
  %v744 = vadd.f32 %v715, %v743
  %v745 = vpop.f32.mrf.mxu0
  %v746 = vadd.f32 %v717, %v745
  %747 = vmatmul.bf16.gmra.mxu0 %v267
  %v748 = vpop.f32.mrf.mxu0
  %v749 = vadd.f32 %v720, %v748
  %v750 = vpop.f32.mrf.mxu0
  %v751 = vadd.f32 %v722, %v750
  %752 = vmatmul.bf16.gmra.mxu0 %v274
  %v753 = vpop.f32.mrf.mxu0
  %v754 = vadd.f32 %v725, %v753
  %v755 = vpop.f32.mrf.mxu0
  %v756 = vadd.f32 %v727, %v755
  %757 = vdwg.mxu0
  %758 = vmatpush.bf16.msra.mxu0 %v569
  %759 = vmatpush.bf16.msra.mxu0 %v568
  %760 = vmatpush.bf16.msra.mxu0 %v567
  %761 = vmatpush.bf16.msra.mxu0 %v566
  %762 = vmatpush.bf16.msra.mxu0 %v565
  %763 = vmatpush.bf16.msra.mxu0 %v564
  %764 = vmatpush.bf16.msra.mxu0 %v563
  %765 = vmatpush.bf16.msra.mxu0 %v562
  %766 = vmatmul.bf16.gmra.mxu0 %v254
  %v767 = vpop.f32.mrf.mxu0
  %v768 = vadd.f32 %v739, %v767
  %v769 = vpop.f32.mrf.mxu0
  %v770 = vadd.f32 %v741, %v769
  %771 = vmatmul.bf16.gmra.mxu0 %v261
  %v772 = vpop.f32.mrf.mxu0
  %v773 = vadd.f32 %v744, %v772
  %v774 = vpop.f32.mrf.mxu0
  %v775 = vadd.f32 %v746, %v774
  %776 = vmatmul.bf16.gmra.mxu0 %v268
  %v777 = vpop.f32.mrf.mxu0
  %v778 = vadd.f32 %v749, %v777
  %v779 = vpop.f32.mrf.mxu0
  %v780 = vadd.f32 %v751, %v779
  %781 = vmatmul.bf16.gmra.mxu0 %v275
  %v782 = vpop.f32.mrf.mxu0
  %v783 = vadd.f32 %v754, %v782
  %v784 = vpop.f32.mrf.mxu0
  %v785 = vadd.f32 %v756, %v784
  %786 = vdwg.mxu0
  %787 = vmatpush.bf16.msra.mxu0 %v577
  %788 = vmatpush.bf16.msra.mxu0 %v576
  %789 = vmatpush.bf16.msra.mxu0 %v575
  %790 = vmatpush.bf16.msra.mxu0 %v574
  %791 = vmatpush.bf16.msra.mxu0 %v573
  %792 = vmatpush.bf16.msra.mxu0 %v572
  %793 = vmatpush.bf16.msra.mxu0 %v571
  %794 = vmatpush.bf16.msra.mxu0 %v570
  %795 = vmatmul.bf16.gmra.mxu0 %v255
  %v796 = vpop.f32.mrf.mxu0
  %v797 = vadd.f32 %v768, %v796
  %v798 = vpop.f32.mrf.mxu0
  %v799 = vadd.f32 %v770, %v798
  %800 = vmatmul.bf16.gmra.mxu0 %v262
  %v801 = vpop.f32.mrf.mxu0
  %v802 = vadd.f32 %v773, %v801
  %v803 = vpop.f32.mrf.mxu0
  %v804 = vadd.f32 %v775, %v803
  %805 = vmatmul.bf16.gmra.mxu0 %v269
  %v806 = vpop.f32.mrf.mxu0
  %v807 = vadd.f32 %v778, %v806
  %v808 = vpop.f32.mrf.mxu0
  %v809 = vadd.f32 %v780, %v808
  %810 = vmatmul.bf16.gmra.mxu0 %v276
  %v811 = vpop.f32.mrf.mxu0
  %v812 = vadd.f32 %v783, %v811
  %v813 = vpop.f32.mrf.mxu0
  %v814 = vadd.f32 %v785, %v813
  %815 = vdwg.mxu0
  %816 = vmatpush.bf16.msra.mxu0 %v585
  %817 = vmatpush.bf16.msra.mxu0 %v584
  %818 = vmatpush.bf16.msra.mxu0 %v583
  %819 = vmatpush.bf16.msra.mxu0 %v582
  %820 = vmatpush.bf16.msra.mxu0 %v581
  %821 = vmatpush.bf16.msra.mxu0 %v580
  %822 = vmatpush.bf16.msra.mxu0 %v579
  %823 = vmatpush.bf16.msra.mxu0 %v578
  %824 = vmatmul.bf16.gmra.mxu0 %v256
  %v825 = vpop.f32.mrf.mxu0
  %v826 = vadd.f32 %v797, %v825
  %v827 = vpop.f32.mrf.mxu0
  %v828 = vadd.f32 %v799, %v827
  %829 = vmatmul.bf16.gmra.mxu0 %v263
  %v830 = vpop.f32.mrf.mxu0
  %v831 = vadd.f32 %v802, %v830
  %v832 = vpop.f32.mrf.mxu0
  %v833 = vadd.f32 %v804, %v832
  %834 = vmatmul.bf16.gmra.mxu0 %v270
  %v835 = vpop.f32.mrf.mxu0
  %v836 = vadd.f32 %v807, %v835
  %v837 = vpop.f32.mrf.mxu0
  %v838 = vadd.f32 %v809, %v837
  %839 = vmatmul.bf16.gmra.mxu0 %v277
  %v840 = vpop.f32.mrf.mxu0
  %v841 = vadd.f32 %v812, %v840
  %v842 = vpop.f32.mrf.mxu0
  %v843 = vadd.f32 %v814, %v842
  %844 = vdwg.mxu0
  %v845 = vmax.f32 %v826, 0.0
  %v846 = vmax.f32 %v828, 0.0
  %v847 = vmax.f32 %v831, 0.0
  %v848 = vmax.f32 %v833, 0.0
  %v849 = vmax.f32 %v836, 0.0
  %v850 = vmax.f32 %v838, 0.0
  %v851 = vmax.f32 %v841, 0.0
  %v852 = vmax.f32 %v843, 0.0
  %v853 = vpack.c.bf16 %v845, %v845
  %v854 = vpack.c.bf16 %v846, %v846
  %v855 = vpack.c.bf16 %v847, %v847
  %v856 = vpack.c.bf16 %v848, %v848
  %v857 = vpack.c.bf16 %v849, %v849
  %v858 = vpack.c.bf16 %v850, %v850
  %v859 = vpack.c.bf16 %v851, %v851
  %v860 = vpack.c.bf16 %v852, %v852
  %861 = vst [vmem:[%s3] sm:$0xf] %v853
  %862 = vst [vmem:[%s3 + $0x4] sm:$0xf] %v854
  %863 = vst [vmem:[%s3 + $0x8] sm:$0xf] %v855
  %864 = vst [vmem:[%s3 + $0xc] sm:$0xf] %v856
  %865 = vst [vmem:[%s3 + $0x10] sm:$0xf] %v857
  %866 = vst [vmem:[%s3 + $0x14] sm:$0xf] %v858
  %867 = vst [vmem:[%s3 + $0x18] sm:$0xf] %v859
  %868 = vst [vmem:[%s3 + $0x1c] sm:$0xf] %v860
  // Predicated region
  $region14: #{mlp_critic_forward.6} parent=0 // pred_check
    _
  $region15: #{mlp_critic_forward.6} parent=0 // pred_check_branch
    %870 = sbr.rel (0) target = $region17
  $region16: #{mlp_critic_forward.6} parent=0 // pred_region
    _
  $region17: #{mlp_critic_forward.6} parent=0 // pred_fallthru
    _
  // Predicated region
  $region18: #{mlp_critic_forward.6} parent=0 // pred_check
    _
  $region19: #{mlp_critic_forward.6} parent=0 // pred_check_branch
    %872 = sbr.rel (0) target = $region21
  $region20: #{mlp_critic_forward.6} parent=0 // pred_region
    _
  $region21: #{mlp_critic_forward.6} parent=0 // pred_fallthru
    _

</llo_original>
